<compile_context>
chip_gen: v6e
topology: v6e:2x2x1
jax: 0.10.0
libtpu: 0.0.40
codegen_flags: <defaults>
</compile_context>

<pallas_src>
import functools

import numpy as np
import jax
import jax.numpy as jnp
from jax import lax
from jax.experimental import pallas as pl
from jax.experimental.pallas import tpu as pltpu

COUT_PAD = 128  # lane-dense padding for the 3-channel output


def _leaky(x):
    return jnp.where(x >= 0, x, 0.1 * x)


# ------------------------------ fused kernel --------------------------------
def _fused_kernel(p0_ref, w0_ref, b0_ref,
                  w1_ref, b1_ref, w2_ref, b2_ref,
                  w3_ref, b3_ref, w4_ref, b4_ref,
                  mup_ref, w5_ref, b5_ref,
                  o_ref,
                  xpad_lo, xpad_hi,
                  *, H, W, C):
    """One batch element end-to-end; every activation lives in VMEM.

    p0_ref : (1, H2*W2, 32)  bf16   im2col of the stride-2 conv (K padded)
    w0_ref : (32, C)         bf16
    w1..w4 : (9C, C)         bf16   stride-1 64->64 conv weights
    mup_ref: (H*W, H2*W2)    bf16   bilinear-x2 interpolation matrix
    w5_ref : (9C, 128)       bf16   final conv, Cout padded 3 -> 128
    b*_ref : (1, .)          f32
    o_ref  : (1, H*W, 128)   f32    lane-dense output
    xpad_lo: (H2+2, W2+2, C) f32    padded activation scratch (8x8 stage)
    xpad_hi: (H+2,  W+2,  C) f32    padded activation scratch (16x16 stage)
    """
    f32 = jnp.float32
    bf16 = jnp.bfloat16
    H2, W2 = H // 2, W // 2

    # Zero the halo regions once; interiors are overwritten each layer.
    xpad_lo[...] = jnp.zeros_like(xpad_lo)
    xpad_hi[...] = jnp.zeros_like(xpad_hi)

    # ---- encoder conv0: 3->C, stride 2 (prebuilt im2col, one matmul) -------
    y = jnp.dot(p0_ref[0], w0_ref[...], preferred_element_type=f32)
    y = _leaky(y + b0_ref[...])                       # (H2*W2, C) f32

    # ---- 3x3 stride-1 CxC conv at (H2, W2): VMEM pad + im2col + matmul -----
    def conv_s1_lo(act, w_ref, b_ref):
        xpad_lo[1:H2 + 1, 1:W2 + 1, :] = act.reshape(H2, W2, C)
        cols = [xpad_lo[kh:kh + H2, kw:kw + W2, :].reshape(H2 * W2, C)
                for kh in range(3) for kw in range(3)]
        patches = jnp.concatenate(cols, axis=-1).astype(bf16)   # (H2*W2, 9C)
        z = jnp.dot(patches, w_ref[...], preferred_element_type=f32)
        return _leaky(z + b_ref[...])

    y = conv_s1_lo(y, w1_ref, b1_ref)                 # enc1
    y = conv_s1_lo(y, w2_ref, b2_ref)                 # enc2
    y = conv_s1_lo(y, w3_ref, b3_ref)                 # dec0
    y = conv_s1_lo(y, w4_ref, b4_ref)                 # dec1

    # ---- bilinear x2 upsample (align_corners=False): one interp matmul -----
    y = jnp.dot(mup_ref[...], y.astype(bf16),
                preferred_element_type=f32)           # (H*W, C) f32

    # ---- final conv C->3 (padded to 128 lanes), ReLU, lane-dense store -----
    xpad_hi[1:H + 1, 1:W + 1, :] = y.reshape(H, W, C)
    cols = [xpad_hi[kh:kh + H, kw:kw + W, :].reshape(H * W, C)
            for kh in range(3) for kw in range(3)]
    patches = jnp.concatenate(cols, axis=-1).astype(bf16)       # (H*W, 9C)
    z = jnp.dot(patches, w5_ref[...], preferred_element_type=f32)
    o_ref[0] = jnp.maximum(z + b5_ref[...], 0.0)


# --------------------------- bilinear interp matrix --------------------------
def _bilinear_matrix(in_size, out_size):
    """PyTorch align_corners=False 1-D bilinear resize matrix."""
    dst = np.arange(out_size, dtype=np.float64)
    src = (dst + 0.5) * (in_size / out_size) - 0.5
    src = np.clip(src, 0.0, in_size - 1)
    lo = np.floor(src).astype(np.int64)
    hi = np.minimum(lo + 1, in_size - 1)
    frac = src - lo
    A = np.zeros((out_size, in_size), dtype=np.float32)
    A[np.arange(out_size), lo] += (1.0 - frac).astype(np.float32)
    A[np.arange(out_size), hi] += frac.astype(np.float32)
    return A


# ------------------------------- forward pass --------------------------------
def autoencoder_forward(x_nchw, params):
    x = jnp.transpose(x_nchw, (0, 2, 3, 1)).astype(jnp.float32)   # NCHW->NHWC
    N, H, W, Cin = x.shape
    C = params["enc1"][0].shape[-1]                               # 64
    H2, W2 = H // 2, W // 2

    # -- stride-2 conv0 im2col on the tiny raw input; K = 9*Cin=27 -> pad 32 --
    K0, K0p = 9 * Cin, 32
    xp = jnp.pad(x, ((0, 0), (1, 1), (1, 1), (0, 0)))
    cols = [xp[:, kh:kh + 2 * H2:2, kw:kw + 2 * W2:2, :]
            for kh in range(3) for kw in range(3)]
    p0 = jnp.concatenate(cols, axis=-1).reshape(N, H2 * W2, K0)
    p0 = jnp.pad(p0, ((0, 0), (0, 0), (0, K0p - K0))).astype(jnp.bfloat16)

    w0, b0 = params["enc0"]
    w0p = jnp.pad(w0.reshape(K0, C), ((0, K0p - K0), (0, 0))).astype(jnp.bfloat16)
    b0r = b0.reshape(1, C).astype(jnp.float32)

    def wb(name):
        w, b = params[name]
        return (w.reshape(9 * C, C).astype(jnp.bfloat16),
                b.reshape(1, C).astype(jnp.float32))

    w1, b1 = wb("enc1")
    w2, b2 = wb("enc2")
    w3, b3 = wb("dec0")
    w4, b4 = wb("dec1")

    w5, b5 = params["dec2"]
    Cout = w5.shape[-1]                                           # 3
    w5p = jnp.pad(w5.reshape(9 * C, Cout),
                  ((0, 0), (0, COUT_PAD - Cout))).astype(jnp.bfloat16)
    b5p = jnp.pad(b5, (0, COUT_PAD - Cout)).reshape(1, COUT_PAD).astype(jnp.float32)

    m_up = jnp.asarray(np.kron(_bilinear_matrix(H2, H), _bilinear_matrix(W2, W)),
                       jnp.bfloat16)                              # (H*W, H2*W2)

    kernel = functools.partial(_fused_kernel, H=H, W=W, C=C)

    def const(shape):
        nd = len(shape)
        return pl.BlockSpec(shape, lambda n: (0,) * nd)

    out = pl.pallas_call(
        kernel,
        out_shape=jax.ShapeDtypeStruct((N, H * W, COUT_PAD), jnp.float32),
        grid=(N,),
        in_specs=[
            pl.BlockSpec((1, H2 * W2, K0p), lambda n: (n, 0, 0)),
            const((K0p, C)), const((1, C)),
            const((9 * C, C)), const((1, C)),
            const((9 * C, C)), const((1, C)),
            const((9 * C, C)), const((1, C)),
            const((9 * C, C)), const((1, C)),
            const((H * W, H2 * W2)),
            const((9 * C, COUT_PAD)), const((1, COUT_PAD)),
        ],
        out_specs=pl.BlockSpec((1, H * W, COUT_PAD), lambda n: (n, 0, 0)),
        scratch_shapes=[
            pltpu.VMEM((H2 + 2, W2 + 2, C), jnp.float32),
            pltpu.VMEM((H + 2, W + 2, C), jnp.float32),
        ],
        compiler_params=pltpu.CompilerParams(
            dimension_semantics=("parallel",)),
    )(p0, w0p, b0r, w1, b1, w2, b2, w3, b3, w4, b4, m_up, w5p, b5p)

    y = out[:, :, :Cout].reshape(N, H, W, Cout)
    return jnp.transpose(y, (0, 3, 1, 2))                         # NHWC->NCHW


# ------------------------------- parameters ----------------------------------
def _init_conv(key, cin, cout):
    k1, k2 = jax.random.split(key)
    bound = 1.0 / np.sqrt(cin * 9)
    w = jax.random.uniform(k1, (3, 3, cin, cout), jnp.float32, -bound, bound)
    b = jax.random.uniform(k2, (cout,), jnp.float32, -bound, bound)
    return w, b


def init_params(key):
    keys = jax.random.split(key, 6)
    return {
        "enc0": _init_conv(keys[0], 3, 64),    # stride 2
        "enc1": _init_conv(keys[1], 64, 64),
        "enc2": _init_conv(keys[2], 64, 64),
        "dec0": _init_conv(keys[3], 64, 64),
        "dec1": _init_conv(keys[4], 64, 64),
        "dec2": _init_conv(keys[5], 64, 3),
    }


# ------------------------------ pure-JAX reference ---------------------------
def _ref_conv(x, w, b, stride, act):
    y = lax.conv_general_dilated(
        x, w, window_strides=(stride, stride), padding=((1, 1), (1, 1)),
        dimension_numbers=("NHWC", "HWIO", "NHWC"))
    y = y + b.reshape(1, 1, 1, -1)
    return _leaky(y) if act == "leaky" else jnp.maximum(y, 0.0)


def _ref_upsample(x):
    N, Hin, Win, C = x.shape
    M = jnp.asarray(np.kron(_bilinear_matrix(Hin, 2 * Hin),
                            _bilinear_matrix(Win, 2 * Win)))
    xf = x.reshape(N, Hin * Win, C)
    return jnp.einsum("oi,nic->noc", M, xf).reshape(N, 2 * Hin, 2 * Win, C)


def reference_forward(x_nchw, params):
    x = jnp.transpose(x_nchw, (0, 2, 3, 1))
    x = _ref_conv(x, *params["enc0"], 2, "leaky")
    x = _ref_conv(x, *params["enc1"], 1, "leaky")
    x = _ref_conv(x, *params["enc2"], 1, "leaky")
    x = _ref_conv(x, *params["dec0"], 1, "leaky")
    x = _ref_conv(x, *params["dec1"], 1, "leaky")
    x = _ref_upsample(x)
    x = _ref_conv(x, *params["dec2"], 1, "relu")
    return jnp.transpose(x, (0, 3, 1, 2))


# ----------------------------------- main ------------------------------------
if __name__ == "__main__":
    key = jax.random.PRNGKey(0)
    pkey, xkey = jax.random.split(key)
    params = init_params(pkey)
    x = jax.random.normal(xkey, (2, 3, 16, 16), jnp.float32)      # NCHW input

    fwd = jax.jit(autoencoder_forward)
    out = jax.block_until_ready(fwd(x, params))
    assert out.shape == (2, 3, 16, 16), out.shape

    ref = jax.block_until_ready(reference_forward(x, params))
    # bf16 matmul operands (f32 accumulation) -> loose-ish tolerance.
    np.testing.assert_allclose(np.asarray(out), np.asarray(ref),
                               rtol=3e-2, atol=3e-2)
    print("KERNEL_OK")
</pallas_src>

<mosaic_0001>
module attributes {stable_mosaic.version = 11 : i64} {
  func.func @_fused_kernel(%arg0: i32, %arg1: memref<1x64x32xbf16, #tpu.memory_space<vmem>>, %arg2: memref<32x64xbf16, #tpu.memory_space<vmem>>, %arg3: memref<1x64xf32, #tpu.memory_space<vmem>>, %arg4: memref<576x64xbf16, #tpu.memory_space<vmem>>, %arg5: memref<1x64xf32, #tpu.memory_space<vmem>>, %arg6: memref<576x64xbf16, #tpu.memory_space<vmem>>, %arg7: memref<1x64xf32, #tpu.memory_space<vmem>>, %arg8: memref<576x64xbf16, #tpu.memory_space<vmem>>, %arg9: memref<1x64xf32, #tpu.memory_space<vmem>>, %arg10: memref<576x64xbf16, #tpu.memory_space<vmem>>, %arg11: memref<1x64xf32, #tpu.memory_space<vmem>>, %arg12: memref<256x64xbf16, #tpu.memory_space<vmem>>, %arg13: memref<576x128xbf16, #tpu.memory_space<vmem>>, %arg14: memref<1x128xf32, #tpu.memory_space<vmem>>, %arg15: memref<1x256x128xf32, #tpu.memory_space<vmem>>, %arg16: memref<10x10x64xf32, #tpu.memory_space<vmem>>, %arg17: memref<18x18x64xf32, #tpu.memory_space<vmem>>) attributes {dimension_semantics = [#tpu.dimension_semantics<parallel>], iteration_bounds = array<i64: 2>, scalar_prefetch = 0 : i64, scratch_operands = 2 : i64, tpu.core_type = #tpu.core_type<tc>, window_params = [{transform_indices = @transform_0, window_bounds = array<i64: 1, 64, 32>}, {pipeline_mode = #tpu.pipeline_mode<synchronous>, transform_indices = @transform_1, window_bounds = array<i64: 32, 64>}, {pipeline_mode = #tpu.pipeline_mode<synchronous>, transform_indices = @transform_2, window_bounds = array<i64: 1, 64>}, {pipeline_mode = #tpu.pipeline_mode<synchronous>, transform_indices = @transform_3, window_bounds = array<i64: 576, 64>}, {pipeline_mode = #tpu.pipeline_mode<synchronous>, transform_indices = @transform_4, window_bounds = array<i64: 1, 64>}, {pipeline_mode = #tpu.pipeline_mode<synchronous>, transform_indices = @transform_5, window_bounds = array<i64: 576, 64>}, {pipeline_mode = #tpu.pipeline_mode<synchronous>, transform_indices = @transform_6, window_bounds = array<i64: 1, 64>}, {pipeline_mode = #tpu.pipeline_mode<synchronous>, transform_indices = @transform_7, window_bounds = array<i64: 576, 64>}, {pipeline_mode = #tpu.pipeline_mode<synchronous>, transform_indices = @transform_8, window_bounds = array<i64: 1, 64>}, {pipeline_mode = #tpu.pipeline_mode<synchronous>, transform_indices = @transform_9, window_bounds = array<i64: 576, 64>}, {pipeline_mode = #tpu.pipeline_mode<synchronous>, transform_indices = @transform_10, window_bounds = array<i64: 1, 64>}, {pipeline_mode = #tpu.pipeline_mode<synchronous>, transform_indices = @transform_11, window_bounds = array<i64: 256, 64>}, {pipeline_mode = #tpu.pipeline_mode<synchronous>, transform_indices = @transform_12, window_bounds = array<i64: 576, 128>}, {pipeline_mode = #tpu.pipeline_mode<synchronous>, transform_indices = @transform_13, window_bounds = array<i64: 1, 128>}, {transform_indices = @transform_14, window_bounds = array<i64: 1, 256, 128>}]} {
    %cst = arith.constant 0.000000e+00 : f32
    %0 = vector.broadcast %cst : f32 to vector<10x10x64xf32>
    %c0 = arith.constant 0 : index
    %c0_0 = arith.constant 0 : index
    %c0_1 = arith.constant 0 : index
    %1 = vector.load %arg16[%c0, %c0_0, %c0_1] : memref<10x10x64xf32, #tpu.memory_space<vmem>>, vector<10x10x64xf32>
    tpu.vector_store %arg16[%c0, %c0_0, %c0_1], %0 {strides = array<i32>} : memref<10x10x64xf32, #tpu.memory_space<vmem>>, vector<10x10x64xf32>,
    %cst_2 = arith.constant 0.000000e+00 : f32
    %2 = vector.broadcast %cst_2 : f32 to vector<18x18x64xf32>
    %c0_3 = arith.constant 0 : index
    %c0_4 = arith.constant 0 : index
    %c0_5 = arith.constant 0 : index
    %3 = vector.load %arg17[%c0_3, %c0_4, %c0_5] : memref<18x18x64xf32, #tpu.memory_space<vmem>>, vector<18x18x64xf32>
    tpu.vector_store %arg17[%c0_3, %c0_4, %c0_5], %2 {strides = array<i32>} : memref<18x18x64xf32, #tpu.memory_space<vmem>>, vector<18x18x64xf32>,
    %c0_6 = arith.constant 0 : index
    %c0_7 = arith.constant 0 : index
    %c0_8 = arith.constant 0 : index
    %4 = vector.load %arg1[%c0_6, %c0_7, %c0_8] : memref<1x64x32xbf16, #tpu.memory_space<vmem>>, vector<1x64x32xbf16>
    %5 = vector.shape_cast %4 : vector<1x64x32xbf16> to vector<64x32xbf16>
    %c0_9 = arith.constant 0 : index
    %c0_10 = arith.constant 0 : index
    %6 = vector.load %arg2[%c0_9, %c0_10] : memref<32x64xbf16, #tpu.memory_space<vmem>>, vector<32x64xbf16>
    %cst_11 = arith.constant dense<0.000000e+00> : vector<64x64xf32>
    %7 = tpu.matmul %5, %6, %cst_11 {dimension_numbers = #tpu.dot_dimension_numbers<[1], [0], [0], [1], [0, 0, 1, 1], [], []>} : vector<64x32xbf16>, vector<32x64xbf16>, vector<64x64xf32> -> vector<64x64xf32>
    %c0_12 = arith.constant 0 : index
    %c0_13 = arith.constant 0 : index
    %8 = vector.load %arg3[%c0_12, %c0_13] : memref<1x64xf32, #tpu.memory_space<vmem>>, vector<1x64xf32>
    %9 = vector.broadcast %8 : vector<1x64xf32> to vector<64x64xf32>
    %10 = arith.addf %7, %9 : vector<64x64xf32>
    %cst_14 = arith.constant 0.000000e+00 : f32
    %11 = vector.broadcast %cst_14 : f32 to vector<64x64xf32>
    %12 = arith.cmpf oge, %10, %11 : vector<64x64xf32>
    %cst_15 = arith.constant 1.000000e-01 : f32
    %13 = vector.broadcast %cst_15 : f32 to vector<64x64xf32>
    %14 = arith.mulf %13, %10 : vector<64x64xf32>
    %15 = arith.select %12, %10, %14 : vector<64x64xi1>, vector<64x64xf32>
    %16 = vector.shape_cast %15 : vector<64x64xf32> to vector<8x8x64xf32>
    %c1 = arith.constant 1 : index
    %c1_16 = arith.constant 1 : index
    %c0_17 = arith.constant 0 : index
    %17 = vector.load %arg16[%c1, %c1_16, %c0_17] : memref<10x10x64xf32, #tpu.memory_space<vmem>>, vector<8x8x64xf32>
    tpu.vector_store %arg16[%c1, %c1_16, %c0_17], %16 {strides = array<i32>} : memref<10x10x64xf32, #tpu.memory_space<vmem>>, vector<8x8x64xf32>,
    %c0_18 = arith.constant 0 : index
    %c0_19 = arith.constant 0 : index
    %c0_20 = arith.constant 0 : index
    %18 = vector.load %arg16[%c0_18, %c0_19, %c0_20] : memref<10x10x64xf32, #tpu.memory_space<vmem>>, vector<8x8x64xf32>
    %19 = vector.shape_cast %18 : vector<8x8x64xf32> to vector<64x64xf32>
    %c0_21 = arith.constant 0 : index
    %c1_22 = arith.constant 1 : index
    %c0_23 = arith.constant 0 : index
    %20 = vector.load %arg16[%c0_21, %c1_22, %c0_23] : memref<10x10x64xf32, #tpu.memory_space<vmem>>, vector<8x8x64xf32>
    %21 = vector.shape_cast %20 : vector<8x8x64xf32> to vector<64x64xf32>
    %c0_24 = arith.constant 0 : index
    %c2 = arith.constant 2 : index
    %c0_25 = arith.constant 0 : index
    %22 = vector.load %arg16[%c0_24, %c2, %c0_25] : memref<10x10x64xf32, #tpu.memory_space<vmem>>, vector<8x8x64xf32>
    %23 = vector.shape_cast %22 : vector<8x8x64xf32> to vector<64x64xf32>
    %c1_26 = arith.constant 1 : index
    %c0_27 = arith.constant 0 : index
    %c0_28 = arith.constant 0 : index
    %24 = vector.load %arg16[%c1_26, %c0_27, %c0_28] : memref<10x10x64xf32, #tpu.memory_space<vmem>>, vector<8x8x64xf32>
    %25 = vector.shape_cast %24 : vector<8x8x64xf32> to vector<64x64xf32>
    %c1_29 = arith.constant 1 : index
    %c1_30 = arith.constant 1 : index
    %c0_31 = arith.constant 0 : index
    %26 = vector.load %arg16[%c1_29, %c1_30, %c0_31] : memref<10x10x64xf32, #tpu.memory_space<vmem>>, vector<8x8x64xf32>
    %27 = vector.shape_cast %26 : vector<8x8x64xf32> to vector<64x64xf32>
    %c1_32 = arith.constant 1 : index
    %c2_33 = arith.constant 2 : index
    %c0_34 = arith.constant 0 : index
    %28 = vector.load %arg16[%c1_32, %c2_33, %c0_34] : memref<10x10x64xf32, #tpu.memory_space<vmem>>, vector<8x8x64xf32>
    %29 = vector.shape_cast %28 : vector<8x8x64xf32> to vector<64x64xf32>
    %c2_35 = arith.constant 2 : index
    %c0_36 = arith.constant 0 : index
    %c0_37 = arith.constant 0 : index
    %30 = vector.load %arg16[%c2_35, %c0_36, %c0_37] : memref<10x10x64xf32, #tpu.memory_space<vmem>>, vector<8x8x64xf32>
    %31 = vector.shape_cast %30 : vector<8x8x64xf32> to vector<64x64xf32>
    %c2_38 = arith.constant 2 : index
    %c1_39 = arith.constant 1 : index
    %c0_40 = arith.constant 0 : index
    %32 = vector.load %arg16[%c2_38, %c1_39, %c0_40] : memref<10x10x64xf32, #tpu.memory_space<vmem>>, vector<8x8x64xf32>
    %33 = vector.shape_cast %32 : vector<8x8x64xf32> to vector<64x64xf32>
    %c2_41 = arith.constant 2 : index
    %c2_42 = arith.constant 2 : index
    %c0_43 = arith.constant 0 : index
    %34 = vector.load %arg16[%c2_41, %c2_42, %c0_43] : memref<10x10x64xf32, #tpu.memory_space<vmem>>, vector<8x8x64xf32>
    %35 = vector.shape_cast %34 : vector<8x8x64xf32> to vector<64x64xf32>
    %36 = tpu.concatenate %19, %21, %23, %25, %27, %29, %31, %33, %35 in 1 : vector<64x64xf32>, vector<64x64xf32>, vector<64x64xf32>, vector<64x64xf32>, vector<64x64xf32>, vector<64x64xf32>, vector<64x64xf32>, vector<64x64xf32>, vector<64x64xf32> -> vector<64x576xf32>
    %37 = arith.truncf %36 : vector<64x576xf32> to vector<64x576xbf16>
    %c0_44 = arith.constant 0 : index
    %c0_45 = arith.constant 0 : index
    %38 = vector.load %arg4[%c0_44, %c0_45] : memref<576x64xbf16, #tpu.memory_space<vmem>>, vector<576x64xbf16>
    %cst_46 = arith.constant dense<0.000000e+00> : vector<64x64xf32>
    %39 = tpu.matmul %37, %38, %cst_46 {dimension_numbers = #tpu.dot_dimension_numbers<[1], [0], [0], [1], [0, 0, 1, 1], [], []>} : vector<64x576xbf16>, vector<576x64xbf16>, vector<64x64xf32> -> vector<64x64xf32>
    %c0_47 = arith.constant 0 : index
    %c0_48 = arith.constant 0 : index
    %40 = vector.load %arg5[%c0_47, %c0_48] : memref<1x64xf32, #tpu.memory_space<vmem>>, vector<1x64xf32>
    %41 = vector.broadcast %40 : vector<1x64xf32> to vector<64x64xf32>
    %42 = arith.addf %39, %41 : vector<64x64xf32>
    %cst_49 = arith.constant 0.000000e+00 : f32
    %43 = vector.broadcast %cst_49 : f32 to vector<64x64xf32>
    %44 = arith.cmpf oge, %42, %43 : vector<64x64xf32>
    %cst_50 = arith.constant 1.000000e-01 : f32
    %45 = vector.broadcast %cst_50 : f32 to vector<64x64xf32>
    %46 = arith.mulf %45, %42 : vector<64x64xf32>
    %47 = arith.select %44, %42, %46 : vector<64x64xi1>, vector<64x64xf32>
    %48 = vector.shape_cast %47 : vector<64x64xf32> to vector<8x8x64xf32>
    %c1_51 = arith.constant 1 : index
    %c1_52 = arith.constant 1 : index
    %c0_53 = arith.constant 0 : index
    %49 = vector.load %arg16[%c1_51, %c1_52, %c0_53] : memref<10x10x64xf32, #tpu.memory_space<vmem>>, vector<8x8x64xf32>
    tpu.vector_store %arg16[%c1_51, %c1_52, %c0_53], %48 {strides = array<i32>} : memref<10x10x64xf32, #tpu.memory_space<vmem>>, vector<8x8x64xf32>,
    %c0_54 = arith.constant 0 : index
    %c0_55 = arith.constant 0 : index
    %c0_56 = arith.constant 0 : index
    %50 = vector.load %arg16[%c0_54, %c0_55, %c0_56] : memref<10x10x64xf32, #tpu.memory_space<vmem>>, vector<8x8x64xf32>
    %51 = vector.shape_cast %50 : vector<8x8x64xf32> to vector<64x64xf32>
    %c0_57 = arith.constant 0 : index
    %c1_58 = arith.constant 1 : index
    %c0_59 = arith.constant 0 : index
    %52 = vector.load %arg16[%c0_57, %c1_58, %c0_59] : memref<10x10x64xf32, #tpu.memory_space<vmem>>, vector<8x8x64xf32>
    %53 = vector.shape_cast %52 : vector<8x8x64xf32> to vector<64x64xf32>
    %c0_60 = arith.constant 0 : index
    %c2_61 = arith.constant 2 : index
    %c0_62 = arith.constant 0 : index
    %54 = vector.load %arg16[%c0_60, %c2_61, %c0_62] : memref<10x10x64xf32, #tpu.memory_space<vmem>>, vector<8x8x64xf32>
    %55 = vector.shape_cast %54 : vector<8x8x64xf32> to vector<64x64xf32>
    %c1_63 = arith.constant 1 : index
    %c0_64 = arith.constant 0 : index
    %c0_65 = arith.constant 0 : index
    %56 = vector.load %arg16[%c1_63, %c0_64, %c0_65] : memref<10x10x64xf32, #tpu.memory_space<vmem>>, vector<8x8x64xf32>
    %57 = vector.shape_cast %56 : vector<8x8x64xf32> to vector<64x64xf32>
    %c1_66 = arith.constant 1 : index
    %c1_67 = arith.constant 1 : index
    %c0_68 = arith.constant 0 : index
    %58 = vector.load %arg16[%c1_66, %c1_67, %c0_68] : memref<10x10x64xf32, #tpu.memory_space<vmem>>, vector<8x8x64xf32>
    %59 = vector.shape_cast %58 : vector<8x8x64xf32> to vector<64x64xf32>
    %c1_69 = arith.constant 1 : index
    %c2_70 = arith.constant 2 : index
    %c0_71 = arith.constant 0 : index
    %60 = vector.load %arg16[%c1_69, %c2_70, %c0_71] : memref<10x10x64xf32, #tpu.memory_space<vmem>>, vector<8x8x64xf32>
    %61 = vector.shape_cast %60 : vector<8x8x64xf32> to vector<64x64xf32>
    %c2_72 = arith.constant 2 : index
    %c0_73 = arith.constant 0 : index
    %c0_74 = arith.constant 0 : index
    %62 = vector.load %arg16[%c2_72, %c0_73, %c0_74] : memref<10x10x64xf32, #tpu.memory_space<vmem>>, vector<8x8x64xf32>
    %63 = vector.shape_cast %62 : vector<8x8x64xf32> to vector<64x64xf32>
    %c2_75 = arith.constant 2 : index
    %c1_76 = arith.constant 1 : index
    %c0_77 = arith.constant 0 : index
    %64 = vector.load %arg16[%c2_75, %c1_76, %c0_77] : memref<10x10x64xf32, #tpu.memory_space<vmem>>, vector<8x8x64xf32>
    %65 = vector.shape_cast %64 : vector<8x8x64xf32> to vector<64x64xf32>
    %c2_78 = arith.constant 2 : index
    %c2_79 = arith.constant 2 : index
    %c0_80 = arith.constant 0 : index
    %66 = vector.load %arg16[%c2_78, %c2_79, %c0_80] : memref<10x10x64xf32, #tpu.memory_space<vmem>>, vector<8x8x64xf32>
    %67 = vector.shape_cast %66 : vector<8x8x64xf32> to vector<64x64xf32>
    %68 = tpu.concatenate %51, %53, %55, %57, %59, %61, %63, %65, %67 in 1 : vector<64x64xf32>, vector<64x64xf32>, vector<64x64xf32>, vector<64x64xf32>, vector<64x64xf32>, vector<64x64xf32>, vector<64x64xf32>, vector<64x64xf32>, vector<64x64xf32> -> vector<64x576xf32>
    %69 = arith.truncf %68 : vector<64x576xf32> to vector<64x576xbf16>
    %c0_81 = arith.constant 0 : index
    %c0_82 = arith.constant 0 : index
    %70 = vector.load %arg6[%c0_81, %c0_82] : memref<576x64xbf16, #tpu.memory_space<vmem>>, vector<576x64xbf16>
    %cst_83 = arith.constant dense<0.000000e+00> : vector<64x64xf32>
    %71 = tpu.matmul %69, %70, %cst_83 {dimension_numbers = #tpu.dot_dimension_numbers<[1], [0], [0], [1], [0, 0, 1, 1], [], []>} : vector<64x576xbf16>, vector<576x64xbf16>, vector<64x64xf32> -> vector<64x64xf32>
    %c0_84 = arith.constant 0 : index
    %c0_85 = arith.constant 0 : index
    %72 = vector.load %arg7[%c0_84, %c0_85] : memref<1x64xf32, #tpu.memory_space<vmem>>, vector<1x64xf32>
    %73 = vector.broadcast %72 : vector<1x64xf32> to vector<64x64xf32>
    %74 = arith.addf %71, %73 : vector<64x64xf32>
    %cst_86 = arith.constant 0.000000e+00 : f32
    %75 = vector.broadcast %cst_86 : f32 to vector<64x64xf32>
    %76 = arith.cmpf oge, %74, %75 : vector<64x64xf32>
    %cst_87 = arith.constant 1.000000e-01 : f32
    %77 = vector.broadcast %cst_87 : f32 to vector<64x64xf32>
    %78 = arith.mulf %77, %74 : vector<64x64xf32>
    %79 = arith.select %76, %74, %78 : vector<64x64xi1>, vector<64x64xf32>
    %80 = vector.shape_cast %79 : vector<64x64xf32> to vector<8x8x64xf32>
    %c1_88 = arith.constant 1 : index
    %c1_89 = arith.constant 1 : index
    %c0_90 = arith.constant 0 : index
    %81 = vector.load %arg16[%c1_88, %c1_89, %c0_90] : memref<10x10x64xf32, #tpu.memory_space<vmem>>, vector<8x8x64xf32>
    tpu.vector_store %arg16[%c1_88, %c1_89, %c0_90], %80 {strides = array<i32>} : memref<10x10x64xf32, #tpu.memory_space<vmem>>, vector<8x8x64xf32>,
    %c0_91 = arith.constant 0 : index
    %c0_92 = arith.constant 0 : index
    %c0_93 = arith.constant 0 : index
    %82 = vector.load %arg16[%c0_91, %c0_92, %c0_93] : memref<10x10x64xf32, #tpu.memory_space<vmem>>, vector<8x8x64xf32>
    %83 = vector.shape_cast %82 : vector<8x8x64xf32> to vector<64x64xf32>
    %c0_94 = arith.constant 0 : index
    %c1_95 = arith.constant 1 : index
    %c0_96 = arith.constant 0 : index
    %84 = vector.load %arg16[%c0_94, %c1_95, %c0_96] : memref<10x10x64xf32, #tpu.memory_space<vmem>>, vector<8x8x64xf32>
    %85 = vector.shape_cast %84 : vector<8x8x64xf32> to vector<64x64xf32>
    %c0_97 = arith.constant 0 : index
    %c2_98 = arith.constant 2 : index
    %c0_99 = arith.constant 0 : index
    %86 = vector.load %arg16[%c0_97, %c2_98, %c0_99] : memref<10x10x64xf32, #tpu.memory_space<vmem>>, vector<8x8x64xf32>
    %87 = vector.shape_cast %86 : vector<8x8x64xf32> to vector<64x64xf32>
    %c1_100 = arith.constant 1 : index
    %c0_101 = arith.constant 0 : index
    %c0_102 = arith.constant 0 : index
    %88 = vector.load %arg16[%c1_100, %c0_101, %c0_102] : memref<10x10x64xf32, #tpu.memory_space<vmem>>, vector<8x8x64xf32>
    %89 = vector.shape_cast %88 : vector<8x8x64xf32> to vector<64x64xf32>
    %c1_103 = arith.constant 1 : index
    %c1_104 = arith.constant 1 : index
    %c0_105 = arith.constant 0 : index
    %90 = vector.load %arg16[%c1_103, %c1_104, %c0_105] : memref<10x10x64xf32, #tpu.memory_space<vmem>>, vector<8x8x64xf32>
    %91 = vector.shape_cast %90 : vector<8x8x64xf32> to vector<64x64xf32>
    %c1_106 = arith.constant 1 : index
    %c2_107 = arith.constant 2 : index
    %c0_108 = arith.constant 0 : index
    %92 = vector.load %arg16[%c1_106, %c2_107, %c0_108] : memref<10x10x64xf32, #tpu.memory_space<vmem>>, vector<8x8x64xf32>
    %93 = vector.shape_cast %92 : vector<8x8x64xf32> to vector<64x64xf32>
    %c2_109 = arith.constant 2 : index
    %c0_110 = arith.constant 0 : index
    %c0_111 = arith.constant 0 : index
    %94 = vector.load %arg16[%c2_109, %c0_110, %c0_111] : memref<10x10x64xf32, #tpu.memory_space<vmem>>, vector<8x8x64xf32>
    %95 = vector.shape_cast %94 : vector<8x8x64xf32> to vector<64x64xf32>
    %c2_112 = arith.constant 2 : index
    %c1_113 = arith.constant 1 : index
    %c0_114 = arith.constant 0 : index
    %96 = vector.load %arg16[%c2_112, %c1_113, %c0_114] : memref<10x10x64xf32, #tpu.memory_space<vmem>>, vector<8x8x64xf32>
    %97 = vector.shape_cast %96 : vector<8x8x64xf32> to vector<64x64xf32>
    %c2_115 = arith.constant 2 : index
    %c2_116 = arith.constant 2 : index
    %c0_117 = arith.constant 0 : index
    %98 = vector.load %arg16[%c2_115, %c2_116, %c0_117] : memref<10x10x64xf32, #tpu.memory_space<vmem>>, vector<8x8x64xf32>
    %99 = vector.shape_cast %98 : vector<8x8x64xf32> to vector<64x64xf32>
    %100 = tpu.concatenate %83, %85, %87, %89, %91, %93, %95, %97, %99 in 1 : vector<64x64xf32>, vector<64x64xf32>, vector<64x64xf32>, vector<64x64xf32>, vector<64x64xf32>, vector<64x64xf32>, vector<64x64xf32>, vector<64x64xf32>, vector<64x64xf32> -> vector<64x576xf32>
    %101 = arith.truncf %100 : vector<64x576xf32> to vector<64x576xbf16>
    %c0_118 = arith.constant 0 : index
    %c0_119 = arith.constant 0 : index
    %102 = vector.load %arg8[%c0_118, %c0_119] : memref<576x64xbf16, #tpu.memory_space<vmem>>, vector<576x64xbf16>
    %cst_120 = arith.constant dense<0.000000e+00> : vector<64x64xf32>
    %103 = tpu.matmul %101, %102, %cst_120 {dimension_numbers = #tpu.dot_dimension_numbers<[1], [0], [0], [1], [0, 0, 1, 1], [], []>} : vector<64x576xbf16>, vector<576x64xbf16>, vector<64x64xf32> -> vector<64x64xf32>
    %c0_121 = arith.constant 0 : index
    %c0_122 = arith.constant 0 : index
    %104 = vector.load %arg9[%c0_121, %c0_122] : memref<1x64xf32, #tpu.memory_space<vmem>>, vector<1x64xf32>
    %105 = vector.broadcast %104 : vector<1x64xf32> to vector<64x64xf32>
    %106 = arith.addf %103, %105 : vector<64x64xf32>
    %cst_123 = arith.constant 0.000000e+00 : f32
    %107 = vector.broadcast %cst_123 : f32 to vector<64x64xf32>
    %108 = arith.cmpf oge, %106, %107 : vector<64x64xf32>
    %cst_124 = arith.constant 1.000000e-01 : f32
    %109 = vector.broadcast %cst_124 : f32 to vector<64x64xf32>
    %110 = arith.mulf %109, %106 : vector<64x64xf32>
    %111 = arith.select %108, %106, %110 : vector<64x64xi1>, vector<64x64xf32>
    %112 = vector.shape_cast %111 : vector<64x64xf32> to vector<8x8x64xf32>
    %c1_125 = arith.constant 1 : index
    %c1_126 = arith.constant 1 : index
    %c0_127 = arith.constant 0 : index
    %113 = vector.load %arg16[%c1_125, %c1_126, %c0_127] : memref<10x10x64xf32, #tpu.memory_space<vmem>>, vector<8x8x64xf32>
    tpu.vector_store %arg16[%c1_125, %c1_126, %c0_127], %112 {strides = array<i32>} : memref<10x10x64xf32, #tpu.memory_space<vmem>>, vector<8x8x64xf32>,
    %c0_128 = arith.constant 0 : index
    %c0_129 = arith.constant 0 : index
    %c0_130 = arith.constant 0 : index
    %114 = vector.load %arg16[%c0_128, %c0_129, %c0_130] : memref<10x10x64xf32, #tpu.memory_space<vmem>>, vector<8x8x64xf32>
    %115 = vector.shape_cast %114 : vector<8x8x64xf32> to vector<64x64xf32>
    %c0_131 = arith.constant 0 : index
    %c1_132 = arith.constant 1 : index
    %c0_133 = arith.constant 0 : index
    %116 = vector.load %arg16[%c0_131, %c1_132, %c0_133] : memref<10x10x64xf32, #tpu.memory_space<vmem>>, vector<8x8x64xf32>
    %117 = vector.shape_cast %116 : vector<8x8x64xf32> to vector<64x64xf32>
    %c0_134 = arith.constant 0 : index
    %c2_135 = arith.constant 2 : index
    %c0_136 = arith.constant 0 : index
    %118 = vector.load %arg16[%c0_134, %c2_135, %c0_136] : memref<10x10x64xf32, #tpu.memory_space<vmem>>, vector<8x8x64xf32>
    %119 = vector.shape_cast %118 : vector<8x8x64xf32> to vector<64x64xf32>
    %c1_137 = arith.constant 1 : index
    %c0_138 = arith.constant 0 : index
    %c0_139 = arith.constant 0 : index
    %120 = vector.load %arg16[%c1_137, %c0_138, %c0_139] : memref<10x10x64xf32, #tpu.memory_space<vmem>>, vector<8x8x64xf32>
    %121 = vector.shape_cast %120 : vector<8x8x64xf32> to vector<64x64xf32>
    %c1_140 = arith.constant 1 : index
    %c1_141 = arith.constant 1 : index
    %c0_142 = arith.constant 0 : index
    %122 = vector.load %arg16[%c1_140, %c1_141, %c0_142] : memref<10x10x64xf32, #tpu.memory_space<vmem>>, vector<8x8x64xf32>
    %123 = vector.shape_cast %122 : vector<8x8x64xf32> to vector<64x64xf32>
    %c1_143 = arith.constant 1 : index
    %c2_144 = arith.constant 2 : index
    %c0_145 = arith.constant 0 : index
    %124 = vector.load %arg16[%c1_143, %c2_144, %c0_145] : memref<10x10x64xf32, #tpu.memory_space<vmem>>, vector<8x8x64xf32>
    %125 = vector.shape_cast %124 : vector<8x8x64xf32> to vector<64x64xf32>
    %c2_146 = arith.constant 2 : index
    %c0_147 = arith.constant 0 : index
    %c0_148 = arith.constant 0 : index
    %126 = vector.load %arg16[%c2_146, %c0_147, %c0_148] : memref<10x10x64xf32, #tpu.memory_space<vmem>>, vector<8x8x64xf32>
    %127 = vector.shape_cast %126 : vector<8x8x64xf32> to vector<64x64xf32>
    %c2_149 = arith.constant 2 : index
    %c1_150 = arith.constant 1 : index
    %c0_151 = arith.constant 0 : index
    %128 = vector.load %arg16[%c2_149, %c1_150, %c0_151] : memref<10x10x64xf32, #tpu.memory_space<vmem>>, vector<8x8x64xf32>
    %129 = vector.shape_cast %128 : vector<8x8x64xf32> to vector<64x64xf32>
    %c2_152 = arith.constant 2 : index
    %c2_153 = arith.constant 2 : index
    %c0_154 = arith.constant 0 : index
    %130 = vector.load %arg16[%c2_152, %c2_153, %c0_154] : memref<10x10x64xf32, #tpu.memory_space<vmem>>, vector<8x8x64xf32>
    %131 = vector.shape_cast %130 : vector<8x8x64xf32> to vector<64x64xf32>
    %132 = tpu.concatenate %115, %117, %119, %121, %123, %125, %127, %129, %131 in 1 : vector<64x64xf32>, vector<64x64xf32>, vector<64x64xf32>, vector<64x64xf32>, vector<64x64xf32>, vector<64x64xf32>, vector<64x64xf32>, vector<64x64xf32>, vector<64x64xf32> -> vector<64x576xf32>
    %133 = arith.truncf %132 : vector<64x576xf32> to vector<64x576xbf16>
    %c0_155 = arith.constant 0 : index
    %c0_156 = arith.constant 0 : index
    %134 = vector.load %arg10[%c0_155, %c0_156] : memref<576x64xbf16, #tpu.memory_space<vmem>>, vector<576x64xbf16>
    %cst_157 = arith.constant dense<0.000000e+00> : vector<64x64xf32>
    %135 = tpu.matmul %133, %134, %cst_157 {dimension_numbers = #tpu.dot_dimension_numbers<[1], [0], [0], [1], [0, 0, 1, 1], [], []>} : vector<64x576xbf16>, vector<576x64xbf16>, vector<64x64xf32> -> vector<64x64xf32>
    %c0_158 = arith.constant 0 : index
    %c0_159 = arith.constant 0 : index
    %136 = vector.load %arg11[%c0_158, %c0_159] : memref<1x64xf32, #tpu.memory_space<vmem>>, vector<1x64xf32>
    %137 = vector.broadcast %136 : vector<1x64xf32> to vector<64x64xf32>
    %138 = arith.addf %135, %137 : vector<64x64xf32>
    %cst_160 = arith.constant 0.000000e+00 : f32
    %139 = vector.broadcast %cst_160 : f32 to vector<64x64xf32>
    %140 = arith.cmpf oge, %138, %139 : vector<64x64xf32>
    %cst_161 = arith.constant 1.000000e-01 : f32
    %141 = vector.broadcast %cst_161 : f32 to vector<64x64xf32>
    %142 = arith.mulf %141, %138 : vector<64x64xf32>
    %143 = arith.select %140, %138, %142 : vector<64x64xi1>, vector<64x64xf32>
    %c0_162 = arith.constant 0 : index
    %c0_163 = arith.constant 0 : index
    %144 = vector.load %arg12[%c0_162, %c0_163] : memref<256x64xbf16, #tpu.memory_space<vmem>>, vector<256x64xbf16>
    %145 = arith.truncf %143 : vector<64x64xf32> to vector<64x64xbf16>
    %cst_164 = arith.constant dense<0.000000e+00> : vector<256x64xf32>
    %146 = tpu.matmul %144, %145, %cst_164 {dimension_numbers = #tpu.dot_dimension_numbers<[1], [0], [0], [1], [0, 0, 1, 1], [], []>} : vector<256x64xbf16>, vector<64x64xbf16>, vector<256x64xf32> -> vector<256x64xf32>
    %147 = vector.shape_cast %146 : vector<256x64xf32> to vector<16x16x64xf32>
    %c1_165 = arith.constant 1 : index
    %c1_166 = arith.constant 1 : index
    %c0_167 = arith.constant 0 : index
    %148 = vector.load %arg17[%c1_165, %c1_166, %c0_167] : memref<18x18x64xf32, #tpu.memory_space<vmem>>, vector<16x16x64xf32>
    tpu.vector_store %arg17[%c1_165, %c1_166, %c0_167], %147 {strides = array<i32>} : memref<18x18x64xf32, #tpu.memory_space<vmem>>, vector<16x16x64xf32>,
    %c0_168 = arith.constant 0 : index
    %c0_169 = arith.constant 0 : index
    %c0_170 = arith.constant 0 : index
    %149 = vector.load %arg17[%c0_168, %c0_169, %c0_170] : memref<18x18x64xf32, #tpu.memory_space<vmem>>, vector<16x16x64xf32>
    %150 = vector.shape_cast %149 : vector<16x16x64xf32> to vector<256x64xf32>
    %c0_171 = arith.constant 0 : index
    %c1_172 = arith.constant 1 : index
    %c0_173 = arith.constant 0 : index
    %151 = vector.load %arg17[%c0_171, %c1_172, %c0_173] : memref<18x18x64xf32, #tpu.memory_space<vmem>>, vector<16x16x64xf32>
    %152 = vector.shape_cast %151 : vector<16x16x64xf32> to vector<256x64xf32>
    %c0_174 = arith.constant 0 : index
    %c2_175 = arith.constant 2 : index
    %c0_176 = arith.constant 0 : index
    %153 = vector.load %arg17[%c0_174, %c2_175, %c0_176] : memref<18x18x64xf32, #tpu.memory_space<vmem>>, vector<16x16x64xf32>
    %154 = vector.shape_cast %153 : vector<16x16x64xf32> to vector<256x64xf32>
    %c1_177 = arith.constant 1 : index
    %c0_178 = arith.constant 0 : index
    %c0_179 = arith.constant 0 : index
    %155 = vector.load %arg17[%c1_177, %c0_178, %c0_179] : memref<18x18x64xf32, #tpu.memory_space<vmem>>, vector<16x16x64xf32>
    %156 = vector.shape_cast %155 : vector<16x16x64xf32> to vector<256x64xf32>
    %c1_180 = arith.constant 1 : index
    %c1_181 = arith.constant 1 : index
    %c0_182 = arith.constant 0 : index
    %157 = vector.load %arg17[%c1_180, %c1_181, %c0_182] : memref<18x18x64xf32, #tpu.memory_space<vmem>>, vector<16x16x64xf32>
    %158 = vector.shape_cast %157 : vector<16x16x64xf32> to vector<256x64xf32>
    %c1_183 = arith.constant 1 : index
    %c2_184 = arith.constant 2 : index
    %c0_185 = arith.constant 0 : index
    %159 = vector.load %arg17[%c1_183, %c2_184, %c0_185] : memref<18x18x64xf32, #tpu.memory_space<vmem>>, vector<16x16x64xf32>
    %160 = vector.shape_cast %159 : vector<16x16x64xf32> to vector<256x64xf32>
    %c2_186 = arith.constant 2 : index
    %c0_187 = arith.constant 0 : index
    %c0_188 = arith.constant 0 : index
    %161 = vector.load %arg17[%c2_186, %c0_187, %c0_188] : memref<18x18x64xf32, #tpu.memory_space<vmem>>, vector<16x16x64xf32>
    %162 = vector.shape_cast %161 : vector<16x16x64xf32> to vector<256x64xf32>
    %c2_189 = arith.constant 2 : index
    %c1_190 = arith.constant 1 : index
    %c0_191 = arith.constant 0 : index
    %163 = vector.load %arg17[%c2_189, %c1_190, %c0_191] : memref<18x18x64xf32, #tpu.memory_space<vmem>>, vector<16x16x64xf32>
    %164 = vector.shape_cast %163 : vector<16x16x64xf32> to vector<256x64xf32>
    %c2_192 = arith.constant 2 : index
    %c2_193 = arith.constant 2 : index
    %c0_194 = arith.constant 0 : index
    %165 = vector.load %arg17[%c2_192, %c2_193, %c0_194] : memref<18x18x64xf32, #tpu.memory_space<vmem>>, vector<16x16x64xf32>
    %166 = vector.shape_cast %165 : vector<16x16x64xf32> to vector<256x64xf32>
    %167 = tpu.concatenate %150, %152, %154, %156, %158, %160, %162, %164, %166 in 1 : vector<256x64xf32>, vector<256x64xf32>, vector<256x64xf32>, vector<256x64xf32>, vector<256x64xf32>, vector<256x64xf32>, vector<256x64xf32>, vector<256x64xf32>, vector<256x64xf32> -> vector<256x576xf32>
    %168 = arith.truncf %167 : vector<256x576xf32> to vector<256x576xbf16>
    %c0_195 = arith.constant 0 : index
    %c0_196 = arith.constant 0 : index
    %169 = vector.load %arg13[%c0_195, %c0_196] : memref<576x128xbf16, #tpu.memory_space<vmem>>, vector<576x128xbf16>
    %cst_197 = arith.constant dense<0.000000e+00> : vector<256x128xf32>
    %170 = tpu.matmul %168, %169, %cst_197 {dimension_numbers = #tpu.dot_dimension_numbers<[1], [0], [0], [1], [0, 0, 1, 1], [], []>} : vector<256x576xbf16>, vector<576x128xbf16>, vector<256x128xf32> -> vector<256x128xf32>
    %c0_198 = arith.constant 0 : index
    %c0_199 = arith.constant 0 : index
    %171 = vector.load %arg14[%c0_198, %c0_199] : memref<1x128xf32, #tpu.memory_space<vmem>>, vector<1x128xf32>
    %172 = vector.broadcast %171 : vector<1x128xf32> to vector<256x128xf32>
    %173 = arith.addf %170, %172 : vector<256x128xf32>
    %cst_200 = arith.constant 0.000000e+00 : f32
    %174 = vector.broadcast %cst_200 : f32 to vector<256x128xf32>
    %175 = arith.maximumf %173, %174 : vector<256x128xf32>
    %c0_201 = arith.constant 0 : index
    %c0_202 = arith.constant 0 : index
    %c0_203 = arith.constant 0 : index
    %176 = vector.load %arg15[%c0_201, %c0_202, %c0_203] : memref<1x256x128xf32, #tpu.memory_space<vmem>>, vector<1x256x128xf32>
    %177 = vector.shape_cast %176 : vector<1x256x128xf32> to vector<256x128xf32>
    %178 = vector.shape_cast %175 : vector<256x128xf32> to vector<1x256x128xf32>
    tpu.vector_store %arg15[%c0_201, %c0_202, %c0_203], %178 {strides = array<i32>} : memref<1x256x128xf32, #tpu.memory_space<vmem>>, vector<1x256x128xf32>,
    return
  }
  func.func @transform_0(%arg0: i32) -> (i32, i32, i32) {
    %c0_i32 = arith.constant 0 : i32
    %c0_i32_0 = arith.constant 0 : i32
    %c0_i32_1 = arith.constant 0 : i32
    return %arg0, %c0_i32, %c0_i32_0 : i32, i32, i32
  }
  func.func @transform_1(%arg0: i32) -> (i32, i32) {
    %c0_i32 = arith.constant 0 : i32
    %c0_i32_0 = arith.constant 0 : i32
    %c0_i32_1 = arith.constant 0 : i32
    return %c0_i32, %c0_i32_0 : i32, i32
  }
  func.func @transform_2(%arg0: i32) -> (i32, i32) {
    %c0_i32 = arith.constant 0 : i32
    %c0_i32_0 = arith.constant 0 : i32
    %c0_i32_1 = arith.constant 0 : i32
    return %c0_i32, %c0_i32_0 : i32, i32
  }
  func.func @transform_3(%arg0: i32) -> (i32, i32) {
    %c0_i32 = arith.constant 0 : i32
    %c0_i32_0 = arith.constant 0 : i32
    %c0_i32_1 = arith.constant 0 : i32
    return %c0_i32, %c0_i32_0 : i32, i32
  }
  func.func @transform_4(%arg0: i32) -> (i32, i32) {
    %c0_i32 = arith.constant 0 : i32
    %c0_i32_0 = arith.constant 0 : i32
    %c0_i32_1 = arith.constant 0 : i32
    return %c0_i32, %c0_i32_0 : i32, i32
  }
  func.func @transform_5(%arg0: i32) -> (i32, i32) {
    %c0_i32 = arith.constant 0 : i32
    %c0_i32_0 = arith.constant 0 : i32
    %c0_i32_1 = arith.constant 0 : i32
    return %c0_i32, %c0_i32_0 : i32, i32
  }
  func.func @transform_6(%arg0: i32) -> (i32, i32) {
    %c0_i32 = arith.constant 0 : i32
    %c0_i32_0 = arith.constant 0 : i32
    %c0_i32_1 = arith.constant 0 : i32
    return %c0_i32, %c0_i32_0 : i32, i32
  }
  func.func @transform_7(%arg0: i32) -> (i32, i32) {
    %c0_i32 = arith.constant 0 : i32
    %c0_i32_0 = arith.constant 0 : i32
    %c0_i32_1 = arith.constant 0 : i32
    return %c0_i32, %c0_i32_0 : i32, i32
  }
  func.func @transform_8(%arg0: i32) -> (i32, i32) {
    %c0_i32 = arith.constant 0 : i32
    %c0_i32_0 = arith.constant 0 : i32
    %c0_i32_1 = arith.constant 0 : i32
    return %c0_i32, %c0_i32_0 : i32, i32
  }
  func.func @transform_9(%arg0: i32) -> (i32, i32) {
    %c0_i32 = arith.constant 0 : i32
    %c0_i32_0 = arith.constant 0 : i32
    %c0_i32_1 = arith.constant 0 : i32
    return %c0_i32, %c0_i32_0 : i32, i32
  }
  func.func @transform_10(%arg0: i32) -> (i32, i32) {
    %c0_i32 = arith.constant 0 : i32
    %c0_i32_0 = arith.constant 0 : i32
    %c0_i32_1 = arith.constant 0 : i32
    return %c0_i32, %c0_i32_0 : i32, i32
  }
  func.func @transform_11(%arg0: i32) -> (i32, i32) {
    %c0_i32 = arith.constant 0 : i32
    %c0_i32_0 = arith.constant 0 : i32
    %c0_i32_1 = arith.constant 0 : i32
    return %c0_i32, %c0_i32_0 : i32, i32
  }
  func.func @transform_12(%arg0: i32) -> (i32, i32) {
    %c0_i32 = arith.constant 0 : i32
    %c0_i32_0 = arith.constant 0 : i32
    %c0_i32_1 = arith.constant 0 : i32
    return %c0_i32, %c0_i32_0 : i32, i32
  }
  func.func @transform_13(%arg0: i32) -> (i32, i32) {
    %c0_i32 = arith.constant 0 : i32
    %c0_i32_0 = arith.constant 0 : i32
    %c0_i32_1 = arith.constant 0 : i32
    return %c0_i32, %c0_i32_0 : i32, i32
  }
  func.func @transform_14(%arg0: i32) -> (i32, i32, i32) {
    %c0_i32 = arith.constant 0 : i32
    %c0_i32_0 = arith.constant 0 : i32
    %c0_i32_1 = arith.constant 0 : i32
    return %arg0, %c0_i32, %c0_i32_0 : i32, i32, i32
  }
}

</mosaic_0001>

<llo_original>
// kernel: autoencoder_forward.1
$region0: #{autoencoder_forward.1}
  #allocation0 [shape = 'u32[]', space=smem, size = 0x4, offset = 0x4, fixed_abs, tag = 'smem constant byte address 0x4 - core index']
  #allocation1 [shape = 'u32[144,128]{1,0:T(1,128)}', space=vmem, size = 0x12000, scoped, tag = 'internal scratch']
  #allocation2 [shape = 'f32[10,10,64]{2,1,0:T(8,128)}', space=vmem, size = 0x14000, scoped, tag = 'scratch operand']
  #allocation3 [shape = 'f32[18,18,64]{2,1,0:T(8,128)}', space=vmem, size = 0x36000, scoped, tag = 'scratch operand']
  %s0 = inlined_call_operand.vmem [shape: bf16[2,64,32], index: 0, kind: input, shape index: {}]
  %s1 = inlined_call_operand.vmem [shape: bf16[32,64], index: 1, kind: input, shape index: {}]
  %s2 = inlined_call_operand.vmem [shape: f32[1,64], index: 2, kind: input, shape index: {}]
  %s3 = inlined_call_operand.vmem [shape: bf16[576,64], index: 3, kind: input, shape index: {}]
  %s4 = inlined_call_operand.vmem [shape: f32[1,64], index: 4, kind: input, shape index: {}]
  %s5 = inlined_call_operand.vmem [shape: bf16[576,64], index: 5, kind: input, shape index: {}]
  %s6 = inlined_call_operand.vmem [shape: f32[1,64], index: 6, kind: input, shape index: {}]
  %s7 = inlined_call_operand.vmem [shape: bf16[576,64], index: 7, kind: input, shape index: {}]
  %s8 = inlined_call_operand.vmem [shape: f32[1,64], index: 8, kind: input, shape index: {}]
  %s9 = inlined_call_operand.vmem [shape: bf16[576,64], index: 9, kind: input, shape index: {}]
  %s10 = inlined_call_operand.vmem [shape: f32[1,64], index: 10, kind: input, shape index: {}]
  %s11 = inlined_call_operand.vmem [shape: bf16[256,64], index: 11, kind: input, shape index: {}]
  %s12 = inlined_call_operand.vmem [shape: bf16[576,128], index: 12, kind: input, shape index: {}]
  %s13 = inlined_call_operand.vmem [shape: f32[1,128], index: 13, kind: input, shape index: {}]
  %s14 = inlined_call_operand.vmem [shape: f32[2,256,128], index: 14, kind: output, shape index: {}]
  %s15 = sld [smem:[#allocation0]]
  $region89: #{autoencoder_forward.1} parent=0
    _
  %s17 = ssub.s32 1, %s15
  %s18 = scalar_select 0, %s17, %s15
  loop: start=0, step=1, limit=4
  $region2: #{autoencoder_forward.1} parent=0 // loop_pre_header
    _
  $region3: #{autoencoder_forward.1} parent=0 // loop_header
    %s20 = sphi 0, %s24
    %p21 = scmp.ge.s32.totalorder %s20, 4
    %s30 = sphi 0, %s32
    %s33 = sphi 0, %s30
    %s34 = sphi 0, %s33
    %s50 = sphi 0, %s34
    %s54 = sphi 0, %s54
    %s56 = sphi 0, %s54
    %s57 = sphi 0, %s56
    %s71 = sphi 0, %s57
    %s75 = sphi 0, %s75
    %s77 = sphi 0, %s75
    %s78 = sphi 0, %s77
    %s92 = sphi 0, %s78
    %s96 = sphi 0, %s96
    %s98 = sphi 0, %s96
    %s99 = sphi 0, %s98
    %s113 = sphi 0, %s99
    %s117 = sphi 0, %s117
    %s119 = sphi 0, %s117
    %s120 = sphi 0, %s119
    %s134 = sphi 0, %s120
    %s138 = sphi 0, %s138
    %s140 = sphi 0, %s138
    %s141 = sphi 0, %s140
    %s155 = sphi 0, %s141
    %s159 = sphi 0, %s159
    %s161 = sphi 0, %s159
    %s162 = sphi 0, %s161
    %s176 = sphi 0, %s162
    %s180 = sphi 0, %s180
    %s182 = sphi 0, %s180
    %s183 = sphi 0, %s182
    %s197 = sphi 0, %s183
    %s201 = sphi 0, %s201
    %s203 = sphi 0, %s201
    %s204 = sphi 0, %s203
    %s218 = sphi 0, %s204
    %s222 = sphi 0, %s222
    %s224 = sphi 0, %s222
    %s225 = sphi 0, %s224
    %s239 = sphi 0, %s225
    %s243 = sphi 0, %s243
    %s245 = sphi 0, %s243
    %s246 = sphi 0, %s245
    %s260 = sphi 0, %s246
    %s264 = sphi 0, %s264
    %s266 = sphi 0, %s264
    %s267 = sphi 0, %s266
    %s281 = sphi 0, %s267
    %s285 = sphi 0, %s285
    %s287 = sphi 0, %s285
    %s288 = sphi 0, %s287
    %s302 = sphi 0, %s288
    %s306 = sphi 0, %s306
    %s308 = sphi 0, %s306
    %s309 = sphi 0, %s308
    %s323 = sphi 0, %s309
    %s329 = sphi 0, %s331
    %s332 = sphi 0, %s329
    %s333 = sphi 0, %s332
    %s349 = sphi 0, %s333
  $region4: #{autoencoder_forward.1} parent=0 // loop_header_branch
    %23 = sbr.rel (%p21) target = $region8
  $region5: #{autoencoder_forward.1} parent=0 // loop_body
    %s25 = ssub.s32 %s20, 1
    %s26 = ssub.s32 %s20, 2
    %s27 = sadd.s32 %s20, 1
    %s28 = ssub.s32 %s20, %s27
    %p29 = scmp.eq.s32.totalorder %s28, 0
    %s31 = sadd.s32 %s30, 1
    %s32 = scalar_select %p29, %s30, %s31
    %p35 = pneg %p29
    %p36 = scmp.eq.s32.totalorder %s20, 1
    %p37 = por %p35, %p36
    %p38 = scmp.ne.s32.totalorder %s30, %s33
    %p39 = scmp.eq.s32.totalorder %s20, 0
    %p40 = por %p38, %p39
    %p41 = scmp.ne.s32.totalorder %s30, %s33
    %p42 = scmp.eq.s32.totalorder %s25, 1
    %p43 = por %p41, %p42
    %p44 = scmp.ne.s32.totalorder %s33, %s34
    %p45 = scmp.eq.s32.totalorder %s25, 0
    %p46 = por %p44, %p45
    %p47 = scmp.ne.s32.totalorder %s33, %s34
    %p48 = scmp.eq.s32.totalorder %s26, 1
    %p49 = por %p47, %p48
    %p51 = scmp.ne.s32.totalorder %s34, %s50
    %p52 = scmp.eq.s32.totalorder %s26, 0
    %p53 = por %p51, %p52
    %s55 = sadd.s32 %s54, 1
    %p58 = scmp.eq.s32.totalorder %s20, 1
    %p59 = scmp.ne.s32.totalorder %s54, %s56
    %p60 = scmp.eq.s32.totalorder %s20, 0
    %p61 = por %p59, %p60
    %p62 = scmp.ne.s32.totalorder %s54, %s56
    %p63 = scmp.eq.s32.totalorder %s25, 1
    %p64 = por %p62, %p63
    %p65 = scmp.ne.s32.totalorder %s56, %s57
    %p66 = scmp.eq.s32.totalorder %s25, 0
    %p67 = por %p65, %p66
    %p68 = scmp.ne.s32.totalorder %s56, %s57
    %p69 = scmp.eq.s32.totalorder %s26, 1
    %p70 = por %p68, %p69
    %p72 = scmp.ne.s32.totalorder %s57, %s71
    %p73 = scmp.eq.s32.totalorder %s26, 0
    %p74 = por %p72, %p73
    %s76 = sadd.s32 %s75, 1
    %p79 = scmp.eq.s32.totalorder %s20, 1
    %p80 = scmp.ne.s32.totalorder %s75, %s77
    %p81 = scmp.eq.s32.totalorder %s20, 0
    %p82 = por %p80, %p81
    %p83 = scmp.ne.s32.totalorder %s75, %s77
    %p84 = scmp.eq.s32.totalorder %s25, 1
    %p85 = por %p83, %p84
    %p86 = scmp.ne.s32.totalorder %s77, %s78
    %p87 = scmp.eq.s32.totalorder %s25, 0
    %p88 = por %p86, %p87
    %p89 = scmp.ne.s32.totalorder %s77, %s78
    %p90 = scmp.eq.s32.totalorder %s26, 1
    %p91 = por %p89, %p90
    %p93 = scmp.ne.s32.totalorder %s78, %s92
    %p94 = scmp.eq.s32.totalorder %s26, 0
    %p95 = por %p93, %p94
    %s97 = sadd.s32 %s96, 1
    %p100 = scmp.eq.s32.totalorder %s20, 1
    %p101 = scmp.ne.s32.totalorder %s96, %s98
    %p102 = scmp.eq.s32.totalorder %s20, 0
    %p103 = por %p101, %p102
    %p104 = scmp.ne.s32.totalorder %s96, %s98
    %p105 = scmp.eq.s32.totalorder %s25, 1
    %p106 = por %p104, %p105
    %p107 = scmp.ne.s32.totalorder %s98, %s99
    %p108 = scmp.eq.s32.totalorder %s25, 0
    %p109 = por %p107, %p108
    %p110 = scmp.ne.s32.totalorder %s98, %s99
    %p111 = scmp.eq.s32.totalorder %s26, 1
    %p112 = por %p110, %p111
    %p114 = scmp.ne.s32.totalorder %s99, %s113
    %p115 = scmp.eq.s32.totalorder %s26, 0
    %p116 = por %p114, %p115
    %s118 = sadd.s32 %s117, 1
    %p121 = scmp.eq.s32.totalorder %s20, 1
    %p122 = scmp.ne.s32.totalorder %s117, %s119
    %p123 = scmp.eq.s32.totalorder %s20, 0
    %p124 = por %p122, %p123
    %p125 = scmp.ne.s32.totalorder %s117, %s119
    %p126 = scmp.eq.s32.totalorder %s25, 1
    %p127 = por %p125, %p126
    %p128 = scmp.ne.s32.totalorder %s119, %s120
    %p129 = scmp.eq.s32.totalorder %s25, 0
    %p130 = por %p128, %p129
    %p131 = scmp.ne.s32.totalorder %s119, %s120
    %p132 = scmp.eq.s32.totalorder %s26, 1
    %p133 = por %p131, %p132
    %p135 = scmp.ne.s32.totalorder %s120, %s134
    %p136 = scmp.eq.s32.totalorder %s26, 0
    %p137 = por %p135, %p136
    %s139 = sadd.s32 %s138, 1
    %p142 = scmp.eq.s32.totalorder %s20, 1
    %p143 = scmp.ne.s32.totalorder %s138, %s140
    %p144 = scmp.eq.s32.totalorder %s20, 0
    %p145 = por %p143, %p144
    %p146 = scmp.ne.s32.totalorder %s138, %s140
    %p147 = scmp.eq.s32.totalorder %s25, 1
    %p148 = por %p146, %p147
    %p149 = scmp.ne.s32.totalorder %s140, %s141
    %p150 = scmp.eq.s32.totalorder %s25, 0
    %p151 = por %p149, %p150
    %p152 = scmp.ne.s32.totalorder %s140, %s141
    %p153 = scmp.eq.s32.totalorder %s26, 1
    %p154 = por %p152, %p153
    %p156 = scmp.ne.s32.totalorder %s141, %s155
    %p157 = scmp.eq.s32.totalorder %s26, 0
    %p158 = por %p156, %p157
    %s160 = sadd.s32 %s159, 1
    %p163 = scmp.eq.s32.totalorder %s20, 1
    %p164 = scmp.ne.s32.totalorder %s159, %s161
    %p165 = scmp.eq.s32.totalorder %s20, 0
    %p166 = por %p164, %p165
    %p167 = scmp.ne.s32.totalorder %s159, %s161
    %p168 = scmp.eq.s32.totalorder %s25, 1
    %p169 = por %p167, %p168
    %p170 = scmp.ne.s32.totalorder %s161, %s162
    %p171 = scmp.eq.s32.totalorder %s25, 0
    %p172 = por %p170, %p171
    %p173 = scmp.ne.s32.totalorder %s161, %s162
    %p174 = scmp.eq.s32.totalorder %s26, 1
    %p175 = por %p173, %p174
    %p177 = scmp.ne.s32.totalorder %s162, %s176
    %p178 = scmp.eq.s32.totalorder %s26, 0
    %p179 = por %p177, %p178
    %s181 = sadd.s32 %s180, 1
    %p184 = scmp.eq.s32.totalorder %s20, 1
    %p185 = scmp.ne.s32.totalorder %s180, %s182
    %p186 = scmp.eq.s32.totalorder %s20, 0
    %p187 = por %p185, %p186
    %p188 = scmp.ne.s32.totalorder %s180, %s182
    %p189 = scmp.eq.s32.totalorder %s25, 1
    %p190 = por %p188, %p189
    %p191 = scmp.ne.s32.totalorder %s182, %s183
    %p192 = scmp.eq.s32.totalorder %s25, 0
    %p193 = por %p191, %p192
    %p194 = scmp.ne.s32.totalorder %s182, %s183
    %p195 = scmp.eq.s32.totalorder %s26, 1
    %p196 = por %p194, %p195
    %p198 = scmp.ne.s32.totalorder %s183, %s197
    %p199 = scmp.eq.s32.totalorder %s26, 0
    %p200 = por %p198, %p199
    %s202 = sadd.s32 %s201, 1
    %p205 = scmp.eq.s32.totalorder %s20, 1
    %p206 = scmp.ne.s32.totalorder %s201, %s203
    %p207 = scmp.eq.s32.totalorder %s20, 0
    %p208 = por %p206, %p207
    %p209 = scmp.ne.s32.totalorder %s201, %s203
    %p210 = scmp.eq.s32.totalorder %s25, 1
    %p211 = por %p209, %p210
    %p212 = scmp.ne.s32.totalorder %s203, %s204
    %p213 = scmp.eq.s32.totalorder %s25, 0
    %p214 = por %p212, %p213
    %p215 = scmp.ne.s32.totalorder %s203, %s204
    %p216 = scmp.eq.s32.totalorder %s26, 1
    %p217 = por %p215, %p216
    %p219 = scmp.ne.s32.totalorder %s204, %s218
    %p220 = scmp.eq.s32.totalorder %s26, 0
    %p221 = por %p219, %p220
    %s223 = sadd.s32 %s222, 1
    %p226 = scmp.eq.s32.totalorder %s20, 1
    %p227 = scmp.ne.s32.totalorder %s222, %s224
    %p228 = scmp.eq.s32.totalorder %s20, 0
    %p229 = por %p227, %p228
    %p230 = scmp.ne.s32.totalorder %s222, %s224
    %p231 = scmp.eq.s32.totalorder %s25, 1
    %p232 = por %p230, %p231
    %p233 = scmp.ne.s32.totalorder %s224, %s225
    %p234 = scmp.eq.s32.totalorder %s25, 0
    %p235 = por %p233, %p234
    %p236 = scmp.ne.s32.totalorder %s224, %s225
    %p237 = scmp.eq.s32.totalorder %s26, 1
    %p238 = por %p236, %p237
    %p240 = scmp.ne.s32.totalorder %s225, %s239
    %p241 = scmp.eq.s32.totalorder %s26, 0
    %p242 = por %p240, %p241
    %s244 = sadd.s32 %s243, 1
    %p247 = scmp.eq.s32.totalorder %s20, 1
    %p248 = scmp.ne.s32.totalorder %s243, %s245
    %p249 = scmp.eq.s32.totalorder %s20, 0
    %p250 = por %p248, %p249
    %p251 = scmp.ne.s32.totalorder %s243, %s245
    %p252 = scmp.eq.s32.totalorder %s25, 1
    %p253 = por %p251, %p252
    %p254 = scmp.ne.s32.totalorder %s245, %s246
    %p255 = scmp.eq.s32.totalorder %s25, 0
    %p256 = por %p254, %p255
    %p257 = scmp.ne.s32.totalorder %s245, %s246
    %p258 = scmp.eq.s32.totalorder %s26, 1
    %p259 = por %p257, %p258
    %p261 = scmp.ne.s32.totalorder %s246, %s260
    %p262 = scmp.eq.s32.totalorder %s26, 0
    %p263 = por %p261, %p262
    %s265 = sadd.s32 %s264, 1
    %p268 = scmp.eq.s32.totalorder %s20, 1
    %p269 = scmp.ne.s32.totalorder %s264, %s266
    %p270 = scmp.eq.s32.totalorder %s20, 0
    %p271 = por %p269, %p270
    %p272 = scmp.ne.s32.totalorder %s264, %s266
    %p273 = scmp.eq.s32.totalorder %s25, 1
    %p274 = por %p272, %p273
    %p275 = scmp.ne.s32.totalorder %s266, %s267
    %p276 = scmp.eq.s32.totalorder %s25, 0
    %p277 = por %p275, %p276
    %p278 = scmp.ne.s32.totalorder %s266, %s267
    %p279 = scmp.eq.s32.totalorder %s26, 1
    %p280 = por %p278, %p279
    %p282 = scmp.ne.s32.totalorder %s267, %s281
    %p283 = scmp.eq.s32.totalorder %s26, 0
    %p284 = por %p282, %p283
    %s286 = sadd.s32 %s285, 1
    %p289 = scmp.eq.s32.totalorder %s20, 1
    %p290 = scmp.ne.s32.totalorder %s285, %s287
    %p291 = scmp.eq.s32.totalorder %s20, 0
    %p292 = por %p290, %p291
    %p293 = scmp.ne.s32.totalorder %s285, %s287
    %p294 = scmp.eq.s32.totalorder %s25, 1
    %p295 = por %p293, %p294
    %p296 = scmp.ne.s32.totalorder %s287, %s288
    %p297 = scmp.eq.s32.totalorder %s25, 0
    %p298 = por %p296, %p297
    %p299 = scmp.ne.s32.totalorder %s287, %s288
    %p300 = scmp.eq.s32.totalorder %s26, 1
    %p301 = por %p299, %p300
    %p303 = scmp.ne.s32.totalorder %s288, %s302
    %p304 = scmp.eq.s32.totalorder %s26, 0
    %p305 = por %p303, %p304
    %s307 = sadd.s32 %s306, 1
    %p310 = scmp.eq.s32.totalorder %s20, 1
    %p311 = scmp.ne.s32.totalorder %s306, %s308
    %p312 = scmp.eq.s32.totalorder %s20, 0
    %p313 = por %p311, %p312
    %p314 = scmp.ne.s32.totalorder %s306, %s308
    %p315 = scmp.eq.s32.totalorder %s25, 1
    %p316 = por %p314, %p315
    %p317 = scmp.ne.s32.totalorder %s308, %s309
    %p318 = scmp.eq.s32.totalorder %s25, 0
    %p319 = por %p317, %p318
    %p320 = scmp.ne.s32.totalorder %s308, %s309
    %p321 = scmp.eq.s32.totalorder %s26, 1
    %p322 = por %p320, %p321
    %p324 = scmp.ne.s32.totalorder %s309, %s323
    %p325 = scmp.eq.s32.totalorder %s26, 0
    %p326 = por %p324, %p325
    %s327 = ssub.s32 %s20, %s27
    %p328 = scmp.eq.s32.totalorder %s327, 0
    %s330 = sadd.s32 %s329, 1
    %s331 = scalar_select %p328, %s329, %s330
    %p334 = pneg %p328
    %p335 = scmp.eq.s32.totalorder %s20, 1
    %p336 = por %p334, %p335
    %p337 = scmp.ne.s32.totalorder %s329, %s332
    %p338 = scmp.eq.s32.totalorder %s20, 0
    %p339 = por %p337, %p338
    %p340 = scmp.ne.s32.totalorder %s329, %s332
    %p341 = scmp.eq.s32.totalorder %s25, 1
    %p342 = por %p340, %p341
    %p343 = scmp.ne.s32.totalorder %s332, %s333
    %p344 = scmp.eq.s32.totalorder %s25, 0
    %p345 = por %p343, %p344
    %p346 = scmp.ne.s32.totalorder %s332, %s333
    %p347 = scmp.eq.s32.totalorder %s26, 1
    %p348 = por %p346, %p347
    %p350 = scmp.ne.s32.totalorder %s333, %s349
    %p351 = scmp.eq.s32.totalorder %s26, 0
    %p352 = por %p350, %p351
    %p353 = scmp.le.s32.totalorder 1, %s20
    %p354 = scmp.lt.s32.totalorder %s20, 3
    %p355 = pnand %p353, %p354
    %p356 = pneg %p355
    // Predicated region
    $region9: #{autoencoder_forward.1} parent=5 // pred_check
      _
    $region10: #{autoencoder_forward.1} parent=5 // pred_check_branch
      %358 = sbr.rel (%p355) target = $region12
    $region11: #{autoencoder_forward.1} parent=5 // pred_region
      %s359 = ssub.s32 %s20, 1
      // Predicated region
      $region13: #{autoencoder_forward.1} parent=11 // pred_check
        %p360 = pneg %p67
      $region14: #{autoencoder_forward.1} parent=11 // pred_check_branch
        %362 = sbr.rel (%p360) target = $region16
      $region15: #{autoencoder_forward.1} parent=11 // pred_region
        _
      $region16: #{autoencoder_forward.1} parent=11 // pred_fallthru
        _
      // Predicated region
      $region17: #{autoencoder_forward.1} parent=11 // pred_check
        %p363 = pneg %p88
      $region18: #{autoencoder_forward.1} parent=11 // pred_check_branch
        %365 = sbr.rel (%p363) target = $region20
      $region19: #{autoencoder_forward.1} parent=11 // pred_region
        _
      $region20: #{autoencoder_forward.1} parent=11 // pred_fallthru
        _
      // Predicated region
      $region21: #{autoencoder_forward.1} parent=11 // pred_check
        %p366 = pneg %p109
      $region22: #{autoencoder_forward.1} parent=11 // pred_check_branch
        %368 = sbr.rel (%p366) target = $region24
      $region23: #{autoencoder_forward.1} parent=11 // pred_region
        _
      $region24: #{autoencoder_forward.1} parent=11 // pred_fallthru
        _
      // Predicated region
      $region25: #{autoencoder_forward.1} parent=11 // pred_check
        %p369 = pneg %p130
      $region26: #{autoencoder_forward.1} parent=11 // pred_check_branch
        %371 = sbr.rel (%p369) target = $region28
      $region27: #{autoencoder_forward.1} parent=11 // pred_region
        _
      $region28: #{autoencoder_forward.1} parent=11 // pred_fallthru
        _
      // Predicated region
      $region29: #{autoencoder_forward.1} parent=11 // pred_check
        %p372 = pneg %p151
      $region30: #{autoencoder_forward.1} parent=11 // pred_check_branch
        %374 = sbr.rel (%p372) target = $region32
      $region31: #{autoencoder_forward.1} parent=11 // pred_region
        _
      $region32: #{autoencoder_forward.1} parent=11 // pred_fallthru
        _
      // Predicated region
      $region33: #{autoencoder_forward.1} parent=11 // pred_check
        %p375 = pneg %p172
      $region34: #{autoencoder_forward.1} parent=11 // pred_check_branch
        %377 = sbr.rel (%p375) target = $region36
      $region35: #{autoencoder_forward.1} parent=11 // pred_region
        _
      $region36: #{autoencoder_forward.1} parent=11 // pred_fallthru
        _
      // Predicated region
      $region37: #{autoencoder_forward.1} parent=11 // pred_check
        %p378 = pneg %p193
      $region38: #{autoencoder_forward.1} parent=11 // pred_check_branch
        %380 = sbr.rel (%p378) target = $region40
      $region39: #{autoencoder_forward.1} parent=11 // pred_region
        _
      $region40: #{autoencoder_forward.1} parent=11 // pred_fallthru
        _
      // Predicated region
      $region41: #{autoencoder_forward.1} parent=11 // pred_check
        %p381 = pneg %p214
      $region42: #{autoencoder_forward.1} parent=11 // pred_check_branch
        %383 = sbr.rel (%p381) target = $region44
      $region43: #{autoencoder_forward.1} parent=11 // pred_region
        _
      $region44: #{autoencoder_forward.1} parent=11 // pred_fallthru
        _
      // Predicated region
      $region45: #{autoencoder_forward.1} parent=11 // pred_check
        %p384 = pneg %p235
      $region46: #{autoencoder_forward.1} parent=11 // pred_check_branch
        %386 = sbr.rel (%p384) target = $region48
      $region47: #{autoencoder_forward.1} parent=11 // pred_region
        _
      $region48: #{autoencoder_forward.1} parent=11 // pred_fallthru
        _
      // Predicated region
      $region49: #{autoencoder_forward.1} parent=11 // pred_check
        %p387 = pneg %p256
      $region50: #{autoencoder_forward.1} parent=11 // pred_check_branch
        %389 = sbr.rel (%p387) target = $region52
      $region51: #{autoencoder_forward.1} parent=11 // pred_region
        _
      $region52: #{autoencoder_forward.1} parent=11 // pred_fallthru
        _
      // Predicated region
      $region53: #{autoencoder_forward.1} parent=11 // pred_check
        %p390 = pneg %p277
      $region54: #{autoencoder_forward.1} parent=11 // pred_check_branch
        %392 = sbr.rel (%p390) target = $region56
      $region55: #{autoencoder_forward.1} parent=11 // pred_region
        _
      $region56: #{autoencoder_forward.1} parent=11 // pred_fallthru
        _
      // Predicated region
      $region57: #{autoencoder_forward.1} parent=11 // pred_check
        %p393 = pneg %p298
      $region58: #{autoencoder_forward.1} parent=11 // pred_check_branch
        %395 = sbr.rel (%p393) target = $region60
      $region59: #{autoencoder_forward.1} parent=11 // pred_region
        _
      $region60: #{autoencoder_forward.1} parent=11 // pred_fallthru
        _
      // Predicated region
      $region61: #{autoencoder_forward.1} parent=11 // pred_check
        %p396 = pneg %p319
      $region62: #{autoencoder_forward.1} parent=11 // pred_check_branch
        %398 = sbr.rel (%p396) target = $region64
      $region63: #{autoencoder_forward.1} parent=11 // pred_region
        _
      $region64: #{autoencoder_forward.1} parent=11 // pred_fallthru
        _
    $region12: #{autoencoder_forward.1} parent=5 // pred_fallthru
      _
    %p399 = scmp.lt.s32.totalorder %s20, 2
    // Predicated region
    $region65: #{autoencoder_forward.1} parent=5 // pred_check
      %p400 = pneg %p399
    $region66: #{autoencoder_forward.1} parent=5 // pred_check_branch
      %402 = sbr.rel (%p400) target = $region68
    $region67: #{autoencoder_forward.1} parent=5 // pred_region
      // Predicated region
      $region69: #{autoencoder_forward.1} parent=67 // pred_check
        %p403 = pneg %p40
      $region70: #{autoencoder_forward.1} parent=67 // pred_check_branch
        %405 = sbr.rel (%p403) target = $region72
      $region71: #{autoencoder_forward.1} parent=67 // pred_region
        %p406 = scmp.lt.s32.totalorder %s20, 1
        %s407 = scalar_select %p406, %s20, 1
        %s408 = smul.addr %s407, 8
        %s409 = smul.addr %s408, 4
        %s410 = scalar_lea.vmem %s0, %s409
      $region72: #{autoencoder_forward.1} parent=67 // pred_fallthru
        _
    $region68: #{autoencoder_forward.1} parent=5 // pred_fallthru
      _
    %p411 = scmp.le.s32.totalorder 1, %s20
    %p412 = scmp.lt.s32.totalorder %s20, 3
    %p413 = pnand %p411, %p412
    %p414 = pneg %p413
    // Predicated region
    $region73: #{autoencoder_forward.1} parent=5 // pred_check
      _
    $region74: #{autoencoder_forward.1} parent=5 // pred_check_branch
      %416 = sbr.rel (%p413) target = $region76
    $region75: #{autoencoder_forward.1} parent=5 // pred_region
      %s417 = ssub.s32 %s20, 1
      %p418 = scmp.lt.s32.totalorder %s25, 1
      %s419 = scalar_select %p418, %s25, 1
      %s420 = smul.addr %s419, 8
      %s421 = smul.addr %s420, 4
      %s422 = scalar_lea.vmem %s0, %s421
      %p423 = pneg %p46
      %p424 = pneg %p43
      %p425 = pneg %p67
      %p426 = pneg %p64
      %p427 = pneg %p88
      %p428 = pneg %p85
      %p429 = pneg %p109
      %p430 = pneg %p106
      %p431 = pneg %p130
      %p432 = pneg %p127
      %p433 = pneg %p151
      %p434 = pneg %p148
      %p435 = pneg %p172
      %p436 = pneg %p169
      %p437 = pneg %p193
      %p438 = pneg %p190
      %p439 = pneg %p214
      %p440 = pneg %p211
      %p441 = pneg %p235
      %p442 = pneg %p232
      %p443 = pneg %p256
      %p444 = pneg %p253
      %p445 = pneg %p277
      %p446 = pneg %p274
      %p447 = pneg %p298
      %p448 = pneg %p295
      %p449 = pneg %p319
      %p450 = pneg %p316
      %p451 = pneg %p345
      %p452 = pneg %p342
      %p453 = scmp.lt.s32.totalorder %s25, 1
      %s454 = scalar_select %p453, %s25, 1
      %s455 = smul.addr %s454, 32
      %s456 = smul.addr %s455, 8
      %s457 = scalar_lea.vmem %s14, %s456
      %p458 = scmp.lt.s32.totalorder %s25, 1
      %s459 = scalar_select %p458, %s25, 1
      %s460 = smul.addr %s459, 8
      %s461 = smul.addr %s460, 4
      %s462 = scalar_lea.vmem %s0, %s461
      %p463 = scmp.lt.s32.totalorder %s25, 1
      %s464 = scalar_select %p463, %s25, 1
      %s465 = smul.addr %s464, 32
      %s466 = smul.addr %s465, 8
      %s467 = scalar_lea.vmem %s14, %s466
      %vm469 = vcmask 523264
      %470 = vst.msk [vmem:[#allocation2] sm:$0xff] %vm469, 0.0
      %vm471 = vcmask 517120
      %472 = vst.msk [vmem:[#allocation2 + $0x8] sm:$0x3] %vm471, 0.0
      %473 = vst.msk [vmem:[#allocation2 + $0x10] sm:$0xff] %vm469, 0.0
      %474 = vst.msk [vmem:[#allocation2 + $0x18] sm:$0x3] %vm471, 0.0
      %475 = vst.msk [vmem:[#allocation2 + $0x20] sm:$0xff] %vm469, 0.0
      %476 = vst.msk [vmem:[#allocation2 + $0x28] sm:$0x3] %vm471, 0.0
      %477 = vst.msk [vmem:[#allocation2 + $0x30] sm:$0xff] %vm469, 0.0
      %478 = vst.msk [vmem:[#allocation2 + $0x38] sm:$0x3] %vm471, 0.0
      %479 = vst.msk [vmem:[#allocation2 + $0x40] sm:$0xff] %vm469, 0.0
      %480 = vst.msk [vmem:[#allocation2 + $0x48] sm:$0x3] %vm471, 0.0
      %481 = vst.msk [vmem:[#allocation2 + $0x50] sm:$0xff] %vm469, 0.0
      %482 = vst.msk [vmem:[#allocation2 + $0x58] sm:$0x3] %vm471, 0.0
      %483 = vst.msk [vmem:[#allocation2 + $0x60] sm:$0xff] %vm469, 0.0
      %484 = vst.msk [vmem:[#allocation2 + $0x68] sm:$0x3] %vm471, 0.0
      %485 = vst.msk [vmem:[#allocation2 + $0x70] sm:$0xff] %vm469, 0.0
      %486 = vst.msk [vmem:[#allocation2 + $0x78] sm:$0x3] %vm471, 0.0
      %487 = vst.msk [vmem:[#allocation2 + $0x80] sm:$0xff] %vm469, 0.0
      %488 = vst.msk [vmem:[#allocation2 + $0x88] sm:$0x3] %vm471, 0.0
      %489 = vst.msk [vmem:[#allocation2 + $0x90] sm:$0xff] %vm469, 0.0
      %490 = vst.msk [vmem:[#allocation2 + $0x98] sm:$0x3] %vm471, 0.0
      %491 = vst.msk [vmem:[#allocation3] sm:$0xff] %vm469, 0.0
      %492 = vst.msk [vmem:[#allocation3 + $0x8] sm:$0xff] %vm469, 0.0
      %493 = vst.msk [vmem:[#allocation3 + $0x10] sm:$0x3] %vm471, 0.0
      %494 = vst.msk [vmem:[#allocation3 + $0x18] sm:$0xff] %vm469, 0.0
      %495 = vst.msk [vmem:[#allocation3 + $0x20] sm:$0xff] %vm469, 0.0
      %496 = vst.msk [vmem:[#allocation3 + $0x28] sm:$0x3] %vm471, 0.0
      %497 = vst.msk [vmem:[#allocation3 + $0x30] sm:$0xff] %vm469, 0.0
      %498 = vst.msk [vmem:[#allocation3 + $0x38] sm:$0xff] %vm469, 0.0
      %499 = vst.msk [vmem:[#allocation3 + $0x40] sm:$0x3] %vm471, 0.0
      %500 = vst.msk [vmem:[#allocation3 + $0x48] sm:$0xff] %vm469, 0.0
      %501 = vst.msk [vmem:[#allocation3 + $0x50] sm:$0xff] %vm469, 0.0
      %502 = vst.msk [vmem:[#allocation3 + $0x58] sm:$0x3] %vm471, 0.0
      %503 = vst.msk [vmem:[#allocation3 + $0x60] sm:$0xff] %vm469, 0.0
      %504 = vst.msk [vmem:[#allocation3 + $0x68] sm:$0xff] %vm469, 0.0
      %505 = vst.msk [vmem:[#allocation3 + $0x70] sm:$0x3] %vm471, 0.0
      %506 = vst.msk [vmem:[#allocation3 + $0x78] sm:$0xff] %vm469, 0.0
      %507 = vst.msk [vmem:[#allocation3 + $0x80] sm:$0xff] %vm469, 0.0
      %508 = vst.msk [vmem:[#allocation3 + $0x88] sm:$0x3] %vm471, 0.0
      %509 = vst.msk [vmem:[#allocation3 + $0x90] sm:$0xff] %vm469, 0.0
      %510 = vst.msk [vmem:[#allocation3 + $0x98] sm:$0xff] %vm469, 0.0
      %511 = vst.msk [vmem:[#allocation3 + $0xa0] sm:$0x3] %vm471, 0.0
      %512 = vst.msk [vmem:[#allocation3 + $0xa8] sm:$0xff] %vm469, 0.0
      %513 = vst.msk [vmem:[#allocation3 + $0xb0] sm:$0xff] %vm469, 0.0
      %514 = vst.msk [vmem:[#allocation3 + $0xb8] sm:$0x3] %vm471, 0.0
      %515 = vst.msk [vmem:[#allocation3 + $0xc0] sm:$0xff] %vm469, 0.0
      %516 = vst.msk [vmem:[#allocation3 + $0xc8] sm:$0xff] %vm469, 0.0
      %517 = vst.msk [vmem:[#allocation3 + $0xd0] sm:$0x3] %vm471, 0.0
      %518 = vst.msk [vmem:[#allocation3 + $0xd8] sm:$0xff] %vm469, 0.0
      %519 = vst.msk [vmem:[#allocation3 + $0xe0] sm:$0xff] %vm469, 0.0
      %520 = vst.msk [vmem:[#allocation3 + $0xe8] sm:$0x3] %vm471, 0.0
      %521 = vst.msk [vmem:[#allocation3 + $0xf0] sm:$0xff] %vm469, 0.0
      %522 = vst.msk [vmem:[#allocation3 + $0xf8] sm:$0xff] %vm469, 0.0
      %523 = vst.msk [vmem:[#allocation3 + $0x100] sm:$0x3] %vm471, 0.0
      %524 = vst.msk [vmem:[#allocation3 + $0x108] sm:$0xff] %vm469, 0.0
      %525 = vst.msk [vmem:[#allocation3 + $0x110] sm:$0xff] %vm469, 0.0
      %526 = vst.msk [vmem:[#allocation3 + $0x118] sm:$0x3] %vm471, 0.0
      %527 = vst.msk [vmem:[#allocation3 + $0x120] sm:$0xff] %vm469, 0.0
      %528 = vst.msk [vmem:[#allocation3 + $0x128] sm:$0xff] %vm469, 0.0
      %529 = vst.msk [vmem:[#allocation3 + $0x130] sm:$0x3] %vm471, 0.0
      %530 = vst.msk [vmem:[#allocation3 + $0x138] sm:$0xff] %vm469, 0.0
      %531 = vst.msk [vmem:[#allocation3 + $0x140] sm:$0xff] %vm469, 0.0
      %532 = vst.msk [vmem:[#allocation3 + $0x148] sm:$0x3] %vm471, 0.0
      %533 = vst.msk [vmem:[#allocation3 + $0x150] sm:$0xff] %vm469, 0.0
      %534 = vst.msk [vmem:[#allocation3 + $0x158] sm:$0xff] %vm469, 0.0
      %535 = vst.msk [vmem:[#allocation3 + $0x160] sm:$0x3] %vm471, 0.0
      %536 = vst.msk [vmem:[#allocation3 + $0x168] sm:$0xff] %vm469, 0.0
      %537 = vst.msk [vmem:[#allocation3 + $0x170] sm:$0xff] %vm469, 0.0
      %538 = vst.msk [vmem:[#allocation3 + $0x178] sm:$0x3] %vm471, 0.0
      %539 = vst.msk [vmem:[#allocation3 + $0x180] sm:$0xff] %vm469, 0.0
      %540 = vst.msk [vmem:[#allocation3 + $0x188] sm:$0xff] %vm469, 0.0
      %541 = vst.msk [vmem:[#allocation3 + $0x190] sm:$0x3] %vm471, 0.0
      %542 = vst.msk [vmem:[#allocation3 + $0x198] sm:$0xff] %vm469, 0.0
      %543 = vst.msk [vmem:[#allocation3 + $0x1a0] sm:$0xff] %vm469, 0.0
      %544 = vst.msk [vmem:[#allocation3 + $0x1a8] sm:$0x3] %vm471, 0.0
      %v545 = vld [vmem:[%s462] sm:$0xf]
      %v546 = vld [vmem:[%s462 + $0x4] sm:$0xf]
      %v547 = vld [vmem:[%s462 + $0x8] sm:$0xf]
      %v548 = vld [vmem:[%s462 + $0xc] sm:$0xf]
      %v549 = vld [vmem:[%s462 + $0x10] sm:$0xf]
      %v550 = vld [vmem:[%s462 + $0x14] sm:$0xf]
      %v551 = vld [vmem:[%s462 + $0x18] sm:$0xf]
      %v552 = vld [vmem:[%s462 + $0x1c] sm:$0xf]
      %v553 = vld [vmem:[%s1] sm:$0xf]
      %v554 = vld [vmem:[%s1 + $0x4] sm:$0xf]
      %v555 = vld [vmem:[%s1 + $0x8] sm:$0xf]
      %v556 = vld [vmem:[%s1 + $0xc] sm:$0xf]
      %v557 = vld [vmem:[%s2] sm:$0x1]
      %v559 = vlaneseq
      %v560 = vshrl.u32 %v559, 7
      %v561 = vsub.s32 0, %v560
      %v562 = vrot.slane %v557, %v561
      %v572 = vunpack.c.l.b16 %v545
      %v573 = vunpack.c.l.b16 %v546
      %v574 = vunpack.c.l.b16 %v547
      %v575 = vunpack.c.l.b16 %v548
      %v576 = vunpack.c.l.b16 %v549
      %v577 = vunpack.c.l.b16 %v550
      %v578 = vunpack.c.l.b16 %v551
      %v579 = vunpack.c.l.b16 %v552
      %v580 = vpack.c.b16 %v573, %v572
      %v581 = vpack.c.b16 %v575, %v574
      %v582 = vpack.c.b16 %v577, %v576
      %v583 = vpack.c.b16 %v579, %v578
      %v588 = vunpack.c.l.b16 %v553
      %v589 = vunpack.c.l.b16 %v554
      %v590 = vunpack.c.l.b16 %v555
      %v591 = vunpack.c.l.b16 %v556
      %v592 = vpack.c.b16 %v589, %v588
      %v593 = vpack.c.b16 %v591, %v590
      %vm596 = vcmask 261120
      %v598 = vsel %vm596, %v580, 0
      %v601 = vsel %vm596, %v581, 0
      %v604 = vsel %vm596, %v582, 0
      %v607 = vsel %vm596, %v583, 0
      %609 = vmatprep.subr.bf16.mxu0 0
      %610 = vmatpush1.bf16.msra.mxu0 0
      %611 = vmatprep.subr.bf16.mxu0 0
      %612 = vmatpush1.bf16.msra.mxu0 0
      %613 = vmatprep.subr.bf16.mxu0 0
      %614 = vmatpush1.bf16.msra.mxu0 0
      %615 = vmatprep.subr.bf16.mxu0 0
      %616 = vmatpush1.bf16.msra.mxu0 0
      %617 = vmatprep.subr.bf16.mxu0 0
      %618 = vmatpush1.bf16.msra.mxu0 0
      %619 = vmatprep.subr.bf16.mxu0 0
      %620 = vmatpush1.bf16.msra.mxu0 0
      %621 = vmatprep.subr.bf16.mxu0 0
      %622 = vmatpush1.bf16.msra.mxu0 %v593
      %623 = vmatprep.subr.bf16.mxu0 0
      %624 = vmatpush1.bf16.msra.mxu0 %v592
      %625 = vmatprep.subr.bf16.mxu0 0
      %626 = vmatpush2.bf16.msra.mxu0 0
      %627 = vmatprep.subr.bf16.mxu0 0
      %628 = vmatpush2.bf16.msra.mxu0 0
      %629 = vmatprep.subr.bf16.mxu0 0
      %630 = vmatpush2.bf16.msra.mxu0 0
      %631 = vmatprep.subr.bf16.mxu0 0
      %632 = vmatpush2.bf16.msra.mxu0 0
      %633 = vmatprep.subr.bf16.mxu0 0
      %634 = vmatpush2.bf16.msra.mxu0 0
      %635 = vmatprep.subr.bf16.mxu0 0
      %636 = vmatpush2.bf16.msra.mxu0 0
      %637 = vmatprep.subr.bf16.mxu0 0
      %638 = vmatpush2.bf16.msra.mxu0 0
      %639 = vmatprep.subr.bf16.mxu0 0
      %640 = vmatpush2.bf16.msra.mxu0 0
      %641 = vmatprep.mubr.bf16.mxu0 0
      %642 = vmatmul.mubr.bf16.gmra.mxu0 %v598
      %v643 = vpop.f32.mrf.mxu0
      %v644 = vadd.f32 %v562, %v643
      %v645 = vpop.f32.mrf.mxu0
      %v646 = vpop.f32.mrf.mxu0
      %v647 = vadd.f32 %v562, %v646
      %v648 = vpop.f32.mrf.mxu0
      %649 = vmatprep.mubr.bf16.mxu0 0
      %650 = vmatmul.mubr.bf16.gmra.mxu0 %v601
      %v651 = vpop.f32.mrf.mxu0
      %v652 = vadd.f32 %v562, %v651
      %v653 = vpop.f32.mrf.mxu0
      %v654 = vpop.f32.mrf.mxu0
      %v655 = vadd.f32 %v562, %v654
      %v656 = vpop.f32.mrf.mxu0
      %657 = vmatprep.mubr.bf16.mxu0 0
      %658 = vmatmul.mubr.bf16.gmra.mxu0 %v604
      %v659 = vpop.f32.mrf.mxu0
      %v660 = vadd.f32 %v562, %v659
      %v661 = vpop.f32.mrf.mxu0
      %v662 = vpop.f32.mrf.mxu0
      %v663 = vadd.f32 %v562, %v662
      %v664 = vpop.f32.mrf.mxu0
      %665 = vmatprep.mubr.bf16.mxu0 0
      %666 = vmatmul.mubr.bf16.gmra.mxu0 %v607
      %v667 = vpop.f32.mrf.mxu0
      %v668 = vadd.f32 %v562, %v667
      %v669 = vpop.f32.mrf.mxu0
      %v670 = vpop.f32.mrf.mxu0
      %v671 = vadd.f32 %v562, %v670
      %v672 = vpop.f32.mrf.mxu0
      %673 = vdwg.mxu0
      %vm674 = vcmp.ge.f32.partialorder %v644, 0.0
      %vm675 = vcmp.ge.f32.partialorder %v647, 0.0
      %vm676 = vcmp.ge.f32.partialorder %v652, 0.0
      %vm677 = vcmp.ge.f32.partialorder %v655, 0.0
      %vm678 = vcmp.ge.f32.partialorder %v660, 0.0
      %vm679 = vcmp.ge.f32.partialorder %v663, 0.0
      %vm680 = vcmp.ge.f32.partialorder %v668, 0.0
      %vm681 = vcmp.ge.f32.partialorder %v671, 0.0
      %v682 = vmul.f32 %v644, 0.1
      %v683 = vmul.f32 %v647, 0.1
      %v684 = vmul.f32 %v652, 0.1
      %v685 = vmul.f32 %v655, 0.1
      %v686 = vmul.f32 %v660, 0.1
      %v687 = vmul.f32 %v663, 0.1
      %v688 = vmul.f32 %v668, 0.1
      %v689 = vmul.f32 %v671, 0.1
      %v690 = vsel %vm674, %v644, %v682
      %v691 = vsel %vm675, %v647, %v683
      %v692 = vsel %vm676, %v652, %v684
      %v693 = vsel %vm677, %v655, %v685
      %v694 = vsel %vm678, %v660, %v686
      %v695 = vsel %vm679, %v663, %v687
      %v696 = vsel %vm680, %v668, %v688
      %v697 = vsel %vm681, %v671, %v689
      %s698 = scalar_lea.vmem [#allocation2], 16
      %699 = vst.msk [vmem:[%s698 + $0x1] sm:$0xff] %vm469, %v690
      %700 = vst.msk [vmem:[%s698 + $0x11] sm:$0xff] %vm469, %v691
      %701 = vst.msk [vmem:[%s698 + $0x21] sm:$0xff] %vm469, %v692
      %702 = vst.msk [vmem:[%s698 + $0x31] sm:$0xff] %vm469, %v693
      %703 = vst.msk [vmem:[%s698 + $0x41] sm:$0xff] %vm469, %v694
      %704 = vst.msk [vmem:[%s698 + $0x51] sm:$0xff] %vm469, %v695
      %705 = vst.msk [vmem:[%s698 + $0x61] sm:$0xff] %vm469, %v696
      %706 = vst.msk [vmem:[%s698 + $0x71] sm:$0xff] %vm469, %v697
      %v707 = vld [vmem:[#allocation2] sm:$0xff]
      %v708 = vld [vmem:[#allocation2 + $0x10] sm:$0xff]
      %v709 = vld [vmem:[#allocation2 + $0x20] sm:$0xff]
      %v710 = vld [vmem:[#allocation2 + $0x30] sm:$0xff]
      %v711 = vld [vmem:[#allocation2 + $0x40] sm:$0xff]
      %v712 = vld [vmem:[#allocation2 + $0x50] sm:$0xff]
      %v713 = vld [vmem:[#allocation2 + $0x60] sm:$0xff]
      %v714 = vld [vmem:[#allocation2 + $0x70] sm:$0xff]
      %v715 = vld [vmem:[#allocation2 + $0x1] sm:$0xff]
      %v716 = vld [vmem:[#allocation2 + $0x11] sm:$0xff]
      %v717 = vld [vmem:[#allocation2 + $0x21] sm:$0xff]
      %v718 = vld [vmem:[#allocation2 + $0x31] sm:$0xff]
      %v719 = vld [vmem:[#allocation2 + $0x41] sm:$0xff]
      %v720 = vld [vmem:[#allocation2 + $0x51] sm:$0xff]
      %v721 = vld [vmem:[#allocation2 + $0x61] sm:$0xff]
      %v722 = vld [vmem:[#allocation2 + $0x71] sm:$0xff]
      %v723 = vld [vmem:[#allocation2 + $0x2] sm:$0xff]
      %v724 = vld [vmem:[#allocation2 + $0x12] sm:$0xff]
      %v725 = vld [vmem:[#allocation2 + $0x22] sm:$0xff]
      %v726 = vld [vmem:[#allocation2 + $0x32] sm:$0xff]
      %v727 = vld [vmem:[#allocation2 + $0x42] sm:$0xff]
      %v728 = vld [vmem:[#allocation2 + $0x52] sm:$0xff]
      %v729 = vld [vmem:[#allocation2 + $0x62] sm:$0xff]
      %v730 = vld [vmem:[#allocation2 + $0x72] sm:$0xff]
      %v731 = vld [vmem:[%s698] sm:$0xff]
      %v732 = vld [vmem:[%s698 + $0x10] sm:$0xff]
      %v733 = vld [vmem:[%s698 + $0x20] sm:$0xff]
      %v734 = vld [vmem:[%s698 + $0x30] sm:$0xff]
      %v735 = vld [vmem:[%s698 + $0x40] sm:$0xff]
      %v736 = vld [vmem:[%s698 + $0x50] sm:$0xff]
      %v737 = vld [vmem:[%s698 + $0x60] sm:$0xff]
      %v738 = vld [vmem:[%s698 + $0x70] sm:$0xff]
      %v739 = vld [vmem:[%s698 + $0x1] sm:$0xff]
      %v740 = vld [vmem:[%s698 + $0x11] sm:$0xff]
      %v741 = vld [vmem:[%s698 + $0x21] sm:$0xff]
      %v742 = vld [vmem:[%s698 + $0x31] sm:$0xff]
      %v743 = vld [vmem:[%s698 + $0x41] sm:$0xff]
      %v744 = vld [vmem:[%s698 + $0x51] sm:$0xff]
      %v745 = vld [vmem:[%s698 + $0x61] sm:$0xff]
      %v746 = vld [vmem:[%s698 + $0x71] sm:$0xff]
      %v747 = vld [vmem:[%s698 + $0x2] sm:$0xff]
      %v748 = vld [vmem:[%s698 + $0x12] sm:$0xff]
      %v749 = vld [vmem:[%s698 + $0x22] sm:$0xff]
      %v750 = vld [vmem:[%s698 + $0x32] sm:$0xff]
      %v751 = vld [vmem:[%s698 + $0x42] sm:$0xff]
      %v752 = vld [vmem:[%s698 + $0x52] sm:$0xff]
      %v753 = vld [vmem:[%s698 + $0x62] sm:$0xff]
      %v754 = vld [vmem:[%s698 + $0x72] sm:$0xff]
      %s755 = scalar_lea.vmem [#allocation2], 32
      %v756 = vld [vmem:[%s755] sm:$0xff]
      %v757 = vld [vmem:[%s755 + $0x10] sm:$0xff]
      %v758 = vld [vmem:[%s755 + $0x20] sm:$0xff]
      %v759 = vld [vmem:[%s755 + $0x30] sm:$0xff]
      %v760 = vld [vmem:[%s755 + $0x40] sm:$0xff]
      %v761 = vld [vmem:[%s755 + $0x50] sm:$0xff]
      %v762 = vld [vmem:[%s755 + $0x60] sm:$0xff]
      %v763 = vld [vmem:[%s755 + $0x70] sm:$0xff]
      %v764 = vld [vmem:[%s755 + $0x1] sm:$0xff]
      %v765 = vld [vmem:[%s755 + $0x11] sm:$0xff]
      %v766 = vld [vmem:[%s755 + $0x21] sm:$0xff]
      %v767 = vld [vmem:[%s755 + $0x31] sm:$0xff]
      %v768 = vld [vmem:[%s755 + $0x41] sm:$0xff]
      %v769 = vld [vmem:[%s755 + $0x51] sm:$0xff]
      %v770 = vld [vmem:[%s755 + $0x61] sm:$0xff]
      %v771 = vld [vmem:[%s755 + $0x71] sm:$0xff]
      %v772 = vld [vmem:[%s755 + $0x2] sm:$0xff]
      %v773 = vld [vmem:[%s755 + $0x12] sm:$0xff]
      %v774 = vld [vmem:[%s755 + $0x22] sm:$0xff]
      %v775 = vld [vmem:[%s755 + $0x32] sm:$0xff]
      %v776 = vld [vmem:[%s755 + $0x42] sm:$0xff]
      %v777 = vld [vmem:[%s755 + $0x52] sm:$0xff]
      %v778 = vld [vmem:[%s755 + $0x62] sm:$0xff]
      %v779 = vld [vmem:[%s755 + $0x72] sm:$0xff]
      %788 = vrot.lane.b32.xlu0 %v715, 64
      %v789 = vpop.permute.xlu0 %788
      %790 = vrot.lane.b32.xlu0 %v716, 64
      %v791 = vpop.permute.xlu0 %790
      %792 = vrot.lane.b32.xlu0 %v717, 64
      %v793 = vpop.permute.xlu0 %792
      %794 = vrot.lane.b32.xlu0 %v718, 64
      %v795 = vpop.permute.xlu0 %794
      %796 = vrot.lane.b32.xlu0 %v719, 64
      %v797 = vpop.permute.xlu0 %796
      %798 = vrot.lane.b32.xlu0 %v720, 64
      %v799 = vpop.permute.xlu0 %798
      %800 = vrot.lane.b32.xlu0 %v721, 64
      %v801 = vpop.permute.xlu0 %800
      %802 = vrot.lane.b32.xlu0 %v722, 64
      %v803 = vpop.permute.xlu0 %802
      %820 = vrot.lane.b32.xlu0 %v731, 64
      %v821 = vpop.permute.xlu0 %820
      %822 = vrot.lane.b32.xlu0 %v732, 64
      %v823 = vpop.permute.xlu0 %822
      %824 = vrot.lane.b32.xlu0 %v733, 64
      %v825 = vpop.permute.xlu0 %824
      %826 = vrot.lane.b32.xlu0 %v734, 64
      %v827 = vpop.permute.xlu0 %826
      %828 = vrot.lane.b32.xlu0 %v735, 64
      %v829 = vpop.permute.xlu0 %828
      %830 = vrot.lane.b32.xlu0 %v736, 64
      %v831 = vpop.permute.xlu0 %830
      %832 = vrot.lane.b32.xlu0 %v737, 64
      %v833 = vpop.permute.xlu0 %832
      %834 = vrot.lane.b32.xlu0 %v738, 64
      %v835 = vpop.permute.xlu0 %834
      %852 = vrot.lane.b32.xlu0 %v747, 64
      %v853 = vpop.permute.xlu0 %852
      %854 = vrot.lane.b32.xlu0 %v748, 64
      %v855 = vpop.permute.xlu0 %854
      %856 = vrot.lane.b32.xlu0 %v749, 64
      %v857 = vpop.permute.xlu0 %856
      %858 = vrot.lane.b32.xlu0 %v750, 64
      %v859 = vpop.permute.xlu0 %858
      %860 = vrot.lane.b32.xlu0 %v751, 64
      %v861 = vpop.permute.xlu0 %860
      %862 = vrot.lane.b32.xlu0 %v752, 64
      %v863 = vpop.permute.xlu0 %862
      %864 = vrot.lane.b32.xlu0 %v753, 64
      %v865 = vpop.permute.xlu0 %864
      %866 = vrot.lane.b32.xlu0 %v754, 64
      %v867 = vpop.permute.xlu0 %866
      %884 = vrot.lane.b32.xlu0 %v764, 64
      %v885 = vpop.permute.xlu0 %884
      %886 = vrot.lane.b32.xlu0 %v765, 64
      %v887 = vpop.permute.xlu0 %886
      %888 = vrot.lane.b32.xlu0 %v766, 64
      %v889 = vpop.permute.xlu0 %888
      %890 = vrot.lane.b32.xlu0 %v767, 64
      %v891 = vpop.permute.xlu0 %890
      %892 = vrot.lane.b32.xlu0 %v768, 64
      %v893 = vpop.permute.xlu0 %892
      %894 = vrot.lane.b32.xlu0 %v769, 64
      %v895 = vpop.permute.xlu0 %894
      %896 = vrot.lane.b32.xlu0 %v770, 64
      %v897 = vpop.permute.xlu0 %896
      %898 = vrot.lane.b32.xlu0 %v771, 64
      %v899 = vpop.permute.xlu0 %898
      %v908 = vsel %vm469, %v707, %v789
      %v909 = vsel %vm469, %v708, %v791
      %v910 = vsel %vm469, %v709, %v793
      %v911 = vsel %vm469, %v710, %v795
      %v912 = vsel %vm469, %v711, %v797
      %v913 = vsel %vm469, %v712, %v799
      %v914 = vsel %vm469, %v713, %v801
      %v915 = vsel %vm469, %v714, %v803
      %v916 = vsel %vm469, %v723, %v821
      %v917 = vsel %vm469, %v724, %v823
      %v918 = vsel %vm469, %v725, %v825
      %v919 = vsel %vm469, %v726, %v827
      %v920 = vsel %vm469, %v727, %v829
      %v921 = vsel %vm469, %v728, %v831
      %v922 = vsel %vm469, %v729, %v833
      %v923 = vsel %vm469, %v730, %v835
      %v924 = vsel %vm469, %v739, %v853
      %v925 = vsel %vm469, %v740, %v855
      %v926 = vsel %vm469, %v741, %v857
      %v927 = vsel %vm469, %v742, %v859
      %v928 = vsel %vm469, %v743, %v861
      %v929 = vsel %vm469, %v744, %v863
      %v930 = vsel %vm469, %v745, %v865
      %v931 = vsel %vm469, %v746, %v867
      %v932 = vsel %vm469, %v756, %v885
      %v933 = vsel %vm469, %v757, %v887
      %v934 = vsel %vm469, %v758, %v889
      %v935 = vsel %vm469, %v759, %v891
      %v936 = vsel %vm469, %v760, %v893
      %v937 = vsel %vm469, %v761, %v895
      %v938 = vsel %vm469, %v762, %v897
      %v939 = vsel %vm469, %v763, %v899
      %v940 = vpack.c.bf16 %v909, %v908
      %v941 = vpack.c.bf16 %v917, %v916
      %v942 = vpack.c.bf16 %v925, %v924
      %v943 = vpack.c.bf16 %v933, %v932
      %v944 = vpack.c.bf16 %v773, %v772
      %v945 = vpack.c.bf16 %v911, %v910
      %v946 = vpack.c.bf16 %v919, %v918
      %v947 = vpack.c.bf16 %v927, %v926
      %v948 = vpack.c.bf16 %v935, %v934
      %v949 = vpack.c.bf16 %v775, %v774
      %v950 = vpack.c.bf16 %v913, %v912
      %v951 = vpack.c.bf16 %v921, %v920
      %v952 = vpack.c.bf16 %v929, %v928
      %v953 = vpack.c.bf16 %v937, %v936
      %v954 = vpack.c.bf16 %v777, %v776
      %v955 = vpack.c.bf16 %v915, %v914
      %v956 = vpack.c.bf16 %v923, %v922
      %v957 = vpack.c.bf16 %v931, %v930
      %v958 = vpack.c.bf16 %v939, %v938
      %v959 = vpack.c.bf16 %v779, %v778
      %v960 = vld [vmem:[%s3] sm:$0xf]
      %v961 = vld [vmem:[%s3 + $0x4] sm:$0xf]
      %v962 = vld [vmem:[%s3 + $0x8] sm:$0xf]
      %v963 = vld [vmem:[%s3 + $0xc] sm:$0xf]
      %v964 = vld [vmem:[%s3 + $0x10] sm:$0xf]
      %v965 = vld [vmem:[%s3 + $0x14] sm:$0xf]
      %v966 = vld [vmem:[%s3 + $0x18] sm:$0xf]
      %v967 = vld [vmem:[%s3 + $0x1c] sm:$0xf]
      %v968 = vld [vmem:[%s3 + $0x20] sm:$0xf]
      %v969 = vld [vmem:[%s3 + $0x24] sm:$0xf]
      %v970 = vld [vmem:[%s3 + $0x28] sm:$0xf]
      %v971 = vld [vmem:[%s3 + $0x2c] sm:$0xf]
      %v972 = vld [vmem:[%s3 + $0x30] sm:$0xf]
      %v973 = vld [vmem:[%s3 + $0x34] sm:$0xf]
      %v974 = vld [vmem:[%s3 + $0x38] sm:$0xf]
      %v975 = vld [vmem:[%s3 + $0x3c] sm:$0xf]
      %v976 = vld [vmem:[%s3 + $0x40] sm:$0xf]
      %v977 = vld [vmem:[%s3 + $0x44] sm:$0xf]
      %v978 = vld [vmem:[%s3 + $0x48] sm:$0xf]
      %v979 = vld [vmem:[%s3 + $0x4c] sm:$0xf]
      %v980 = vld [vmem:[%s3 + $0x50] sm:$0xf]
      %v981 = vld [vmem:[%s3 + $0x54] sm:$0xf]
      %v982 = vld [vmem:[%s3 + $0x58] sm:$0xf]
      %v983 = vld [vmem:[%s3 + $0x5c] sm:$0xf]
      %v984 = vld [vmem:[%s3 + $0x60] sm:$0xf]
      %v985 = vld [vmem:[%s3 + $0x64] sm:$0xf]
      %v986 = vld [vmem:[%s3 + $0x68] sm:$0xf]
      %v987 = vld [vmem:[%s3 + $0x6c] sm:$0xf]
      %v988 = vld [vmem:[%s3 + $0x70] sm:$0xf]
      %v989 = vld [vmem:[%s3 + $0x74] sm:$0xf]
      %v990 = vld [vmem:[%s3 + $0x78] sm:$0xf]
      %v991 = vld [vmem:[%s3 + $0x7c] sm:$0xf]
      %v992 = vld [vmem:[%s3 + $0x80] sm:$0xf]
      %v993 = vld [vmem:[%s3 + $0x84] sm:$0xf]
      %v994 = vld [vmem:[%s3 + $0x88] sm:$0xf]
      %v995 = vld [vmem:[%s3 + $0x8c] sm:$0xf]
      %v996 = vld [vmem:[%s3 + $0x90] sm:$0xf]
      %v997 = vld [vmem:[%s3 + $0x94] sm:$0xf]
      %v998 = vld [vmem:[%s3 + $0x98] sm:$0xf]
      %v999 = vld [vmem:[%s3 + $0x9c] sm:$0xf]
      %v1000 = vld [vmem:[%s3 + $0xa0] sm:$0xf]
      %v1001 = vld [vmem:[%s3 + $0xa4] sm:$0xf]
      %v1002 = vld [vmem:[%s3 + $0xa8] sm:$0xf]
      %v1003 = vld [vmem:[%s3 + $0xac] sm:$0xf]
      %v1004 = vld [vmem:[%s3 + $0xb0] sm:$0xf]
      %v1005 = vld [vmem:[%s3 + $0xb4] sm:$0xf]
      %v1006 = vld [vmem:[%s3 + $0xb8] sm:$0xf]
      %v1007 = vld [vmem:[%s3 + $0xbc] sm:$0xf]
      %v1008 = vld [vmem:[%s3 + $0xc0] sm:$0xf]
      %v1009 = vld [vmem:[%s3 + $0xc4] sm:$0xf]
      %v1010 = vld [vmem:[%s3 + $0xc8] sm:$0xf]
      %v1011 = vld [vmem:[%s3 + $0xcc] sm:$0xf]
      %v1012 = vld [vmem:[%s3 + $0xd0] sm:$0xf]
      %v1013 = vld [vmem:[%s3 + $0xd4] sm:$0xf]
      %v1014 = vld [vmem:[%s3 + $0xd8] sm:$0xf]
      %v1015 = vld [vmem:[%s3 + $0xdc] sm:$0xf]
      %v1016 = vld [vmem:[%s3 + $0xe0] sm:$0xf]
      %v1017 = vld [vmem:[%s3 + $0xe4] sm:$0xf]
      %v1018 = vld [vmem:[%s3 + $0xe8] sm:$0xf]
      %v1019 = vld [vmem:[%s3 + $0xec] sm:$0xf]
      %v1020 = vld [vmem:[%s3 + $0xf0] sm:$0xf]
      %v1021 = vld [vmem:[%s3 + $0xf4] sm:$0xf]
      %v1022 = vld [vmem:[%s3 + $0xf8] sm:$0xf]
      %v1023 = vld [vmem:[%s3 + $0xfc] sm:$0xf]
      %v1024 = vld [vmem:[%s3 + $0x100] sm:$0xf]
      %v1025 = vld [vmem:[%s3 + $0x104] sm:$0xf]
      %v1026 = vld [vmem:[%s3 + $0x108] sm:$0xf]
      %v1027 = vld [vmem:[%s3 + $0x10c] sm:$0xf]
      %v1028 = vld [vmem:[%s3 + $0x110] sm:$0xf]
      %v1029 = vld [vmem:[%s3 + $0x114] sm:$0xf]
      %v1030 = vld [vmem:[%s3 + $0x118] sm:$0xf]
      %v1031 = vld [vmem:[%s3 + $0x11c] sm:$0xf]
      %v1032 = vld [vmem:[%s4] sm:$0x1]
      %v1034 = vlaneseq
      %v1035 = vshrl.u32 %v1034, 7
      %v1036 = vsub.s32 0, %v1035
      %v1037 = vrot.slane %v1032, %v1036
      %v1111 = vunpack.c.l.b16 %v960
      %v1112 = vunpack.c.l.b16 %v961
      %v1113 = vunpack.c.l.b16 %v962
      %v1114 = vunpack.c.l.b16 %v963
      %v1115 = vunpack.c.l.b16 %v964
      %v1116 = vunpack.c.l.b16 %v965
      %v1117 = vunpack.c.l.b16 %v966
      %v1118 = vunpack.c.l.b16 %v967
      %v1119 = vunpack.c.l.b16 %v968
      %v1120 = vunpack.c.l.b16 %v969
      %v1121 = vunpack.c.l.b16 %v970
      %v1122 = vunpack.c.l.b16 %v971
      %v1123 = vunpack.c.l.b16 %v972
      %v1124 = vunpack.c.l.b16 %v973
      %v1125 = vunpack.c.l.b16 %v974
      %v1126 = vunpack.c.l.b16 %v975
      %v1127 = vunpack.c.l.b16 %v976
      %v1128 = vunpack.c.l.b16 %v977
      %v1129 = vunpack.c.l.b16 %v978
      %v1130 = vunpack.c.l.b16 %v979
      %v1131 = vunpack.c.l.b16 %v980
      %v1132 = vunpack.c.l.b16 %v981
      %v1133 = vunpack.c.l.b16 %v982
      %v1134 = vunpack.c.l.b16 %v983
      %v1135 = vunpack.c.l.b16 %v984
      %v1136 = vunpack.c.l.b16 %v985
      %v1137 = vunpack.c.l.b16 %v986
      %v1138 = vunpack.c.l.b16 %v987
      %v1139 = vunpack.c.l.b16 %v988
      %v1140 = vunpack.c.l.b16 %v989
      %v1141 = vunpack.c.l.b16 %v990
      %v1142 = vunpack.c.l.b16 %v991
      %v1143 = vunpack.c.l.b16 %v992
      %v1144 = vunpack.c.l.b16 %v993
      %v1145 = vunpack.c.l.b16 %v994
      %v1146 = vunpack.c.l.b16 %v995
      %v1147 = vunpack.c.l.b16 %v996
      %v1148 = vunpack.c.l.b16 %v997
      %v1149 = vunpack.c.l.b16 %v998
      %v1150 = vunpack.c.l.b16 %v999
      %v1151 = vunpack.c.l.b16 %v1000
      %v1152 = vunpack.c.l.b16 %v1001
      %v1153 = vunpack.c.l.b16 %v1002
      %v1154 = vunpack.c.l.b16 %v1003
      %v1155 = vunpack.c.l.b16 %v1004
      %v1156 = vunpack.c.l.b16 %v1005
      %v1157 = vunpack.c.l.b16 %v1006
      %v1158 = vunpack.c.l.b16 %v1007
      %v1159 = vunpack.c.l.b16 %v1008
      %v1160 = vunpack.c.l.b16 %v1009
      %v1161 = vunpack.c.l.b16 %v1010
      %v1162 = vunpack.c.l.b16 %v1011
      %v1163 = vunpack.c.l.b16 %v1012
      %v1164 = vunpack.c.l.b16 %v1013
      %v1165 = vunpack.c.l.b16 %v1014
      %v1166 = vunpack.c.l.b16 %v1015
      %v1167 = vunpack.c.l.b16 %v1016
      %v1168 = vunpack.c.l.b16 %v1017
      %v1169 = vunpack.c.l.b16 %v1018
      %v1170 = vunpack.c.l.b16 %v1019
      %v1171 = vunpack.c.l.b16 %v1020
      %v1172 = vunpack.c.l.b16 %v1021
      %v1173 = vunpack.c.l.b16 %v1022
      %v1174 = vunpack.c.l.b16 %v1023
      %v1175 = vunpack.c.l.b16 %v1024
      %v1176 = vunpack.c.l.b16 %v1025
      %v1177 = vunpack.c.l.b16 %v1026
      %v1178 = vunpack.c.l.b16 %v1027
      %v1179 = vunpack.c.l.b16 %v1028
      %v1180 = vunpack.c.l.b16 %v1029
      %v1181 = vunpack.c.l.b16 %v1030
      %v1182 = vunpack.c.l.b16 %v1031
      %v1183 = vpack.c.b16 %v1112, %v1111
      %v1184 = vpack.c.b16 %v1114, %v1113
      %v1185 = vpack.c.b16 %v1116, %v1115
      %v1186 = vpack.c.b16 %v1118, %v1117
      %v1187 = vpack.c.b16 %v1120, %v1119
      %v1188 = vpack.c.b16 %v1122, %v1121
      %v1189 = vpack.c.b16 %v1124, %v1123
      %v1190 = vpack.c.b16 %v1126, %v1125
      %v1191 = vpack.c.b16 %v1128, %v1127
      %v1192 = vpack.c.b16 %v1130, %v1129
      %v1193 = vpack.c.b16 %v1132, %v1131
      %v1194 = vpack.c.b16 %v1134, %v1133
      %v1195 = vpack.c.b16 %v1136, %v1135
      %v1196 = vpack.c.b16 %v1138, %v1137
      %v1197 = vpack.c.b16 %v1140, %v1139
      %v1198 = vpack.c.b16 %v1142, %v1141
      %v1199 = vpack.c.b16 %v1144, %v1143
      %v1200 = vpack.c.b16 %v1146, %v1145
      %v1201 = vpack.c.b16 %v1148, %v1147
      %v1202 = vpack.c.b16 %v1150, %v1149
      %v1203 = vpack.c.b16 %v1152, %v1151
      %v1204 = vpack.c.b16 %v1154, %v1153
      %v1205 = vpack.c.b16 %v1156, %v1155
      %v1206 = vpack.c.b16 %v1158, %v1157
      %v1207 = vpack.c.b16 %v1160, %v1159
      %v1208 = vpack.c.b16 %v1162, %v1161
      %v1209 = vpack.c.b16 %v1164, %v1163
      %v1210 = vpack.c.b16 %v1166, %v1165
      %v1211 = vpack.c.b16 %v1168, %v1167
      %v1212 = vpack.c.b16 %v1170, %v1169
      %v1213 = vpack.c.b16 %v1172, %v1171
      %v1214 = vpack.c.b16 %v1174, %v1173
      %v1215 = vpack.c.b16 %v1176, %v1175
      %v1216 = vpack.c.b16 %v1178, %v1177
      %v1217 = vpack.c.b16 %v1180, %v1179
      %v1218 = vpack.c.b16 %v1182, %v1181
      %v1256 = vsel %vm469, %v944, 0
      %v1259 = vsel %vm469, %v949, 0
      %v1262 = vsel %vm469, %v954, 0
      %v1265 = vsel %vm469, %v959, 0
      %1267 = vmatprep.subr.bf16.mxu0 0
      %1268 = vmatpush1.bf16.msra.mxu0 %v1190
      %1269 = vmatprep.subr.bf16.mxu0 0
      %1270 = vmatpush1.bf16.msra.mxu0 %v1189
      %1271 = vmatprep.subr.bf16.mxu0 0
      %1272 = vmatpush1.bf16.msra.mxu0 %v1188
      %1273 = vmatprep.subr.bf16.mxu0 0
      %1274 = vmatpush1.bf16.msra.mxu0 %v1187
      %1275 = vmatprep.subr.bf16.mxu0 0
      %1276 = vmatpush1.bf16.msra.mxu0 %v1186
      %1277 = vmatprep.subr.bf16.mxu0 0
      %1278 = vmatpush1.bf16.msra.mxu0 %v1185
      %1279 = vmatprep.subr.bf16.mxu0 0
      %1280 = vmatpush1.bf16.msra.mxu0 %v1184
      %1281 = vmatprep.subr.bf16.mxu0 0
      %1282 = vmatpush1.bf16.msra.mxu0 %v1183
      %1283 = vmatprep.subr.bf16.mxu0 0
      %1284 = vmatpush2.bf16.msra.mxu0 %v1198
      %1285 = vmatprep.subr.bf16.mxu0 0
      %1286 = vmatpush2.bf16.msra.mxu0 %v1197
      %1287 = vmatprep.subr.bf16.mxu0 0
      %1288 = vmatpush2.bf16.msra.mxu0 %v1196
      %1289 = vmatprep.subr.bf16.mxu0 0
      %1290 = vmatpush2.bf16.msra.mxu0 %v1195
      %1291 = vmatprep.subr.bf16.mxu0 0
      %1292 = vmatpush2.bf16.msra.mxu0 %v1194
      %1293 = vmatprep.subr.bf16.mxu0 0
      %1294 = vmatpush2.bf16.msra.mxu0 %v1193
      %1295 = vmatprep.subr.bf16.mxu0 0
      %1296 = vmatpush2.bf16.msra.mxu0 %v1192
      %1297 = vmatprep.subr.bf16.mxu0 0
      %1298 = vmatpush2.bf16.msra.mxu0 %v1191
      %1299 = vmatprep.mubr.bf16.mxu0 %v941
      %1300 = vmatmul.mubr.bf16.gmra.mxu0 %v940
      %v1301 = vpop.f32.mrf.mxu0
      %v1302 = vadd.f32 %v1037, %v1301
      %v1303 = vpop.f32.mrf.mxu0
      %v1304 = vpop.f32.mrf.mxu0
      %v1305 = vadd.f32 %v1037, %v1304
      %v1306 = vpop.f32.mrf.mxu0
      %1307 = vmatprep.mubr.bf16.mxu0 %v946
      %1308 = vmatmul.mubr.bf16.gmra.mxu0 %v945
      %v1309 = vpop.f32.mrf.mxu0
      %v1310 = vadd.f32 %v1037, %v1309
      %v1311 = vpop.f32.mrf.mxu0
      %v1312 = vpop.f32.mrf.mxu0
      %v1313 = vadd.f32 %v1037, %v1312
      %v1314 = vpop.f32.mrf.mxu0
      %1315 = vmatprep.mubr.bf16.mxu0 %v951
      %1316 = vmatmul.mubr.bf16.gmra.mxu0 %v950
      %v1317 = vpop.f32.mrf.mxu0
      %v1318 = vadd.f32 %v1037, %v1317
      %v1319 = vpop.f32.mrf.mxu0
      %v1320 = vpop.f32.mrf.mxu0
      %v1321 = vadd.f32 %v1037, %v1320
      %v1322 = vpop.f32.mrf.mxu0
      %1323 = vmatprep.mubr.bf16.mxu0 %v956
      %1324 = vmatmul.mubr.bf16.gmra.mxu0 %v955
      %v1325 = vpop.f32.mrf.mxu0
      %v1326 = vadd.f32 %v1037, %v1325
      %v1327 = vpop.f32.mrf.mxu0
      %v1328 = vpop.f32.mrf.mxu0
      %v1329 = vadd.f32 %v1037, %v1328
      %v1330 = vpop.f32.mrf.mxu0
      %1331 = vdwg.mxu0
      %1332 = vmatprep.subr.bf16.mxu0 0
      %1333 = vmatpush1.bf16.msra.mxu0 %v1206
      %1334 = vmatprep.subr.bf16.mxu0 0
      %1335 = vmatpush1.bf16.msra.mxu0 %v1205
      %1336 = vmatprep.subr.bf16.mxu0 0
      %1337 = vmatpush1.bf16.msra.mxu0 %v1204
      %1338 = vmatprep.subr.bf16.mxu0 0
      %1339 = vmatpush1.bf16.msra.mxu0 %v1203
      %1340 = vmatprep.subr.bf16.mxu0 0
      %1341 = vmatpush1.bf16.msra.mxu0 %v1202
      %1342 = vmatprep.subr.bf16.mxu0 0
      %1343 = vmatpush1.bf16.msra.mxu0 %v1201
      %1344 = vmatprep.subr.bf16.mxu0 0
      %1345 = vmatpush1.bf16.msra.mxu0 %v1200
      %1346 = vmatprep.subr.bf16.mxu0 0
      %1347 = vmatpush1.bf16.msra.mxu0 %v1199
      %1348 = vmatprep.subr.bf16.mxu0 0
      %1349 = vmatpush2.bf16.msra.mxu0 %v1214
      %1350 = vmatprep.subr.bf16.mxu0 0
      %1351 = vmatpush2.bf16.msra.mxu0 %v1213
      %1352 = vmatprep.subr.bf16.mxu0 0
      %1353 = vmatpush2.bf16.msra.mxu0 %v1212
      %1354 = vmatprep.subr.bf16.mxu0 0
      %1355 = vmatpush2.bf16.msra.mxu0 %v1211
      %1356 = vmatprep.subr.bf16.mxu0 0
      %1357 = vmatpush2.bf16.msra.mxu0 %v1210
      %1358 = vmatprep.subr.bf16.mxu0 0
      %1359 = vmatpush2.bf16.msra.mxu0 %v1209
      %1360 = vmatprep.subr.bf16.mxu0 0
      %1361 = vmatpush2.bf16.msra.mxu0 %v1208
      %1362 = vmatprep.subr.bf16.mxu0 0
      %1363 = vmatpush2.bf16.msra.mxu0 %v1207
      %1364 = vmatprep.mubr.bf16.mxu0 %v943
      %1365 = vmatmul.mubr.bf16.gmra.mxu0 %v942
      %v1366 = vpop.f32.mrf.mxu0
      %v1367 = vadd.f32 %v1302, %v1366
      %v1368 = vpop.f32.mrf.mxu0
      %v1369 = vpop.f32.mrf.mxu0
      %v1370 = vadd.f32 %v1305, %v1369
      %v1371 = vpop.f32.mrf.mxu0
      %1372 = vmatprep.mubr.bf16.mxu0 %v948
      %1373 = vmatmul.mubr.bf16.gmra.mxu0 %v947
      %v1374 = vpop.f32.mrf.mxu0
      %v1375 = vadd.f32 %v1310, %v1374
      %v1376 = vpop.f32.mrf.mxu0
      %v1377 = vpop.f32.mrf.mxu0
      %v1378 = vadd.f32 %v1313, %v1377
      %v1379 = vpop.f32.mrf.mxu0
      %1380 = vmatprep.mubr.bf16.mxu0 %v953
      %1381 = vmatmul.mubr.bf16.gmra.mxu0 %v952
      %v1382 = vpop.f32.mrf.mxu0
      %v1383 = vadd.f32 %v1318, %v1382
      %v1384 = vpop.f32.mrf.mxu0
      %v1385 = vpop.f32.mrf.mxu0
      %v1386 = vadd.f32 %v1321, %v1385
      %v1387 = vpop.f32.mrf.mxu0
      %1388 = vmatprep.mubr.bf16.mxu0 %v958
      %1389 = vmatmul.mubr.bf16.gmra.mxu0 %v957
      %v1390 = vpop.f32.mrf.mxu0
      %v1391 = vadd.f32 %v1326, %v1390
      %v1392 = vpop.f32.mrf.mxu0
      %v1393 = vpop.f32.mrf.mxu0
      %v1394 = vadd.f32 %v1329, %v1393
      %v1395 = vpop.f32.mrf.mxu0
      %1396 = vdwg.mxu0
      %1397 = vmatprep.subr.bf16.mxu0 0
      %1398 = vmatpush1.bf16.msra.mxu0 0
      %1399 = vmatprep.subr.bf16.mxu0 0
      %1400 = vmatpush1.bf16.msra.mxu0 0
      %1401 = vmatprep.subr.bf16.mxu0 0
      %1402 = vmatpush1.bf16.msra.mxu0 0
      %1403 = vmatprep.subr.bf16.mxu0 0
      %1404 = vmatpush1.bf16.msra.mxu0 0
      %1405 = vmatprep.subr.bf16.mxu0 0
      %1406 = vmatpush1.bf16.msra.mxu0 %v1218
      %1407 = vmatprep.subr.bf16.mxu0 0
      %1408 = vmatpush1.bf16.msra.mxu0 %v1217
      %1409 = vmatprep.subr.bf16.mxu0 0
      %1410 = vmatpush1.bf16.msra.mxu0 %v1216
      %1411 = vmatprep.subr.bf16.mxu0 0
      %1412 = vmatpush1.bf16.msra.mxu0 %v1215
      %1413 = vmatprep.subr.bf16.mxu0 0
      %1414 = vmatpush2.bf16.msra.mxu0 0
      %1415 = vmatprep.subr.bf16.mxu0 0
      %1416 = vmatpush2.bf16.msra.mxu0 0
      %1417 = vmatprep.subr.bf16.mxu0 0
      %1418 = vmatpush2.bf16.msra.mxu0 0
      %1419 = vmatprep.subr.bf16.mxu0 0
      %1420 = vmatpush2.bf16.msra.mxu0 0
      %1421 = vmatprep.subr.bf16.mxu0 0
      %1422 = vmatpush2.bf16.msra.mxu0 0
      %1423 = vmatprep.subr.bf16.mxu0 0
      %1424 = vmatpush2.bf16.msra.mxu0 0
      %1425 = vmatprep.subr.bf16.mxu0 0
      %1426 = vmatpush2.bf16.msra.mxu0 0
      %1427 = vmatprep.subr.bf16.mxu0 0
      %1428 = vmatpush2.bf16.msra.mxu0 0
      %1429 = vmatprep.mubr.bf16.mxu0 0
      %1430 = vmatmul.mubr.bf16.gmra.mxu0 %v1256
      %v1431 = vpop.f32.mrf.mxu0
      %v1432 = vadd.f32 %v1367, %v1431
      %v1433 = vpop.f32.mrf.mxu0
      %v1434 = vpop.f32.mrf.mxu0
      %v1435 = vadd.f32 %v1370, %v1434
      %v1436 = vpop.f32.mrf.mxu0
      %1437 = vmatprep.mubr.bf16.mxu0 0
      %1438 = vmatmul.mubr.bf16.gmra.mxu0 %v1259
      %v1439 = vpop.f32.mrf.mxu0
      %v1440 = vadd.f32 %v1375, %v1439
      %v1441 = vpop.f32.mrf.mxu0
      %v1442 = vpop.f32.mrf.mxu0
      %v1443 = vadd.f32 %v1378, %v1442
      %v1444 = vpop.f32.mrf.mxu0
      %1445 = vmatprep.mubr.bf16.mxu0 0
      %1446 = vmatmul.mubr.bf16.gmra.mxu0 %v1262
      %v1447 = vpop.f32.mrf.mxu0
      %v1448 = vadd.f32 %v1383, %v1447
      %v1449 = vpop.f32.mrf.mxu0
      %v1450 = vpop.f32.mrf.mxu0
      %v1451 = vadd.f32 %v1386, %v1450
      %v1452 = vpop.f32.mrf.mxu0
      %1453 = vmatprep.mubr.bf16.mxu0 0
      %1454 = vmatmul.mubr.bf16.gmra.mxu0 %v1265
      %v1455 = vpop.f32.mrf.mxu0
      %v1456 = vadd.f32 %v1391, %v1455
      %v1457 = vpop.f32.mrf.mxu0
      %v1458 = vpop.f32.mrf.mxu0
      %v1459 = vadd.f32 %v1394, %v1458
      %v1460 = vpop.f32.mrf.mxu0
      %1461 = vdwg.mxu0
      %vm1462 = vcmp.ge.f32.partialorder %v1432, 0.0
      %vm1463 = vcmp.ge.f32.partialorder %v1435, 0.0
      %vm1464 = vcmp.ge.f32.partialorder %v1440, 0.0
      %vm1465 = vcmp.ge.f32.partialorder %v1443, 0.0
      %vm1466 = vcmp.ge.f32.partialorder %v1448, 0.0
      %vm1467 = vcmp.ge.f32.partialorder %v1451, 0.0
      %vm1468 = vcmp.ge.f32.partialorder %v1456, 0.0
      %vm1469 = vcmp.ge.f32.partialorder %v1459, 0.0
      %v1470 = vmul.f32 %v1432, 0.1
      %v1471 = vmul.f32 %v1435, 0.1
      %v1472 = vmul.f32 %v1440, 0.1
      %v1473 = vmul.f32 %v1443, 0.1
      %v1474 = vmul.f32 %v1448, 0.1
      %v1475 = vmul.f32 %v1451, 0.1
      %v1476 = vmul.f32 %v1456, 0.1
      %v1477 = vmul.f32 %v1459, 0.1
      %v1478 = vsel %vm1462, %v1432, %v1470
      %v1479 = vsel %vm1463, %v1435, %v1471
      %v1480 = vsel %vm1464, %v1440, %v1472
      %v1481 = vsel %vm1465, %v1443, %v1473
      %v1482 = vsel %vm1466, %v1448, %v1474
      %v1483 = vsel %vm1467, %v1451, %v1475
      %v1484 = vsel %vm1468, %v1456, %v1476
      %v1485 = vsel %vm1469, %v1459, %v1477
      %1486 = vst.msk [vmem:[%s698 + $0x1] sm:$0xff] %vm469, %v1478
      %1487 = vst.msk [vmem:[%s698 + $0x11] sm:$0xff] %vm469, %v1479
      %1488 = vst.msk [vmem:[%s698 + $0x21] sm:$0xff] %vm469, %v1480
      %1489 = vst.msk [vmem:[%s698 + $0x31] sm:$0xff] %vm469, %v1481
      %1490 = vst.msk [vmem:[%s698 + $0x41] sm:$0xff] %vm469, %v1482
      %1491 = vst.msk [vmem:[%s698 + $0x51] sm:$0xff] %vm469, %v1483
      %1492 = vst.msk [vmem:[%s698 + $0x61] sm:$0xff] %vm469, %v1484
      %1493 = vst.msk [vmem:[%s698 + $0x71] sm:$0xff] %vm469, %v1485
      %v1494 = vld [vmem:[#allocation2] sm:$0xff]
      %v1495 = vld [vmem:[#allocation2 + $0x10] sm:$0xff]
      %v1496 = vld [vmem:[#allocation2 + $0x20] sm:$0xff]
      %v1497 = vld [vmem:[#allocation2 + $0x30] sm:$0xff]
      %v1498 = vld [vmem:[#allocation2 + $0x40] sm:$0xff]
      %v1499 = vld [vmem:[#allocation2 + $0x50] sm:$0xff]
      %v1500 = vld [vmem:[#allocation2 + $0x60] sm:$0xff]
      %v1501 = vld [vmem:[#allocation2 + $0x70] sm:$0xff]
      %v1502 = vld [vmem:[#allocation2 + $0x1] sm:$0xff]
      %v1503 = vld [vmem:[#allocation2 + $0x11] sm:$0xff]
      %v1504 = vld [vmem:[#allocation2 + $0x21] sm:$0xff]
      %v1505 = vld [vmem:[#allocation2 + $0x31] sm:$0xff]
      %v1506 = vld [vmem:[#allocation2 + $0x41] sm:$0xff]
      %v1507 = vld [vmem:[#allocation2 + $0x51] sm:$0xff]
      %v1508 = vld [vmem:[#allocation2 + $0x61] sm:$0xff]
      %v1509 = vld [vmem:[#allocation2 + $0x71] sm:$0xff]
      %v1510 = vld [vmem:[#allocation2 + $0x2] sm:$0xff]
      %v1511 = vld [vmem:[#allocation2 + $0x12] sm:$0xff]
      %v1512 = vld [vmem:[#allocation2 + $0x22] sm:$0xff]
      %v1513 = vld [vmem:[#allocation2 + $0x32] sm:$0xff]
      %v1514 = vld [vmem:[#allocation2 + $0x42] sm:$0xff]
      %v1515 = vld [vmem:[#allocation2 + $0x52] sm:$0xff]
      %v1516 = vld [vmem:[#allocation2 + $0x62] sm:$0xff]
      %v1517 = vld [vmem:[#allocation2 + $0x72] sm:$0xff]
      %v1518 = vld [vmem:[%s698] sm:$0xff]
      %v1519 = vld [vmem:[%s698 + $0x10] sm:$0xff]
      %v1520 = vld [vmem:[%s698 + $0x20] sm:$0xff]
      %v1521 = vld [vmem:[%s698 + $0x30] sm:$0xff]
      %v1522 = vld [vmem:[%s698 + $0x40] sm:$0xff]
      %v1523 = vld [vmem:[%s698 + $0x50] sm:$0xff]
      %v1524 = vld [vmem:[%s698 + $0x60] sm:$0xff]
      %v1525 = vld [vmem:[%s698 + $0x70] sm:$0xff]
      %v1526 = vld [vmem:[%s698 + $0x1] sm:$0xff]
      %v1527 = vld [vmem:[%s698 + $0x11] sm:$0xff]
      %v1528 = vld [vmem:[%s698 + $0x21] sm:$0xff]
      %v1529 = vld [vmem:[%s698 + $0x31] sm:$0xff]
      %v1530 = vld [vmem:[%s698 + $0x41] sm:$0xff]
      %v1531 = vld [vmem:[%s698 + $0x51] sm:$0xff]
      %v1532 = vld [vmem:[%s698 + $0x61] sm:$0xff]
      %v1533 = vld [vmem:[%s698 + $0x71] sm:$0xff]
      %v1534 = vld [vmem:[%s698 + $0x2] sm:$0xff]
      %v1535 = vld [vmem:[%s698 + $0x12] sm:$0xff]
      %v1536 = vld [vmem:[%s698 + $0x22] sm:$0xff]
      %v1537 = vld [vmem:[%s698 + $0x32] sm:$0xff]
      %v1538 = vld [vmem:[%s698 + $0x42] sm:$0xff]
      %v1539 = vld [vmem:[%s698 + $0x52] sm:$0xff]
      %v1540 = vld [vmem:[%s698 + $0x62] sm:$0xff]
      %v1541 = vld [vmem:[%s698 + $0x72] sm:$0xff]
      %v1542 = vld [vmem:[%s755] sm:$0xff]
      %v1543 = vld [vmem:[%s755 + $0x10] sm:$0xff]
      %v1544 = vld [vmem:[%s755 + $0x20] sm:$0xff]
      %v1545 = vld [vmem:[%s755 + $0x30] sm:$0xff]
      %v1546 = vld [vmem:[%s755 + $0x40] sm:$0xff]
      %v1547 = vld [vmem:[%s755 + $0x50] sm:$0xff]
      %v1548 = vld [vmem:[%s755 + $0x60] sm:$0xff]
      %v1549 = vld [vmem:[%s755 + $0x70] sm:$0xff]
      %v1550 = vld [vmem:[%s755 + $0x1] sm:$0xff]
      %v1551 = vld [vmem:[%s755 + $0x11] sm:$0xff]
      %v1552 = vld [vmem:[%s755 + $0x21] sm:$0xff]
      %v1553 = vld [vmem:[%s755 + $0x31] sm:$0xff]
      %v1554 = vld [vmem:[%s755 + $0x41] sm:$0xff]
      %v1555 = vld [vmem:[%s755 + $0x51] sm:$0xff]
      %v1556 = vld [vmem:[%s755 + $0x61] sm:$0xff]
      %v1557 = vld [vmem:[%s755 + $0x71] sm:$0xff]
      %v1558 = vld [vmem:[%s755 + $0x2] sm:$0xff]
      %v1559 = vld [vmem:[%s755 + $0x12] sm:$0xff]
      %v1560 = vld [vmem:[%s755 + $0x22] sm:$0xff]
      %v1561 = vld [vmem:[%s755 + $0x32] sm:$0xff]
      %v1562 = vld [vmem:[%s755 + $0x42] sm:$0xff]
      %v1563 = vld [vmem:[%s755 + $0x52] sm:$0xff]
      %v1564 = vld [vmem:[%s755 + $0x62] sm:$0xff]
      %v1565 = vld [vmem:[%s755 + $0x72] sm:$0xff]
      %1574 = vrot.lane.b32.xlu0 %v1502, 64
      %v1575 = vpop.permute.xlu0 %1574
      %1576 = vrot.lane.b32.xlu0 %v1503, 64
      %v1577 = vpop.permute.xlu0 %1576
      %1578 = vrot.lane.b32.xlu0 %v1504, 64
      %v1579 = vpop.permute.xlu0 %1578
      %1580 = vrot.lane.b32.xlu0 %v1505, 64
      %v1581 = vpop.permute.xlu0 %1580
      %1582 = vrot.lane.b32.xlu0 %v1506, 64
      %v1583 = vpop.permute.xlu0 %1582
      %1584 = vrot.lane.b32.xlu0 %v1507, 64
      %v1585 = vpop.permute.xlu0 %1584
      %1586 = vrot.lane.b32.xlu0 %v1508, 64
      %v1587 = vpop.permute.xlu0 %1586
      %1588 = vrot.lane.b32.xlu0 %v1509, 64
      %v1589 = vpop.permute.xlu0 %1588
      %1606 = vrot.lane.b32.xlu0 %v1518, 64
      %v1607 = vpop.permute.xlu0 %1606
      %1608 = vrot.lane.b32.xlu0 %v1519, 64
      %v1609 = vpop.permute.xlu0 %1608
      %1610 = vrot.lane.b32.xlu0 %v1520, 64
      %v1611 = vpop.permute.xlu0 %1610
      %1612 = vrot.lane.b32.xlu0 %v1521, 64
      %v1613 = vpop.permute.xlu0 %1612
      %1614 = vrot.lane.b32.xlu0 %v1522, 64
      %v1615 = vpop.permute.xlu0 %1614
      %1616 = vrot.lane.b32.xlu0 %v1523, 64
      %v1617 = vpop.permute.xlu0 %1616
      %1618 = vrot.lane.b32.xlu0 %v1524, 64
      %v1619 = vpop.permute.xlu0 %1618
      %1620 = vrot.lane.b32.xlu0 %v1525, 64
      %v1621 = vpop.permute.xlu0 %1620
      %1638 = vrot.lane.b32.xlu0 %v1534, 64
      %v1639 = vpop.permute.xlu0 %1638
      %1640 = vrot.lane.b32.xlu0 %v1535, 64
      %v1641 = vpop.permute.xlu0 %1640
      %1642 = vrot.lane.b32.xlu0 %v1536, 64
      %v1643 = vpop.permute.xlu0 %1642
      %1644 = vrot.lane.b32.xlu0 %v1537, 64
      %v1645 = vpop.permute.xlu0 %1644
      %1646 = vrot.lane.b32.xlu0 %v1538, 64
      %v1647 = vpop.permute.xlu0 %1646
      %1648 = vrot.lane.b32.xlu0 %v1539, 64
      %v1649 = vpop.permute.xlu0 %1648
      %1650 = vrot.lane.b32.xlu0 %v1540, 64
      %v1651 = vpop.permute.xlu0 %1650
      %1652 = vrot.lane.b32.xlu0 %v1541, 64
      %v1653 = vpop.permute.xlu0 %1652
      %1670 = vrot.lane.b32.xlu0 %v1550, 64
      %v1671 = vpop.permute.xlu0 %1670
      %1672 = vrot.lane.b32.xlu0 %v1551, 64
      %v1673 = vpop.permute.xlu0 %1672
      %1674 = vrot.lane.b32.xlu0 %v1552, 64
      %v1675 = vpop.permute.xlu0 %1674
      %1676 = vrot.lane.b32.xlu0 %v1553, 64
      %v1677 = vpop.permute.xlu0 %1676
      %1678 = vrot.lane.b32.xlu0 %v1554, 64
      %v1679 = vpop.permute.xlu0 %1678
      %1680 = vrot.lane.b32.xlu0 %v1555, 64
      %v1681 = vpop.permute.xlu0 %1680
      %1682 = vrot.lane.b32.xlu0 %v1556, 64
      %v1683 = vpop.permute.xlu0 %1682
      %1684 = vrot.lane.b32.xlu0 %v1557, 64
      %v1685 = vpop.permute.xlu0 %1684
      %v1694 = vsel %vm469, %v1494, %v1575
      %v1695 = vsel %vm469, %v1495, %v1577
      %v1696 = vsel %vm469, %v1496, %v1579
      %v1697 = vsel %vm469, %v1497, %v1581
      %v1698 = vsel %vm469, %v1498, %v1583
      %v1699 = vsel %vm469, %v1499, %v1585
      %v1700 = vsel %vm469, %v1500, %v1587
      %v1701 = vsel %vm469, %v1501, %v1589
      %v1702 = vsel %vm469, %v1510, %v1607
      %v1703 = vsel %vm469, %v1511, %v1609
      %v1704 = vsel %vm469, %v1512, %v1611
      %v1705 = vsel %vm469, %v1513, %v1613
      %v1706 = vsel %vm469, %v1514, %v1615
      %v1707 = vsel %vm469, %v1515, %v1617
      %v1708 = vsel %vm469, %v1516, %v1619
      %v1709 = vsel %vm469, %v1517, %v1621
      %v1710 = vsel %vm469, %v1526, %v1639
      %v1711 = vsel %vm469, %v1527, %v1641
      %v1712 = vsel %vm469, %v1528, %v1643
      %v1713 = vsel %vm469, %v1529, %v1645
      %v1714 = vsel %vm469, %v1530, %v1647
      %v1715 = vsel %vm469, %v1531, %v1649
      %v1716 = vsel %vm469, %v1532, %v1651
      %v1717 = vsel %vm469, %v1533, %v1653
      %v1718 = vsel %vm469, %v1542, %v1671
      %v1719 = vsel %vm469, %v1543, %v1673
      %v1720 = vsel %vm469, %v1544, %v1675
      %v1721 = vsel %vm469, %v1545, %v1677
      %v1722 = vsel %vm469, %v1546, %v1679
      %v1723 = vsel %vm469, %v1547, %v1681
      %v1724 = vsel %vm469, %v1548, %v1683
      %v1725 = vsel %vm469, %v1549, %v1685
      %v1726 = vpack.c.bf16 %v1695, %v1694
      %v1727 = vpack.c.bf16 %v1703, %v1702
      %v1728 = vpack.c.bf16 %v1711, %v1710
      %v1729 = vpack.c.bf16 %v1719, %v1718
      %v1730 = vpack.c.bf16 %v1559, %v1558
      %v1731 = vpack.c.bf16 %v1697, %v1696
      %v1732 = vpack.c.bf16 %v1705, %v1704
      %v1733 = vpack.c.bf16 %v1713, %v1712
      %v1734 = vpack.c.bf16 %v1721, %v1720
      %v1735 = vpack.c.bf16 %v1561, %v1560
      %v1736 = vpack.c.bf16 %v1699, %v1698
      %v1737 = vpack.c.bf16 %v1707, %v1706
      %v1738 = vpack.c.bf16 %v1715, %v1714
      %v1739 = vpack.c.bf16 %v1723, %v1722
      %v1740 = vpack.c.bf16 %v1563, %v1562
      %v1741 = vpack.c.bf16 %v1701, %v1700
      %v1742 = vpack.c.bf16 %v1709, %v1708
      %v1743 = vpack.c.bf16 %v1717, %v1716
      %v1744 = vpack.c.bf16 %v1725, %v1724
      %v1745 = vpack.c.bf16 %v1565, %v1564
      %v1746 = vld [vmem:[%s5] sm:$0xf]
      %v1747 = vld [vmem:[%s5 + $0x4] sm:$0xf]
      %v1748 = vld [vmem:[%s5 + $0x8] sm:$0xf]
      %v1749 = vld [vmem:[%s5 + $0xc] sm:$0xf]
      %v1750 = vld [vmem:[%s5 + $0x10] sm:$0xf]
      %v1751 = vld [vmem:[%s5 + $0x14] sm:$0xf]
      %v1752 = vld [vmem:[%s5 + $0x18] sm:$0xf]
      %v1753 = vld [vmem:[%s5 + $0x1c] sm:$0xf]
      %v1754 = vld [vmem:[%s5 + $0x20] sm:$0xf]
      %v1755 = vld [vmem:[%s5 + $0x24] sm:$0xf]
      %v1756 = vld [vmem:[%s5 + $0x28] sm:$0xf]
      %v1757 = vld [vmem:[%s5 + $0x2c] sm:$0xf]
      %v1758 = vld [vmem:[%s5 + $0x30] sm:$0xf]
      %v1759 = vld [vmem:[%s5 + $0x34] sm:$0xf]
      %v1760 = vld [vmem:[%s5 + $0x38] sm:$0xf]
      %v1761 = vld [vmem:[%s5 + $0x3c] sm:$0xf]
      %v1762 = vld [vmem:[%s5 + $0x40] sm:$0xf]
      %v1763 = vld [vmem:[%s5 + $0x44] sm:$0xf]
      %v1764 = vld [vmem:[%s5 + $0x48] sm:$0xf]
      %v1765 = vld [vmem:[%s5 + $0x4c] sm:$0xf]
      %v1766 = vld [vmem:[%s5 + $0x50] sm:$0xf]
      %v1767 = vld [vmem:[%s5 + $0x54] sm:$0xf]
      %v1768 = vld [vmem:[%s5 + $0x58] sm:$0xf]
      %v1769 = vld [vmem:[%s5 + $0x5c] sm:$0xf]
      %v1770 = vld [vmem:[%s5 + $0x60] sm:$0xf]
      %v1771 = vld [vmem:[%s5 + $0x64] sm:$0xf]
      %v1772 = vld [vmem:[%s5 + $0x68] sm:$0xf]
      %v1773 = vld [vmem:[%s5 + $0x6c] sm:$0xf]
      %v1774 = vld [vmem:[%s5 + $0x70] sm:$0xf]
      %v1775 = vld [vmem:[%s5 + $0x74] sm:$0xf]
      %v1776 = vld [vmem:[%s5 + $0x78] sm:$0xf]
      %v1777 = vld [vmem:[%s5 + $0x7c] sm:$0xf]
      %v1778 = vld [vmem:[%s5 + $0x80] sm:$0xf]
      %v1779 = vld [vmem:[%s5 + $0x84] sm:$0xf]
      %v1780 = vld [vmem:[%s5 + $0x88] sm:$0xf]
      %v1781 = vld [vmem:[%s5 + $0x8c] sm:$0xf]
      %v1782 = vld [vmem:[%s5 + $0x90] sm:$0xf]
      %v1783 = vld [vmem:[%s5 + $0x94] sm:$0xf]
      %v1784 = vld [vmem:[%s5 + $0x98] sm:$0xf]
      %v1785 = vld [vmem:[%s5 + $0x9c] sm:$0xf]
      %v1786 = vld [vmem:[%s5 + $0xa0] sm:$0xf]
      %v1787 = vld [vmem:[%s5 + $0xa4] sm:$0xf]
      %v1788 = vld [vmem:[%s5 + $0xa8] sm:$0xf]
      %v1789 = vld [vmem:[%s5 + $0xac] sm:$0xf]
      %v1790 = vld [vmem:[%s5 + $0xb0] sm:$0xf]
      %v1791 = vld [vmem:[%s5 + $0xb4] sm:$0xf]
      %v1792 = vld [vmem:[%s5 + $0xb8] sm:$0xf]
      %v1793 = vld [vmem:[%s5 + $0xbc] sm:$0xf]
      %v1794 = vld [vmem:[%s5 + $0xc0] sm:$0xf]
      %v1795 = vld [vmem:[%s5 + $0xc4] sm:$0xf]
      %v1796 = vld [vmem:[%s5 + $0xc8] sm:$0xf]
      %v1797 = vld [vmem:[%s5 + $0xcc] sm:$0xf]
      %v1798 = vld [vmem:[%s5 + $0xd0] sm:$0xf]
      %v1799 = vld [vmem:[%s5 + $0xd4] sm:$0xf]
      %v1800 = vld [vmem:[%s5 + $0xd8] sm:$0xf]
      %v1801 = vld [vmem:[%s5 + $0xdc] sm:$0xf]
      %v1802 = vld [vmem:[%s5 + $0xe0] sm:$0xf]
      %v1803 = vld [vmem:[%s5 + $0xe4] sm:$0xf]
      %v1804 = vld [vmem:[%s5 + $0xe8] sm:$0xf]
      %v1805 = vld [vmem:[%s5 + $0xec] sm:$0xf]
      %v1806 = vld [vmem:[%s5 + $0xf0] sm:$0xf]
      %v1807 = vld [vmem:[%s5 + $0xf4] sm:$0xf]
      %v1808 = vld [vmem:[%s5 + $0xf8] sm:$0xf]
      %v1809 = vld [vmem:[%s5 + $0xfc] sm:$0xf]
      %v1810 = vld [vmem:[%s5 + $0x100] sm:$0xf]
      %v1811 = vld [vmem:[%s5 + $0x104] sm:$0xf]
      %v1812 = vld [vmem:[%s5 + $0x108] sm:$0xf]
      %v1813 = vld [vmem:[%s5 + $0x10c] sm:$0xf]
      %v1814 = vld [vmem:[%s5 + $0x110] sm:$0xf]
      %v1815 = vld [vmem:[%s5 + $0x114] sm:$0xf]
      %v1816 = vld [vmem:[%s5 + $0x118] sm:$0xf]
      %v1817 = vld [vmem:[%s5 + $0x11c] sm:$0xf]
      %v1818 = vld [vmem:[%s6] sm:$0x1]
      %v1820 = vlaneseq
      %v1821 = vshrl.u32 %v1820, 7
      %v1822 = vsub.s32 0, %v1821
      %v1823 = vrot.slane %v1818, %v1822
      %v1897 = vunpack.c.l.b16 %v1746
      %v1898 = vunpack.c.l.b16 %v1747
      %v1899 = vunpack.c.l.b16 %v1748
      %v1900 = vunpack.c.l.b16 %v1749
      %v1901 = vunpack.c.l.b16 %v1750
      %v1902 = vunpack.c.l.b16 %v1751
      %v1903 = vunpack.c.l.b16 %v1752
      %v1904 = vunpack.c.l.b16 %v1753
      %v1905 = vunpack.c.l.b16 %v1754
      %v1906 = vunpack.c.l.b16 %v1755
      %v1907 = vunpack.c.l.b16 %v1756
      %v1908 = vunpack.c.l.b16 %v1757
      %v1909 = vunpack.c.l.b16 %v1758
      %v1910 = vunpack.c.l.b16 %v1759
      %v1911 = vunpack.c.l.b16 %v1760
      %v1912 = vunpack.c.l.b16 %v1761
      %v1913 = vunpack.c.l.b16 %v1762
      %v1914 = vunpack.c.l.b16 %v1763
      %v1915 = vunpack.c.l.b16 %v1764
      %v1916 = vunpack.c.l.b16 %v1765
      %v1917 = vunpack.c.l.b16 %v1766
      %v1918 = vunpack.c.l.b16 %v1767
      %v1919 = vunpack.c.l.b16 %v1768
      %v1920 = vunpack.c.l.b16 %v1769
      %v1921 = vunpack.c.l.b16 %v1770
      %v1922 = vunpack.c.l.b16 %v1771
      %v1923 = vunpack.c.l.b16 %v1772
      %v1924 = vunpack.c.l.b16 %v1773
      %v1925 = vunpack.c.l.b16 %v1774
      %v1926 = vunpack.c.l.b16 %v1775
      %v1927 = vunpack.c.l.b16 %v1776
      %v1928 = vunpack.c.l.b16 %v1777
      %v1929 = vunpack.c.l.b16 %v1778
      %v1930 = vunpack.c.l.b16 %v1779
      %v1931 = vunpack.c.l.b16 %v1780
      %v1932 = vunpack.c.l.b16 %v1781
      %v1933 = vunpack.c.l.b16 %v1782
      %v1934 = vunpack.c.l.b16 %v1783
      %v1935 = vunpack.c.l.b16 %v1784
      %v1936 = vunpack.c.l.b16 %v1785
      %v1937 = vunpack.c.l.b16 %v1786
      %v1938 = vunpack.c.l.b16 %v1787
      %v1939 = vunpack.c.l.b16 %v1788
      %v1940 = vunpack.c.l.b16 %v1789
      %v1941 = vunpack.c.l.b16 %v1790
      %v1942 = vunpack.c.l.b16 %v1791
      %v1943 = vunpack.c.l.b16 %v1792
      %v1944 = vunpack.c.l.b16 %v1793
      %v1945 = vunpack.c.l.b16 %v1794
      %v1946 = vunpack.c.l.b16 %v1795
      %v1947 = vunpack.c.l.b16 %v1796
      %v1948 = vunpack.c.l.b16 %v1797
      %v1949 = vunpack.c.l.b16 %v1798
      %v1950 = vunpack.c.l.b16 %v1799
      %v1951 = vunpack.c.l.b16 %v1800
      %v1952 = vunpack.c.l.b16 %v1801
      %v1953 = vunpack.c.l.b16 %v1802
      %v1954 = vunpack.c.l.b16 %v1803
      %v1955 = vunpack.c.l.b16 %v1804
      %v1956 = vunpack.c.l.b16 %v1805
      %v1957 = vunpack.c.l.b16 %v1806
      %v1958 = vunpack.c.l.b16 %v1807
      %v1959 = vunpack.c.l.b16 %v1808
      %v1960 = vunpack.c.l.b16 %v1809
      %v1961 = vunpack.c.l.b16 %v1810
      %v1962 = vunpack.c.l.b16 %v1811
      %v1963 = vunpack.c.l.b16 %v1812
      %v1964 = vunpack.c.l.b16 %v1813
      %v1965 = vunpack.c.l.b16 %v1814
      %v1966 = vunpack.c.l.b16 %v1815
      %v1967 = vunpack.c.l.b16 %v1816
      %v1968 = vunpack.c.l.b16 %v1817
      %v1969 = vpack.c.b16 %v1898, %v1897
      %v1970 = vpack.c.b16 %v1900, %v1899
      %v1971 = vpack.c.b16 %v1902, %v1901
      %v1972 = vpack.c.b16 %v1904, %v1903
      %v1973 = vpack.c.b16 %v1906, %v1905
      %v1974 = vpack.c.b16 %v1908, %v1907
      %v1975 = vpack.c.b16 %v1910, %v1909
      %v1976 = vpack.c.b16 %v1912, %v1911
      %v1977 = vpack.c.b16 %v1914, %v1913
      %v1978 = vpack.c.b16 %v1916, %v1915
      %v1979 = vpack.c.b16 %v1918, %v1917
      %v1980 = vpack.c.b16 %v1920, %v1919
      %v1981 = vpack.c.b16 %v1922, %v1921
      %v1982 = vpack.c.b16 %v1924, %v1923
      %v1983 = vpack.c.b16 %v1926, %v1925
      %v1984 = vpack.c.b16 %v1928, %v1927
      %v1985 = vpack.c.b16 %v1930, %v1929
      %v1986 = vpack.c.b16 %v1932, %v1931
      %v1987 = vpack.c.b16 %v1934, %v1933
      %v1988 = vpack.c.b16 %v1936, %v1935
      %v1989 = vpack.c.b16 %v1938, %v1937
      %v1990 = vpack.c.b16 %v1940, %v1939
      %v1991 = vpack.c.b16 %v1942, %v1941
      %v1992 = vpack.c.b16 %v1944, %v1943
      %v1993 = vpack.c.b16 %v1946, %v1945
      %v1994 = vpack.c.b16 %v1948, %v1947
      %v1995 = vpack.c.b16 %v1950, %v1949
      %v1996 = vpack.c.b16 %v1952, %v1951
      %v1997 = vpack.c.b16 %v1954, %v1953
      %v1998 = vpack.c.b16 %v1956, %v1955
      %v1999 = vpack.c.b16 %v1958, %v1957
      %v2000 = vpack.c.b16 %v1960, %v1959
      %v2001 = vpack.c.b16 %v1962, %v1961
      %v2002 = vpack.c.b16 %v1964, %v1963
      %v2003 = vpack.c.b16 %v1966, %v1965
      %v2004 = vpack.c.b16 %v1968, %v1967
      %v2042 = vsel %vm469, %v1730, 0
      %v2045 = vsel %vm469, %v1735, 0
      %v2048 = vsel %vm469, %v1740, 0
      %v2051 = vsel %vm469, %v1745, 0
      %2053 = vmatprep.subr.bf16.mxu0 0
      %2054 = vmatpush1.bf16.msra.mxu0 %v1976
      %2055 = vmatprep.subr.bf16.mxu0 0
      %2056 = vmatpush1.bf16.msra.mxu0 %v1975
      %2057 = vmatprep.subr.bf16.mxu0 0
      %2058 = vmatpush1.bf16.msra.mxu0 %v1974
      %2059 = vmatprep.subr.bf16.mxu0 0
      %2060 = vmatpush1.bf16.msra.mxu0 %v1973
      %2061 = vmatprep.subr.bf16.mxu0 0
      %2062 = vmatpush1.bf16.msra.mxu0 %v1972
      %2063 = vmatprep.subr.bf16.mxu0 0
      %2064 = vmatpush1.bf16.msra.mxu0 %v1971
      %2065 = vmatprep.subr.bf16.mxu0 0
      %2066 = vmatpush1.bf16.msra.mxu0 %v1970
      %2067 = vmatprep.subr.bf16.mxu0 0
      %2068 = vmatpush1.bf16.msra.mxu0 %v1969
      %2069 = vmatprep.subr.bf16.mxu0 0
      %2070 = vmatpush2.bf16.msra.mxu0 %v1984
      %2071 = vmatprep.subr.bf16.mxu0 0
      %2072 = vmatpush2.bf16.msra.mxu0 %v1983
      %2073 = vmatprep.subr.bf16.mxu0 0
      %2074 = vmatpush2.bf16.msra.mxu0 %v1982
      %2075 = vmatprep.subr.bf16.mxu0 0
      %2076 = vmatpush2.bf16.msra.mxu0 %v1981
      %2077 = vmatprep.subr.bf16.mxu0 0
      %2078 = vmatpush2.bf16.msra.mxu0 %v1980
      %2079 = vmatprep.subr.bf16.mxu0 0
      %2080 = vmatpush2.bf16.msra.mxu0 %v1979
      %2081 = vmatprep.subr.bf16.mxu0 0
      %2082 = vmatpush2.bf16.msra.mxu0 %v1978
      %2083 = vmatprep.subr.bf16.mxu0 0
      %2084 = vmatpush2.bf16.msra.mxu0 %v1977
      %2085 = vmatprep.mubr.bf16.mxu0 %v1727
      %2086 = vmatmul.mubr.bf16.gmra.mxu0 %v1726
      %v2087 = vpop.f32.mrf.mxu0
      %v2088 = vadd.f32 %v1823, %v2087
      %v2089 = vpop.f32.mrf.mxu0
      %v2090 = vpop.f32.mrf.mxu0
      %v2091 = vadd.f32 %v1823, %v2090
      %v2092 = vpop.f32.mrf.mxu0
      %2093 = vmatprep.mubr.bf16.mxu0 %v1732
      %2094 = vmatmul.mubr.bf16.gmra.mxu0 %v1731
      %v2095 = vpop.f32.mrf.mxu0
      %v2096 = vadd.f32 %v1823, %v2095
      %v2097 = vpop.f32.mrf.mxu0
      %v2098 = vpop.f32.mrf.mxu0
      %v2099 = vadd.f32 %v1823, %v2098
      %v2100 = vpop.f32.mrf.mxu0
      %2101 = vmatprep.mubr.bf16.mxu0 %v1737
      %2102 = vmatmul.mubr.bf16.gmra.mxu0 %v1736
      %v2103 = vpop.f32.mrf.mxu0
      %v2104 = vadd.f32 %v1823, %v2103
      %v2105 = vpop.f32.mrf.mxu0
      %v2106 = vpop.f32.mrf.mxu0
      %v2107 = vadd.f32 %v1823, %v2106
      %v2108 = vpop.f32.mrf.mxu0
      %2109 = vmatprep.mubr.bf16.mxu0 %v1742
      %2110 = vmatmul.mubr.bf16.gmra.mxu0 %v1741
      %v2111 = vpop.f32.mrf.mxu0
      %v2112 = vadd.f32 %v1823, %v2111
      %v2113 = vpop.f32.mrf.mxu0
      %v2114 = vpop.f32.mrf.mxu0
      %v2115 = vadd.f32 %v1823, %v2114
      %v2116 = vpop.f32.mrf.mxu0
      %2117 = vdwg.mxu0
      %2118 = vmatprep.subr.bf16.mxu0 0
      %2119 = vmatpush1.bf16.msra.mxu0 %v1992
      %2120 = vmatprep.subr.bf16.mxu0 0
      %2121 = vmatpush1.bf16.msra.mxu0 %v1991
      %2122 = vmatprep.subr.bf16.mxu0 0
      %2123 = vmatpush1.bf16.msra.mxu0 %v1990
      %2124 = vmatprep.subr.bf16.mxu0 0
      %2125 = vmatpush1.bf16.msra.mxu0 %v1989
      %2126 = vmatprep.subr.bf16.mxu0 0
      %2127 = vmatpush1.bf16.msra.mxu0 %v1988
      %2128 = vmatprep.subr.bf16.mxu0 0
      %2129 = vmatpush1.bf16.msra.mxu0 %v1987
      %2130 = vmatprep.subr.bf16.mxu0 0
      %2131 = vmatpush1.bf16.msra.mxu0 %v1986
      %2132 = vmatprep.subr.bf16.mxu0 0
      %2133 = vmatpush1.bf16.msra.mxu0 %v1985
      %2134 = vmatprep.subr.bf16.mxu0 0
      %2135 = vmatpush2.bf16.msra.mxu0 %v2000
      %2136 = vmatprep.subr.bf16.mxu0 0
      %2137 = vmatpush2.bf16.msra.mxu0 %v1999
      %2138 = vmatprep.subr.bf16.mxu0 0
      %2139 = vmatpush2.bf16.msra.mxu0 %v1998
      %2140 = vmatprep.subr.bf16.mxu0 0
      %2141 = vmatpush2.bf16.msra.mxu0 %v1997
      %2142 = vmatprep.subr.bf16.mxu0 0
      %2143 = vmatpush2.bf16.msra.mxu0 %v1996
      %2144 = vmatprep.subr.bf16.mxu0 0
      %2145 = vmatpush2.bf16.msra.mxu0 %v1995
      %2146 = vmatprep.subr.bf16.mxu0 0
      %2147 = vmatpush2.bf16.msra.mxu0 %v1994
      %2148 = vmatprep.subr.bf16.mxu0 0
      %2149 = vmatpush2.bf16.msra.mxu0 %v1993
      %2150 = vmatprep.mubr.bf16.mxu0 %v1729
      %2151 = vmatmul.mubr.bf16.gmra.mxu0 %v1728
      %v2152 = vpop.f32.mrf.mxu0
      %v2153 = vadd.f32 %v2088, %v2152
      %v2154 = vpop.f32.mrf.mxu0
      %v2155 = vpop.f32.mrf.mxu0
      %v2156 = vadd.f32 %v2091, %v2155
      %v2157 = vpop.f32.mrf.mxu0
      %2158 = vmatprep.mubr.bf16.mxu0 %v1734
      %2159 = vmatmul.mubr.bf16.gmra.mxu0 %v1733
      %v2160 = vpop.f32.mrf.mxu0
      %v2161 = vadd.f32 %v2096, %v2160
      %v2162 = vpop.f32.mrf.mxu0
      %v2163 = vpop.f32.mrf.mxu0
      %v2164 = vadd.f32 %v2099, %v2163
      %v2165 = vpop.f32.mrf.mxu0
      %2166 = vmatprep.mubr.bf16.mxu0 %v1739
      %2167 = vmatmul.mubr.bf16.gmra.mxu0 %v1738
      %v2168 = vpop.f32.mrf.mxu0
      %v2169 = vadd.f32 %v2104, %v2168
      %v2170 = vpop.f32.mrf.mxu0
      %v2171 = vpop.f32.mrf.mxu0
      %v2172 = vadd.f32 %v2107, %v2171
      %v2173 = vpop.f32.mrf.mxu0
      %2174 = vmatprep.mubr.bf16.mxu0 %v1744
      %2175 = vmatmul.mubr.bf16.gmra.mxu0 %v1743
      %v2176 = vpop.f32.mrf.mxu0
      %v2177 = vadd.f32 %v2112, %v2176
      %v2178 = vpop.f32.mrf.mxu0
      %v2179 = vpop.f32.mrf.mxu0
      %v2180 = vadd.f32 %v2115, %v2179
      %v2181 = vpop.f32.mrf.mxu0
      %2182 = vdwg.mxu0
      %2183 = vmatprep.subr.bf16.mxu0 0
      %2184 = vmatpush1.bf16.msra.mxu0 0
      %2185 = vmatprep.subr.bf16.mxu0 0
      %2186 = vmatpush1.bf16.msra.mxu0 0
      %2187 = vmatprep.subr.bf16.mxu0 0
      %2188 = vmatpush1.bf16.msra.mxu0 0
      %2189 = vmatprep.subr.bf16.mxu0 0
      %2190 = vmatpush1.bf16.msra.mxu0 0
      %2191 = vmatprep.subr.bf16.mxu0 0
      %2192 = vmatpush1.bf16.msra.mxu0 %v2004
      %2193 = vmatprep.subr.bf16.mxu0 0
      %2194 = vmatpush1.bf16.msra.mxu0 %v2003
      %2195 = vmatprep.subr.bf16.mxu0 0
      %2196 = vmatpush1.bf16.msra.mxu0 %v2002
      %2197 = vmatprep.subr.bf16.mxu0 0
      %2198 = vmatpush1.bf16.msra.mxu0 %v2001
      %2199 = vmatprep.subr.bf16.mxu0 0
      %2200 = vmatpush2.bf16.msra.mxu0 0
      %2201 = vmatprep.subr.bf16.mxu0 0
      %2202 = vmatpush2.bf16.msra.mxu0 0
      %2203 = vmatprep.subr.bf16.mxu0 0
      %2204 = vmatpush2.bf16.msra.mxu0 0
      %2205 = vmatprep.subr.bf16.mxu0 0
      %2206 = vmatpush2.bf16.msra.mxu0 0
      %2207 = vmatprep.subr.bf16.mxu0 0
      %2208 = vmatpush2.bf16.msra.mxu0 0
      %2209 = vmatprep.subr.bf16.mxu0 0
      %2210 = vmatpush2.bf16.msra.mxu0 0
      %2211 = vmatprep.subr.bf16.mxu0 0
      %2212 = vmatpush2.bf16.msra.mxu0 0
      %2213 = vmatprep.subr.bf16.mxu0 0
      %2214 = vmatpush2.bf16.msra.mxu0 0
      %2215 = vmatprep.mubr.bf16.mxu0 0
      %2216 = vmatmul.mubr.bf16.gmra.mxu0 %v2042
      %v2217 = vpop.f32.mrf.mxu0
      %v2218 = vadd.f32 %v2153, %v2217
      %v2219 = vpop.f32.mrf.mxu0
      %v2220 = vpop.f32.mrf.mxu0
      %v2221 = vadd.f32 %v2156, %v2220
      %v2222 = vpop.f32.mrf.mxu0
      %2223 = vmatprep.mubr.bf16.mxu0 0
      %2224 = vmatmul.mubr.bf16.gmra.mxu0 %v2045
      %v2225 = vpop.f32.mrf.mxu0
      %v2226 = vadd.f32 %v2161, %v2225
      %v2227 = vpop.f32.mrf.mxu0
      %v2228 = vpop.f32.mrf.mxu0
      %v2229 = vadd.f32 %v2164, %v2228
      %v2230 = vpop.f32.mrf.mxu0
      %2231 = vmatprep.mubr.bf16.mxu0 0
      %2232 = vmatmul.mubr.bf16.gmra.mxu0 %v2048
      %v2233 = vpop.f32.mrf.mxu0
      %v2234 = vadd.f32 %v2169, %v2233
      %v2235 = vpop.f32.mrf.mxu0
      %v2236 = vpop.f32.mrf.mxu0
      %v2237 = vadd.f32 %v2172, %v2236
      %v2238 = vpop.f32.mrf.mxu0
      %2239 = vmatprep.mubr.bf16.mxu0 0
      %2240 = vmatmul.mubr.bf16.gmra.mxu0 %v2051
      %v2241 = vpop.f32.mrf.mxu0
      %v2242 = vadd.f32 %v2177, %v2241
      %v2243 = vpop.f32.mrf.mxu0
      %v2244 = vpop.f32.mrf.mxu0
      %v2245 = vadd.f32 %v2180, %v2244
      %v2246 = vpop.f32.mrf.mxu0
      %2247 = vdwg.mxu0
      %vm2248 = vcmp.ge.f32.partialorder %v2218, 0.0
      %vm2249 = vcmp.ge.f32.partialorder %v2221, 0.0
      %vm2250 = vcmp.ge.f32.partialorder %v2226, 0.0
      %vm2251 = vcmp.ge.f32.partialorder %v2229, 0.0
      %vm2252 = vcmp.ge.f32.partialorder %v2234, 0.0
      %vm2253 = vcmp.ge.f32.partialorder %v2237, 0.0
      %vm2254 = vcmp.ge.f32.partialorder %v2242, 0.0
      %vm2255 = vcmp.ge.f32.partialorder %v2245, 0.0
      %v2256 = vmul.f32 %v2218, 0.1
      %v2257 = vmul.f32 %v2221, 0.1
      %v2258 = vmul.f32 %v2226, 0.1
      %v2259 = vmul.f32 %v2229, 0.1
      %v2260 = vmul.f32 %v2234, 0.1
      %v2261 = vmul.f32 %v2237, 0.1
      %v2262 = vmul.f32 %v2242, 0.1
      %v2263 = vmul.f32 %v2245, 0.1
      %v2264 = vsel %vm2248, %v2218, %v2256
      %v2265 = vsel %vm2249, %v2221, %v2257
      %v2266 = vsel %vm2250, %v2226, %v2258
      %v2267 = vsel %vm2251, %v2229, %v2259
      %v2268 = vsel %vm2252, %v2234, %v2260
      %v2269 = vsel %vm2253, %v2237, %v2261
      %v2270 = vsel %vm2254, %v2242, %v2262
      %v2271 = vsel %vm2255, %v2245, %v2263
      %2272 = vst.msk [vmem:[%s698 + $0x1] sm:$0xff] %vm469, %v2264
      %2273 = vst.msk [vmem:[%s698 + $0x11] sm:$0xff] %vm469, %v2265
      %2274 = vst.msk [vmem:[%s698 + $0x21] sm:$0xff] %vm469, %v2266
      %2275 = vst.msk [vmem:[%s698 + $0x31] sm:$0xff] %vm469, %v2267
      %2276 = vst.msk [vmem:[%s698 + $0x41] sm:$0xff] %vm469, %v2268
      %2277 = vst.msk [vmem:[%s698 + $0x51] sm:$0xff] %vm469, %v2269
      %2278 = vst.msk [vmem:[%s698 + $0x61] sm:$0xff] %vm469, %v2270
      %2279 = vst.msk [vmem:[%s698 + $0x71] sm:$0xff] %vm469, %v2271
      %v2280 = vld [vmem:[#allocation2] sm:$0xff]
      %v2281 = vld [vmem:[#allocation2 + $0x10] sm:$0xff]
      %v2282 = vld [vmem:[#allocation2 + $0x20] sm:$0xff]
      %v2283 = vld [vmem:[#allocation2 + $0x30] sm:$0xff]
      %v2284 = vld [vmem:[#allocation2 + $0x40] sm:$0xff]
      %v2285 = vld [vmem:[#allocation2 + $0x50] sm:$0xff]
      %v2286 = vld [vmem:[#allocation2 + $0x60] sm:$0xff]
      %v2287 = vld [vmem:[#allocation2 + $0x70] sm:$0xff]
      %v2288 = vld [vmem:[#allocation2 + $0x1] sm:$0xff]
      %v2289 = vld [vmem:[#allocation2 + $0x11] sm:$0xff]
      %v2290 = vld [vmem:[#allocation2 + $0x21] sm:$0xff]
      %v2291 = vld [vmem:[#allocation2 + $0x31] sm:$0xff]
      %v2292 = vld [vmem:[#allocation2 + $0x41] sm:$0xff]
      %v2293 = vld [vmem:[#allocation2 + $0x51] sm:$0xff]
      %v2294 = vld [vmem:[#allocation2 + $0x61] sm:$0xff]
      %v2295 = vld [vmem:[#allocation2 + $0x71] sm:$0xff]
      %v2296 = vld [vmem:[#allocation2 + $0x2] sm:$0xff]
      %v2297 = vld [vmem:[#allocation2 + $0x12] sm:$0xff]
      %v2298 = vld [vmem:[#allocation2 + $0x22] sm:$0xff]
      %v2299 = vld [vmem:[#allocation2 + $0x32] sm:$0xff]
      %v2300 = vld [vmem:[#allocation2 + $0x42] sm:$0xff]
      %v2301 = vld [vmem:[#allocation2 + $0x52] sm:$0xff]
      %v2302 = vld [vmem:[#allocation2 + $0x62] sm:$0xff]
      %v2303 = vld [vmem:[#allocation2 + $0x72] sm:$0xff]
      %v2304 = vld [vmem:[%s698] sm:$0xff]
      %v2305 = vld [vmem:[%s698 + $0x10] sm:$0xff]
      %v2306 = vld [vmem:[%s698 + $0x20] sm:$0xff]
      %v2307 = vld [vmem:[%s698 + $0x30] sm:$0xff]
      %v2308 = vld [vmem:[%s698 + $0x40] sm:$0xff]
      %v2309 = vld [vmem:[%s698 + $0x50] sm:$0xff]
      %v2310 = vld [vmem:[%s698 + $0x60] sm:$0xff]
      %v2311 = vld [vmem:[%s698 + $0x70] sm:$0xff]
      %v2312 = vld [vmem:[%s698 + $0x1] sm:$0xff]
      %v2313 = vld [vmem:[%s698 + $0x11] sm:$0xff]
      %v2314 = vld [vmem:[%s698 + $0x21] sm:$0xff]
      %v2315 = vld [vmem:[%s698 + $0x31] sm:$0xff]
      %v2316 = vld [vmem:[%s698 + $0x41] sm:$0xff]
      %v2317 = vld [vmem:[%s698 + $0x51] sm:$0xff]
      %v2318 = vld [vmem:[%s698 + $0x61] sm:$0xff]
      %v2319 = vld [vmem:[%s698 + $0x71] sm:$0xff]
      %v2320 = vld [vmem:[%s698 + $0x2] sm:$0xff]
      %v2321 = vld [vmem:[%s698 + $0x12] sm:$0xff]
      %v2322 = vld [vmem:[%s698 + $0x22] sm:$0xff]
      %v2323 = vld [vmem:[%s698 + $0x32] sm:$0xff]
      %v2324 = vld [vmem:[%s698 + $0x42] sm:$0xff]
      %v2325 = vld [vmem:[%s698 + $0x52] sm:$0xff]
      %v2326 = vld [vmem:[%s698 + $0x62] sm:$0xff]
      %v2327 = vld [vmem:[%s698 + $0x72] sm:$0xff]
      %v2328 = vld [vmem:[%s755] sm:$0xff]
      %v2329 = vld [vmem:[%s755 + $0x10] sm:$0xff]
      %v2330 = vld [vmem:[%s755 + $0x20] sm:$0xff]
      %v2331 = vld [vmem:[%s755 + $0x30] sm:$0xff]
      %v2332 = vld [vmem:[%s755 + $0x40] sm:$0xff]
      %v2333 = vld [vmem:[%s755 + $0x50] sm:$0xff]
      %v2334 = vld [vmem:[%s755 + $0x60] sm:$0xff]
      %v2335 = vld [vmem:[%s755 + $0x70] sm:$0xff]
      %v2336 = vld [vmem:[%s755 + $0x1] sm:$0xff]
      %v2337 = vld [vmem:[%s755 + $0x11] sm:$0xff]
      %v2338 = vld [vmem:[%s755 + $0x21] sm:$0xff]
      %v2339 = vld [vmem:[%s755 + $0x31] sm:$0xff]
      %v2340 = vld [vmem:[%s755 + $0x41] sm:$0xff]
      %v2341 = vld [vmem:[%s755 + $0x51] sm:$0xff]
      %v2342 = vld [vmem:[%s755 + $0x61] sm:$0xff]
      %v2343 = vld [vmem:[%s755 + $0x71] sm:$0xff]
      %v2344 = vld [vmem:[%s755 + $0x2] sm:$0xff]
      %v2345 = vld [vmem:[%s755 + $0x12] sm:$0xff]
      %v2346 = vld [vmem:[%s755 + $0x22] sm:$0xff]
      %v2347 = vld [vmem:[%s755 + $0x32] sm:$0xff]
      %v2348 = vld [vmem:[%s755 + $0x42] sm:$0xff]
      %v2349 = vld [vmem:[%s755 + $0x52] sm:$0xff]
      %v2350 = vld [vmem:[%s755 + $0x62] sm:$0xff]
      %v2351 = vld [vmem:[%s755 + $0x72] sm:$0xff]
      %2360 = vrot.lane.b32.xlu0 %v2288, 64
      %v2361 = vpop.permute.xlu0 %2360
      %2362 = vrot.lane.b32.xlu0 %v2289, 64
      %v2363 = vpop.permute.xlu0 %2362
      %2364 = vrot.lane.b32.xlu0 %v2290, 64
      %v2365 = vpop.permute.xlu0 %2364
      %2366 = vrot.lane.b32.xlu0 %v2291, 64
      %v2367 = vpop.permute.xlu0 %2366
      %2368 = vrot.lane.b32.xlu0 %v2292, 64
      %v2369 = vpop.permute.xlu0 %2368
      %2370 = vrot.lane.b32.xlu0 %v2293, 64
      %v2371 = vpop.permute.xlu0 %2370
      %2372 = vrot.lane.b32.xlu0 %v2294, 64
      %v2373 = vpop.permute.xlu0 %2372
      %2374 = vrot.lane.b32.xlu0 %v2295, 64
      %v2375 = vpop.permute.xlu0 %2374
      %2392 = vrot.lane.b32.xlu0 %v2304, 64
      %v2393 = vpop.permute.xlu0 %2392
      %2394 = vrot.lane.b32.xlu0 %v2305, 64
      %v2395 = vpop.permute.xlu0 %2394
      %2396 = vrot.lane.b32.xlu0 %v2306, 64
      %v2397 = vpop.permute.xlu0 %2396
      %2398 = vrot.lane.b32.xlu0 %v2307, 64
      %v2399 = vpop.permute.xlu0 %2398
      %2400 = vrot.lane.b32.xlu0 %v2308, 64
      %v2401 = vpop.permute.xlu0 %2400
      %2402 = vrot.lane.b32.xlu0 %v2309, 64
      %v2403 = vpop.permute.xlu0 %2402
      %2404 = vrot.lane.b32.xlu0 %v2310, 64
      %v2405 = vpop.permute.xlu0 %2404
      %2406 = vrot.lane.b32.xlu0 %v2311, 64
      %v2407 = vpop.permute.xlu0 %2406
      %2424 = vrot.lane.b32.xlu0 %v2320, 64
      %v2425 = vpop.permute.xlu0 %2424
      %2426 = vrot.lane.b32.xlu0 %v2321, 64
      %v2427 = vpop.permute.xlu0 %2426
      %2428 = vrot.lane.b32.xlu0 %v2322, 64
      %v2429 = vpop.permute.xlu0 %2428
      %2430 = vrot.lane.b32.xlu0 %v2323, 64
      %v2431 = vpop.permute.xlu0 %2430
      %2432 = vrot.lane.b32.xlu0 %v2324, 64
      %v2433 = vpop.permute.xlu0 %2432
      %2434 = vrot.lane.b32.xlu0 %v2325, 64
      %v2435 = vpop.permute.xlu0 %2434
      %2436 = vrot.lane.b32.xlu0 %v2326, 64
      %v2437 = vpop.permute.xlu0 %2436
      %2438 = vrot.lane.b32.xlu0 %v2327, 64
      %v2439 = vpop.permute.xlu0 %2438
      %2456 = vrot.lane.b32.xlu0 %v2336, 64
      %v2457 = vpop.permute.xlu0 %2456
      %2458 = vrot.lane.b32.xlu0 %v2337, 64
      %v2459 = vpop.permute.xlu0 %2458
      %2460 = vrot.lane.b32.xlu0 %v2338, 64
      %v2461 = vpop.permute.xlu0 %2460
      %2462 = vrot.lane.b32.xlu0 %v2339, 64
      %v2463 = vpop.permute.xlu0 %2462
      %2464 = vrot.lane.b32.xlu0 %v2340, 64
      %v2465 = vpop.permute.xlu0 %2464
      %2466 = vrot.lane.b32.xlu0 %v2341, 64
      %v2467 = vpop.permute.xlu0 %2466
      %2468 = vrot.lane.b32.xlu0 %v2342, 64
      %v2469 = vpop.permute.xlu0 %2468
      %2470 = vrot.lane.b32.xlu0 %v2343, 64
      %v2471 = vpop.permute.xlu0 %2470
      %v2480 = vsel %vm469, %v2280, %v2361
      %v2481 = vsel %vm469, %v2281, %v2363
      %v2482 = vsel %vm469, %v2282, %v2365
      %v2483 = vsel %vm469, %v2283, %v2367
      %v2484 = vsel %vm469, %v2284, %v2369
      %v2485 = vsel %vm469, %v2285, %v2371
      %v2486 = vsel %vm469, %v2286, %v2373
      %v2487 = vsel %vm469, %v2287, %v2375
      %v2488 = vsel %vm469, %v2296, %v2393
      %v2489 = vsel %vm469, %v2297, %v2395
      %v2490 = vsel %vm469, %v2298, %v2397
      %v2491 = vsel %vm469, %v2299, %v2399
      %v2492 = vsel %vm469, %v2300, %v2401
      %v2493 = vsel %vm469, %v2301, %v2403
      %v2494 = vsel %vm469, %v2302, %v2405
      %v2495 = vsel %vm469, %v2303, %v2407
      %v2496 = vsel %vm469, %v2312, %v2425
      %v2497 = vsel %vm469, %v2313, %v2427
      %v2498 = vsel %vm469, %v2314, %v2429
      %v2499 = vsel %vm469, %v2315, %v2431
      %v2500 = vsel %vm469, %v2316, %v2433
      %v2501 = vsel %vm469, %v2317, %v2435
      %v2502 = vsel %vm469, %v2318, %v2437
      %v2503 = vsel %vm469, %v2319, %v2439
      %v2504 = vsel %vm469, %v2328, %v2457
      %v2505 = vsel %vm469, %v2329, %v2459
      %v2506 = vsel %vm469, %v2330, %v2461
      %v2507 = vsel %vm469, %v2331, %v2463
      %v2508 = vsel %vm469, %v2332, %v2465
      %v2509 = vsel %vm469, %v2333, %v2467
      %v2510 = vsel %vm469, %v2334, %v2469
      %v2511 = vsel %vm469, %v2335, %v2471
      %v2512 = vpack.c.bf16 %v2481, %v2480
      %v2513 = vpack.c.bf16 %v2489, %v2488
      %v2514 = vpack.c.bf16 %v2497, %v2496
      %v2515 = vpack.c.bf16 %v2505, %v2504
      %v2516 = vpack.c.bf16 %v2345, %v2344
      %v2517 = vpack.c.bf16 %v2483, %v2482
      %v2518 = vpack.c.bf16 %v2491, %v2490
      %v2519 = vpack.c.bf16 %v2499, %v2498
      %v2520 = vpack.c.bf16 %v2507, %v2506
      %v2521 = vpack.c.bf16 %v2347, %v2346
      %v2522 = vpack.c.bf16 %v2485, %v2484
      %v2523 = vpack.c.bf16 %v2493, %v2492
      %v2524 = vpack.c.bf16 %v2501, %v2500
      %v2525 = vpack.c.bf16 %v2509, %v2508
      %v2526 = vpack.c.bf16 %v2349, %v2348
      %v2527 = vpack.c.bf16 %v2487, %v2486
      %v2528 = vpack.c.bf16 %v2495, %v2494
      %v2529 = vpack.c.bf16 %v2503, %v2502
      %v2530 = vpack.c.bf16 %v2511, %v2510
      %v2531 = vpack.c.bf16 %v2351, %v2350
      %v2532 = vld [vmem:[%s7] sm:$0xf]
      %v2533 = vld [vmem:[%s7 + $0x4] sm:$0xf]
      %v2534 = vld [vmem:[%s7 + $0x8] sm:$0xf]
      %v2535 = vld [vmem:[%s7 + $0xc] sm:$0xf]
      %v2536 = vld [vmem:[%s7 + $0x10] sm:$0xf]
      %v2537 = vld [vmem:[%s7 + $0x14] sm:$0xf]
      %v2538 = vld [vmem:[%s7 + $0x18] sm:$0xf]
      %v2539 = vld [vmem:[%s7 + $0x1c] sm:$0xf]
      %v2540 = vld [vmem:[%s7 + $0x20] sm:$0xf]
      %v2541 = vld [vmem:[%s7 + $0x24] sm:$0xf]
      %v2542 = vld [vmem:[%s7 + $0x28] sm:$0xf]
      %v2543 = vld [vmem:[%s7 + $0x2c] sm:$0xf]
      %v2544 = vld [vmem:[%s7 + $0x30] sm:$0xf]
      %v2545 = vld [vmem:[%s7 + $0x34] sm:$0xf]
      %v2546 = vld [vmem:[%s7 + $0x38] sm:$0xf]
      %v2547 = vld [vmem:[%s7 + $0x3c] sm:$0xf]
      %v2548 = vld [vmem:[%s7 + $0x40] sm:$0xf]
      %v2549 = vld [vmem:[%s7 + $0x44] sm:$0xf]
      %v2550 = vld [vmem:[%s7 + $0x48] sm:$0xf]
      %v2551 = vld [vmem:[%s7 + $0x4c] sm:$0xf]
      %v2552 = vld [vmem:[%s7 + $0x50] sm:$0xf]
      %v2553 = vld [vmem:[%s7 + $0x54] sm:$0xf]
      %v2554 = vld [vmem:[%s7 + $0x58] sm:$0xf]
      %v2555 = vld [vmem:[%s7 + $0x5c] sm:$0xf]
      %v2556 = vld [vmem:[%s7 + $0x60] sm:$0xf]
      %v2557 = vld [vmem:[%s7 + $0x64] sm:$0xf]
      %v2558 = vld [vmem:[%s7 + $0x68] sm:$0xf]
      %v2559 = vld [vmem:[%s7 + $0x6c] sm:$0xf]
      %v2560 = vld [vmem:[%s7 + $0x70] sm:$0xf]
      %v2561 = vld [vmem:[%s7 + $0x74] sm:$0xf]
      %v2562 = vld [vmem:[%s7 + $0x78] sm:$0xf]
      %v2563 = vld [vmem:[%s7 + $0x7c] sm:$0xf]
      %v2564 = vld [vmem:[%s7 + $0x80] sm:$0xf]
      %v2565 = vld [vmem:[%s7 + $0x84] sm:$0xf]
      %v2566 = vld [vmem:[%s7 + $0x88] sm:$0xf]
      %v2567 = vld [vmem:[%s7 + $0x8c] sm:$0xf]
      %v2568 = vld [vmem:[%s7 + $0x90] sm:$0xf]
      %v2569 = vld [vmem:[%s7 + $0x94] sm:$0xf]
      %v2570 = vld [vmem:[%s7 + $0x98] sm:$0xf]
      %v2571 = vld [vmem:[%s7 + $0x9c] sm:$0xf]
      %v2572 = vld [vmem:[%s7 + $0xa0] sm:$0xf]
      %v2573 = vld [vmem:[%s7 + $0xa4] sm:$0xf]
      %v2574 = vld [vmem:[%s7 + $0xa8] sm:$0xf]
      %v2575 = vld [vmem:[%s7 + $0xac] sm:$0xf]
      %v2576 = vld [vmem:[%s7 + $0xb0] sm:$0xf]
      %v2577 = vld [vmem:[%s7 + $0xb4] sm:$0xf]
      %v2578 = vld [vmem:[%s7 + $0xb8] sm:$0xf]
      %v2579 = vld [vmem:[%s7 + $0xbc] sm:$0xf]
      %v2580 = vld [vmem:[%s7 + $0xc0] sm:$0xf]
      %v2581 = vld [vmem:[%s7 + $0xc4] sm:$0xf]
      %v2582 = vld [vmem:[%s7 + $0xc8] sm:$0xf]
      %v2583 = vld [vmem:[%s7 + $0xcc] sm:$0xf]
      %v2584 = vld [vmem:[%s7 + $0xd0] sm:$0xf]
      %v2585 = vld [vmem:[%s7 + $0xd4] sm:$0xf]
      %v2586 = vld [vmem:[%s7 + $0xd8] sm:$0xf]
      %v2587 = vld [vmem:[%s7 + $0xdc] sm:$0xf]
      %v2588 = vld [vmem:[%s7 + $0xe0] sm:$0xf]
      %v2589 = vld [vmem:[%s7 + $0xe4] sm:$0xf]
      %v2590 = vld [vmem:[%s7 + $0xe8] sm:$0xf]
      %v2591 = vld [vmem:[%s7 + $0xec] sm:$0xf]
      %v2592 = vld [vmem:[%s7 + $0xf0] sm:$0xf]
      %v2593 = vld [vmem:[%s7 + $0xf4] sm:$0xf]
      %v2594 = vld [vmem:[%s7 + $0xf8] sm:$0xf]
      %v2595 = vld [vmem:[%s7 + $0xfc] sm:$0xf]
      %v2596 = vld [vmem:[%s7 + $0x100] sm:$0xf]
      %v2597 = vld [vmem:[%s7 + $0x104] sm:$0xf]
      %v2598 = vld [vmem:[%s7 + $0x108] sm:$0xf]
      %v2599 = vld [vmem:[%s7 + $0x10c] sm:$0xf]
      %v2600 = vld [vmem:[%s7 + $0x110] sm:$0xf]
      %v2601 = vld [vmem:[%s7 + $0x114] sm:$0xf]
      %v2602 = vld [vmem:[%s7 + $0x118] sm:$0xf]
      %v2603 = vld [vmem:[%s7 + $0x11c] sm:$0xf]
      %v2604 = vld [vmem:[%s8] sm:$0x1]
      %v2606 = vlaneseq
      %v2607 = vshrl.u32 %v2606, 7
      %v2608 = vsub.s32 0, %v2607
      %v2609 = vrot.slane %v2604, %v2608
      %v2683 = vunpack.c.l.b16 %v2532
      %v2684 = vunpack.c.l.b16 %v2533
      %v2685 = vunpack.c.l.b16 %v2534
      %v2686 = vunpack.c.l.b16 %v2535
      %v2687 = vunpack.c.l.b16 %v2536
      %v2688 = vunpack.c.l.b16 %v2537
      %v2689 = vunpack.c.l.b16 %v2538
      %v2690 = vunpack.c.l.b16 %v2539
      %v2691 = vunpack.c.l.b16 %v2540
      %v2692 = vunpack.c.l.b16 %v2541
      %v2693 = vunpack.c.l.b16 %v2542
      %v2694 = vunpack.c.l.b16 %v2543
      %v2695 = vunpack.c.l.b16 %v2544
      %v2696 = vunpack.c.l.b16 %v2545
      %v2697 = vunpack.c.l.b16 %v2546
      %v2698 = vunpack.c.l.b16 %v2547
      %v2699 = vunpack.c.l.b16 %v2548
      %v2700 = vunpack.c.l.b16 %v2549
      %v2701 = vunpack.c.l.b16 %v2550
      %v2702 = vunpack.c.l.b16 %v2551
      %v2703 = vunpack.c.l.b16 %v2552
      %v2704 = vunpack.c.l.b16 %v2553
      %v2705 = vunpack.c.l.b16 %v2554
      %v2706 = vunpack.c.l.b16 %v2555
      %v2707 = vunpack.c.l.b16 %v2556
      %v2708 = vunpack.c.l.b16 %v2557
      %v2709 = vunpack.c.l.b16 %v2558
      %v2710 = vunpack.c.l.b16 %v2559
      %v2711 = vunpack.c.l.b16 %v2560
      %v2712 = vunpack.c.l.b16 %v2561
      %v2713 = vunpack.c.l.b16 %v2562
      %v2714 = vunpack.c.l.b16 %v2563
      %v2715 = vunpack.c.l.b16 %v2564
      %v2716 = vunpack.c.l.b16 %v2565
      %v2717 = vunpack.c.l.b16 %v2566
      %v2718 = vunpack.c.l.b16 %v2567
      %v2719 = vunpack.c.l.b16 %v2568
      %v2720 = vunpack.c.l.b16 %v2569
      %v2721 = vunpack.c.l.b16 %v2570
      %v2722 = vunpack.c.l.b16 %v2571
      %v2723 = vunpack.c.l.b16 %v2572
      %v2724 = vunpack.c.l.b16 %v2573
      %v2725 = vunpack.c.l.b16 %v2574
      %v2726 = vunpack.c.l.b16 %v2575
      %v2727 = vunpack.c.l.b16 %v2576
      %v2728 = vunpack.c.l.b16 %v2577
      %v2729 = vunpack.c.l.b16 %v2578
      %v2730 = vunpack.c.l.b16 %v2579
      %v2731 = vunpack.c.l.b16 %v2580
      %v2732 = vunpack.c.l.b16 %v2581
      %v2733 = vunpack.c.l.b16 %v2582
      %v2734 = vunpack.c.l.b16 %v2583
      %v2735 = vunpack.c.l.b16 %v2584
      %v2736 = vunpack.c.l.b16 %v2585
      %v2737 = vunpack.c.l.b16 %v2586
      %v2738 = vunpack.c.l.b16 %v2587
      %v2739 = vunpack.c.l.b16 %v2588
      %v2740 = vunpack.c.l.b16 %v2589
      %v2741 = vunpack.c.l.b16 %v2590
      %v2742 = vunpack.c.l.b16 %v2591
      %v2743 = vunpack.c.l.b16 %v2592
      %v2744 = vunpack.c.l.b16 %v2593
      %v2745 = vunpack.c.l.b16 %v2594
      %v2746 = vunpack.c.l.b16 %v2595
      %v2747 = vunpack.c.l.b16 %v2596
      %v2748 = vunpack.c.l.b16 %v2597
      %v2749 = vunpack.c.l.b16 %v2598
      %v2750 = vunpack.c.l.b16 %v2599
      %v2751 = vunpack.c.l.b16 %v2600
      %v2752 = vunpack.c.l.b16 %v2601
      %v2753 = vunpack.c.l.b16 %v2602
      %v2754 = vunpack.c.l.b16 %v2603
      %v2755 = vpack.c.b16 %v2684, %v2683
      %v2756 = vpack.c.b16 %v2686, %v2685
      %v2757 = vpack.c.b16 %v2688, %v2687
      %v2758 = vpack.c.b16 %v2690, %v2689
      %v2759 = vpack.c.b16 %v2692, %v2691
      %v2760 = vpack.c.b16 %v2694, %v2693
      %v2761 = vpack.c.b16 %v2696, %v2695
      %v2762 = vpack.c.b16 %v2698, %v2697
      %v2763 = vpack.c.b16 %v2700, %v2699
      %v2764 = vpack.c.b16 %v2702, %v2701
      %v2765 = vpack.c.b16 %v2704, %v2703
      %v2766 = vpack.c.b16 %v2706, %v2705
      %v2767 = vpack.c.b16 %v2708, %v2707
      %v2768 = vpack.c.b16 %v2710, %v2709
      %v2769 = vpack.c.b16 %v2712, %v2711
      %v2770 = vpack.c.b16 %v2714, %v2713
      %v2771 = vpack.c.b16 %v2716, %v2715
      %v2772 = vpack.c.b16 %v2718, %v2717
      %v2773 = vpack.c.b16 %v2720, %v2719
      %v2774 = vpack.c.b16 %v2722, %v2721
      %v2775 = vpack.c.b16 %v2724, %v2723
      %v2776 = vpack.c.b16 %v2726, %v2725
      %v2777 = vpack.c.b16 %v2728, %v2727
      %v2778 = vpack.c.b16 %v2730, %v2729
      %v2779 = vpack.c.b16 %v2732, %v2731
      %v2780 = vpack.c.b16 %v2734, %v2733
      %v2781 = vpack.c.b16 %v2736, %v2735
      %v2782 = vpack.c.b16 %v2738, %v2737
      %v2783 = vpack.c.b16 %v2740, %v2739
      %v2784 = vpack.c.b16 %v2742, %v2741
      %v2785 = vpack.c.b16 %v2744, %v2743
      %v2786 = vpack.c.b16 %v2746, %v2745
      %v2787 = vpack.c.b16 %v2748, %v2747
      %v2788 = vpack.c.b16 %v2750, %v2749
      %v2789 = vpack.c.b16 %v2752, %v2751
      %v2790 = vpack.c.b16 %v2754, %v2753
      %v2828 = vsel %vm469, %v2516, 0
      %v2831 = vsel %vm469, %v2521, 0
      %v2834 = vsel %vm469, %v2526, 0
      %v2837 = vsel %vm469, %v2531, 0
      %2839 = vmatprep.subr.bf16.mxu0 0
      %2840 = vmatpush1.bf16.msra.mxu0 %v2762
      %2841 = vmatprep.subr.bf16.mxu0 0
      %2842 = vmatpush1.bf16.msra.mxu0 %v2761
      %2843 = vmatprep.subr.bf16.mxu0 0
      %2844 = vmatpush1.bf16.msra.mxu0 %v2760
      %2845 = vmatprep.subr.bf16.mxu0 0
      %2846 = vmatpush1.bf16.msra.mxu0 %v2759
      %2847 = vmatprep.subr.bf16.mxu0 0
      %2848 = vmatpush1.bf16.msra.mxu0 %v2758
      %2849 = vmatprep.subr.bf16.mxu0 0
      %2850 = vmatpush1.bf16.msra.mxu0 %v2757
      %2851 = vmatprep.subr.bf16.mxu0 0
      %2852 = vmatpush1.bf16.msra.mxu0 %v2756
      %2853 = vmatprep.subr.bf16.mxu0 0
      %2854 = vmatpush1.bf16.msra.mxu0 %v2755
      %2855 = vmatprep.subr.bf16.mxu0 0
      %2856 = vmatpush2.bf16.msra.mxu0 %v2770
      %2857 = vmatprep.subr.bf16.mxu0 0
      %2858 = vmatpush2.bf16.msra.mxu0 %v2769
      %2859 = vmatprep.subr.bf16.mxu0 0
      %2860 = vmatpush2.bf16.msra.mxu0 %v2768
      %2861 = vmatprep.subr.bf16.mxu0 0
      %2862 = vmatpush2.bf16.msra.mxu0 %v2767
      %2863 = vmatprep.subr.bf16.mxu0 0
      %2864 = vmatpush2.bf16.msra.mxu0 %v2766
      %2865 = vmatprep.subr.bf16.mxu0 0
      %2866 = vmatpush2.bf16.msra.mxu0 %v2765
      %2867 = vmatprep.subr.bf16.mxu0 0
      %2868 = vmatpush2.bf16.msra.mxu0 %v2764
      %2869 = vmatprep.subr.bf16.mxu0 0
      %2870 = vmatpush2.bf16.msra.mxu0 %v2763
      %2871 = vmatprep.mubr.bf16.mxu0 %v2513
      %2872 = vmatmul.mubr.bf16.gmra.mxu0 %v2512
      %v2873 = vpop.f32.mrf.mxu0
      %v2874 = vadd.f32 %v2609, %v2873
      %v2875 = vpop.f32.mrf.mxu0
      %v2876 = vpop.f32.mrf.mxu0
      %v2877 = vadd.f32 %v2609, %v2876
      %v2878 = vpop.f32.mrf.mxu0
      %2879 = vmatprep.mubr.bf16.mxu0 %v2518
      %2880 = vmatmul.mubr.bf16.gmra.mxu0 %v2517
      %v2881 = vpop.f32.mrf.mxu0
      %v2882 = vadd.f32 %v2609, %v2881
      %v2883 = vpop.f32.mrf.mxu0
      %v2884 = vpop.f32.mrf.mxu0
      %v2885 = vadd.f32 %v2609, %v2884
      %v2886 = vpop.f32.mrf.mxu0
      %2887 = vmatprep.mubr.bf16.mxu0 %v2523
      %2888 = vmatmul.mubr.bf16.gmra.mxu0 %v2522
      %v2889 = vpop.f32.mrf.mxu0
      %v2890 = vadd.f32 %v2609, %v2889
      %v2891 = vpop.f32.mrf.mxu0
      %v2892 = vpop.f32.mrf.mxu0
      %v2893 = vadd.f32 %v2609, %v2892
      %v2894 = vpop.f32.mrf.mxu0
      %2895 = vmatprep.mubr.bf16.mxu0 %v2528
      %2896 = vmatmul.mubr.bf16.gmra.mxu0 %v2527
      %v2897 = vpop.f32.mrf.mxu0
      %v2898 = vadd.f32 %v2609, %v2897
      %v2899 = vpop.f32.mrf.mxu0
      %v2900 = vpop.f32.mrf.mxu0
      %v2901 = vadd.f32 %v2609, %v2900
      %v2902 = vpop.f32.mrf.mxu0
      %2903 = vdwg.mxu0
      %2904 = vmatprep.subr.bf16.mxu0 0
      %2905 = vmatpush1.bf16.msra.mxu0 %v2778
      %2906 = vmatprep.subr.bf16.mxu0 0
      %2907 = vmatpush1.bf16.msra.mxu0 %v2777
      %2908 = vmatprep.subr.bf16.mxu0 0
      %2909 = vmatpush1.bf16.msra.mxu0 %v2776
      %2910 = vmatprep.subr.bf16.mxu0 0
      %2911 = vmatpush1.bf16.msra.mxu0 %v2775
      %2912 = vmatprep.subr.bf16.mxu0 0
      %2913 = vmatpush1.bf16.msra.mxu0 %v2774
      %2914 = vmatprep.subr.bf16.mxu0 0
      %2915 = vmatpush1.bf16.msra.mxu0 %v2773
      %2916 = vmatprep.subr.bf16.mxu0 0
      %2917 = vmatpush1.bf16.msra.mxu0 %v2772
      %2918 = vmatprep.subr.bf16.mxu0 0
      %2919 = vmatpush1.bf16.msra.mxu0 %v2771
      %2920 = vmatprep.subr.bf16.mxu0 0
      %2921 = vmatpush2.bf16.msra.mxu0 %v2786
      %2922 = vmatprep.subr.bf16.mxu0 0
      %2923 = vmatpush2.bf16.msra.mxu0 %v2785
      %2924 = vmatprep.subr.bf16.mxu0 0
      %2925 = vmatpush2.bf16.msra.mxu0 %v2784
      %2926 = vmatprep.subr.bf16.mxu0 0
      %2927 = vmatpush2.bf16.msra.mxu0 %v2783
      %2928 = vmatprep.subr.bf16.mxu0 0
      %2929 = vmatpush2.bf16.msra.mxu0 %v2782
      %2930 = vmatprep.subr.bf16.mxu0 0
      %2931 = vmatpush2.bf16.msra.mxu0 %v2781
      %2932 = vmatprep.subr.bf16.mxu0 0
      %2933 = vmatpush2.bf16.msra.mxu0 %v2780
      %2934 = vmatprep.subr.bf16.mxu0 0
      %2935 = vmatpush2.bf16.msra.mxu0 %v2779
      %2936 = vmatprep.mubr.bf16.mxu0 %v2515
      %2937 = vmatmul.mubr.bf16.gmra.mxu0 %v2514
      %v2938 = vpop.f32.mrf.mxu0
      %v2939 = vadd.f32 %v2874, %v2938
      %v2940 = vpop.f32.mrf.mxu0
      %v2941 = vpop.f32.mrf.mxu0
      %v2942 = vadd.f32 %v2877, %v2941
      %v2943 = vpop.f32.mrf.mxu0
      %2944 = vmatprep.mubr.bf16.mxu0 %v2520
      %2945 = vmatmul.mubr.bf16.gmra.mxu0 %v2519
      %v2946 = vpop.f32.mrf.mxu0
      %v2947 = vadd.f32 %v2882, %v2946
      %v2948 = vpop.f32.mrf.mxu0
      %v2949 = vpop.f32.mrf.mxu0
      %v2950 = vadd.f32 %v2885, %v2949
      %v2951 = vpop.f32.mrf.mxu0
      %2952 = vmatprep.mubr.bf16.mxu0 %v2525
      %2953 = vmatmul.mubr.bf16.gmra.mxu0 %v2524
      %v2954 = vpop.f32.mrf.mxu0
      %v2955 = vadd.f32 %v2890, %v2954
      %v2956 = vpop.f32.mrf.mxu0
      %v2957 = vpop.f32.mrf.mxu0
      %v2958 = vadd.f32 %v2893, %v2957
      %v2959 = vpop.f32.mrf.mxu0
      %2960 = vmatprep.mubr.bf16.mxu0 %v2530
      %2961 = vmatmul.mubr.bf16.gmra.mxu0 %v2529
      %v2962 = vpop.f32.mrf.mxu0
      %v2963 = vadd.f32 %v2898, %v2962
      %v2964 = vpop.f32.mrf.mxu0
      %v2965 = vpop.f32.mrf.mxu0
      %v2966 = vadd.f32 %v2901, %v2965
      %v2967 = vpop.f32.mrf.mxu0
      %2968 = vdwg.mxu0
      %2969 = vmatprep.subr.bf16.mxu0 0
      %2970 = vmatpush1.bf16.msra.mxu0 0
      %2971 = vmatprep.subr.bf16.mxu0 0
      %2972 = vmatpush1.bf16.msra.mxu0 0
      %2973 = vmatprep.subr.bf16.mxu0 0
      %2974 = vmatpush1.bf16.msra.mxu0 0
      %2975 = vmatprep.subr.bf16.mxu0 0
      %2976 = vmatpush1.bf16.msra.mxu0 0
      %2977 = vmatprep.subr.bf16.mxu0 0
      %2978 = vmatpush1.bf16.msra.mxu0 %v2790
      %2979 = vmatprep.subr.bf16.mxu0 0
      %2980 = vmatpush1.bf16.msra.mxu0 %v2789
      %2981 = vmatprep.subr.bf16.mxu0 0
      %2982 = vmatpush1.bf16.msra.mxu0 %v2788
      %2983 = vmatprep.subr.bf16.mxu0 0
      %2984 = vmatpush1.bf16.msra.mxu0 %v2787
      %2985 = vmatprep.subr.bf16.mxu0 0
      %2986 = vmatpush2.bf16.msra.mxu0 0
      %2987 = vmatprep.subr.bf16.mxu0 0
      %2988 = vmatpush2.bf16.msra.mxu0 0
      %2989 = vmatprep.subr.bf16.mxu0 0
      %2990 = vmatpush2.bf16.msra.mxu0 0
      %2991 = vmatprep.subr.bf16.mxu0 0
      %2992 = vmatpush2.bf16.msra.mxu0 0
      %2993 = vmatprep.subr.bf16.mxu0 0
      %2994 = vmatpush2.bf16.msra.mxu0 0
      %2995 = vmatprep.subr.bf16.mxu0 0
      %2996 = vmatpush2.bf16.msra.mxu0 0
      %2997 = vmatprep.subr.bf16.mxu0 0
      %2998 = vmatpush2.bf16.msra.mxu0 0
      %2999 = vmatprep.subr.bf16.mxu0 0
      %3000 = vmatpush2.bf16.msra.mxu0 0
      %3001 = vmatprep.mubr.bf16.mxu0 0
      %3002 = vmatmul.mubr.bf16.gmra.mxu0 %v2828
      %v3003 = vpop.f32.mrf.mxu0
      %v3004 = vadd.f32 %v2939, %v3003
      %v3005 = vpop.f32.mrf.mxu0
      %v3006 = vpop.f32.mrf.mxu0
      %v3007 = vadd.f32 %v2942, %v3006
      %v3008 = vpop.f32.mrf.mxu0
      %3009 = vmatprep.mubr.bf16.mxu0 0
      %3010 = vmatmul.mubr.bf16.gmra.mxu0 %v2831
      %v3011 = vpop.f32.mrf.mxu0
      %v3012 = vadd.f32 %v2947, %v3011
      %v3013 = vpop.f32.mrf.mxu0
      %v3014 = vpop.f32.mrf.mxu0
      %v3015 = vadd.f32 %v2950, %v3014
      %v3016 = vpop.f32.mrf.mxu0
      %3017 = vmatprep.mubr.bf16.mxu0 0
      %3018 = vmatmul.mubr.bf16.gmra.mxu0 %v2834
      %v3019 = vpop.f32.mrf.mxu0
      %v3020 = vadd.f32 %v2955, %v3019
      %v3021 = vpop.f32.mrf.mxu0
      %v3022 = vpop.f32.mrf.mxu0
      %v3023 = vadd.f32 %v2958, %v3022
      %v3024 = vpop.f32.mrf.mxu0
      %3025 = vmatprep.mubr.bf16.mxu0 0
      %3026 = vmatmul.mubr.bf16.gmra.mxu0 %v2837
      %v3027 = vpop.f32.mrf.mxu0
      %v3028 = vadd.f32 %v2963, %v3027
      %v3029 = vpop.f32.mrf.mxu0
      %v3030 = vpop.f32.mrf.mxu0
      %v3031 = vadd.f32 %v2966, %v3030
      %v3032 = vpop.f32.mrf.mxu0
      %3033 = vdwg.mxu0
      %vm3034 = vcmp.ge.f32.partialorder %v3004, 0.0
      %vm3035 = vcmp.ge.f32.partialorder %v3007, 0.0
      %vm3036 = vcmp.ge.f32.partialorder %v3012, 0.0
      %vm3037 = vcmp.ge.f32.partialorder %v3015, 0.0
      %vm3038 = vcmp.ge.f32.partialorder %v3020, 0.0
      %vm3039 = vcmp.ge.f32.partialorder %v3023, 0.0
      %vm3040 = vcmp.ge.f32.partialorder %v3028, 0.0
      %vm3041 = vcmp.ge.f32.partialorder %v3031, 0.0
      %v3042 = vmul.f32 %v3004, 0.1
      %v3043 = vmul.f32 %v3007, 0.1
      %v3044 = vmul.f32 %v3012, 0.1
      %v3045 = vmul.f32 %v3015, 0.1
      %v3046 = vmul.f32 %v3020, 0.1
      %v3047 = vmul.f32 %v3023, 0.1
      %v3048 = vmul.f32 %v3028, 0.1
      %v3049 = vmul.f32 %v3031, 0.1
      %v3050 = vsel %vm3034, %v3004, %v3042
      %v3051 = vsel %vm3035, %v3007, %v3043
      %v3052 = vsel %vm3036, %v3012, %v3044
      %v3053 = vsel %vm3037, %v3015, %v3045
      %v3054 = vsel %vm3038, %v3020, %v3046
      %v3055 = vsel %vm3039, %v3023, %v3047
      %v3056 = vsel %vm3040, %v3028, %v3048
      %v3057 = vsel %vm3041, %v3031, %v3049
      %3058 = vst.msk [vmem:[%s698 + $0x1] sm:$0xff] %vm469, %v3050
      %3059 = vst.msk [vmem:[%s698 + $0x11] sm:$0xff] %vm469, %v3051
      %3060 = vst.msk [vmem:[%s698 + $0x21] sm:$0xff] %vm469, %v3052
      %3061 = vst.msk [vmem:[%s698 + $0x31] sm:$0xff] %vm469, %v3053
      %3062 = vst.msk [vmem:[%s698 + $0x41] sm:$0xff] %vm469, %v3054
      %3063 = vst.msk [vmem:[%s698 + $0x51] sm:$0xff] %vm469, %v3055
      %3064 = vst.msk [vmem:[%s698 + $0x61] sm:$0xff] %vm469, %v3056
      %3065 = vst.msk [vmem:[%s698 + $0x71] sm:$0xff] %vm469, %v3057
      %v3066 = vld [vmem:[#allocation2] sm:$0xff]
      %v3067 = vld [vmem:[#allocation2 + $0x10] sm:$0xff]
      %v3068 = vld [vmem:[#allocation2 + $0x20] sm:$0xff]
      %v3069 = vld [vmem:[#allocation2 + $0x30] sm:$0xff]
      %v3070 = vld [vmem:[#allocation2 + $0x40] sm:$0xff]
      %v3071 = vld [vmem:[#allocation2 + $0x50] sm:$0xff]
      %v3072 = vld [vmem:[#allocation2 + $0x60] sm:$0xff]
      %v3073 = vld [vmem:[#allocation2 + $0x70] sm:$0xff]
      %v3074 = vld [vmem:[#allocation2 + $0x1] sm:$0xff]
      %v3075 = vld [vmem:[#allocation2 + $0x11] sm:$0xff]
      %v3076 = vld [vmem:[#allocation2 + $0x21] sm:$0xff]
      %v3077 = vld [vmem:[#allocation2 + $0x31] sm:$0xff]
      %v3078 = vld [vmem:[#allocation2 + $0x41] sm:$0xff]
      %v3079 = vld [vmem:[#allocation2 + $0x51] sm:$0xff]
      %v3080 = vld [vmem:[#allocation2 + $0x61] sm:$0xff]
      %v3081 = vld [vmem:[#allocation2 + $0x71] sm:$0xff]
      %v3082 = vld [vmem:[#allocation2 + $0x2] sm:$0xff]
      %v3083 = vld [vmem:[#allocation2 + $0x12] sm:$0xff]
      %v3084 = vld [vmem:[#allocation2 + $0x22] sm:$0xff]
      %v3085 = vld [vmem:[#allocation2 + $0x32] sm:$0xff]
      %v3086 = vld [vmem:[#allocation2 + $0x42] sm:$0xff]
      %v3087 = vld [vmem:[#allocation2 + $0x52] sm:$0xff]
      %v3088 = vld [vmem:[#allocation2 + $0x62] sm:$0xff]
      %v3089 = vld [vmem:[#allocation2 + $0x72] sm:$0xff]
      %v3090 = vld [vmem:[%s698] sm:$0xff]
      %v3091 = vld [vmem:[%s698 + $0x10] sm:$0xff]
      %v3092 = vld [vmem:[%s698 + $0x20] sm:$0xff]
      %v3093 = vld [vmem:[%s698 + $0x30] sm:$0xff]
      %v3094 = vld [vmem:[%s698 + $0x40] sm:$0xff]
      %v3095 = vld [vmem:[%s698 + $0x50] sm:$0xff]
      %v3096 = vld [vmem:[%s698 + $0x60] sm:$0xff]
      %v3097 = vld [vmem:[%s698 + $0x70] sm:$0xff]
      %v3098 = vld [vmem:[%s698 + $0x1] sm:$0xff]
      %v3099 = vld [vmem:[%s698 + $0x11] sm:$0xff]
      %v3100 = vld [vmem:[%s698 + $0x21] sm:$0xff]
      %v3101 = vld [vmem:[%s698 + $0x31] sm:$0xff]
      %v3102 = vld [vmem:[%s698 + $0x41] sm:$0xff]
      %v3103 = vld [vmem:[%s698 + $0x51] sm:$0xff]
      %v3104 = vld [vmem:[%s698 + $0x61] sm:$0xff]
      %v3105 = vld [vmem:[%s698 + $0x71] sm:$0xff]
      %v3106 = vld [vmem:[%s698 + $0x2] sm:$0xff]
      %v3107 = vld [vmem:[%s698 + $0x12] sm:$0xff]
      %v3108 = vld [vmem:[%s698 + $0x22] sm:$0xff]
      %v3109 = vld [vmem:[%s698 + $0x32] sm:$0xff]
      %v3110 = vld [vmem:[%s698 + $0x42] sm:$0xff]
      %v3111 = vld [vmem:[%s698 + $0x52] sm:$0xff]
      %v3112 = vld [vmem:[%s698 + $0x62] sm:$0xff]
      %v3113 = vld [vmem:[%s698 + $0x72] sm:$0xff]
      %v3114 = vld [vmem:[%s755] sm:$0xff]
      %v3115 = vld [vmem:[%s755 + $0x10] sm:$0xff]
      %v3116 = vld [vmem:[%s755 + $0x20] sm:$0xff]
      %v3117 = vld [vmem:[%s755 + $0x30] sm:$0xff]
      %v3118 = vld [vmem:[%s755 + $0x40] sm:$0xff]
      %v3119 = vld [vmem:[%s755 + $0x50] sm:$0xff]
      %v3120 = vld [vmem:[%s755 + $0x60] sm:$0xff]
      %v3121 = vld [vmem:[%s755 + $0x70] sm:$0xff]
      %v3122 = vld [vmem:[%s755 + $0x1] sm:$0xff]
      %v3123 = vld [vmem:[%s755 + $0x11] sm:$0xff]
      %v3124 = vld [vmem:[%s755 + $0x21] sm:$0xff]
      %v3125 = vld [vmem:[%s755 + $0x31] sm:$0xff]
      %v3126 = vld [vmem:[%s755 + $0x41] sm:$0xff]
      %v3127 = vld [vmem:[%s755 + $0x51] sm:$0xff]
      %v3128 = vld [vmem:[%s755 + $0x61] sm:$0xff]
      %v3129 = vld [vmem:[%s755 + $0x71] sm:$0xff]
      %v3130 = vld [vmem:[%s755 + $0x2] sm:$0xff]
      %v3131 = vld [vmem:[%s755 + $0x12] sm:$0xff]
      %v3132 = vld [vmem:[%s755 + $0x22] sm:$0xff]
      %v3133 = vld [vmem:[%s755 + $0x32] sm:$0xff]
      %v3134 = vld [vmem:[%s755 + $0x42] sm:$0xff]
      %v3135 = vld [vmem:[%s755 + $0x52] sm:$0xff]
      %v3136 = vld [vmem:[%s755 + $0x62] sm:$0xff]
      %v3137 = vld [vmem:[%s755 + $0x72] sm:$0xff]
      %3146 = vrot.lane.b32.xlu0 %v3074, 64
      %v3147 = vpop.permute.xlu0 %3146
      %3148 = vrot.lane.b32.xlu0 %v3075, 64
      %v3149 = vpop.permute.xlu0 %3148
      %3150 = vrot.lane.b32.xlu0 %v3076, 64
      %v3151 = vpop.permute.xlu0 %3150
      %3152 = vrot.lane.b32.xlu0 %v3077, 64
      %v3153 = vpop.permute.xlu0 %3152
      %3154 = vrot.lane.b32.xlu0 %v3078, 64
      %v3155 = vpop.permute.xlu0 %3154
      %3156 = vrot.lane.b32.xlu0 %v3079, 64
      %v3157 = vpop.permute.xlu0 %3156
      %3158 = vrot.lane.b32.xlu0 %v3080, 64
      %v3159 = vpop.permute.xlu0 %3158
      %3160 = vrot.lane.b32.xlu0 %v3081, 64
      %v3161 = vpop.permute.xlu0 %3160
      %3178 = vrot.lane.b32.xlu0 %v3090, 64
      %v3179 = vpop.permute.xlu0 %3178
      %3180 = vrot.lane.b32.xlu0 %v3091, 64
      %v3181 = vpop.permute.xlu0 %3180
      %3182 = vrot.lane.b32.xlu0 %v3092, 64
      %v3183 = vpop.permute.xlu0 %3182
      %3184 = vrot.lane.b32.xlu0 %v3093, 64
      %v3185 = vpop.permute.xlu0 %3184
      %3186 = vrot.lane.b32.xlu0 %v3094, 64
      %v3187 = vpop.permute.xlu0 %3186
      %3188 = vrot.lane.b32.xlu0 %v3095, 64
      %v3189 = vpop.permute.xlu0 %3188
      %3190 = vrot.lane.b32.xlu0 %v3096, 64
      %v3191 = vpop.permute.xlu0 %3190
      %3192 = vrot.lane.b32.xlu0 %v3097, 64
      %v3193 = vpop.permute.xlu0 %3192
      %3210 = vrot.lane.b32.xlu0 %v3106, 64
      %v3211 = vpop.permute.xlu0 %3210
      %3212 = vrot.lane.b32.xlu0 %v3107, 64
      %v3213 = vpop.permute.xlu0 %3212
      %3214 = vrot.lane.b32.xlu0 %v3108, 64
      %v3215 = vpop.permute.xlu0 %3214
      %3216 = vrot.lane.b32.xlu0 %v3109, 64
      %v3217 = vpop.permute.xlu0 %3216
      %3218 = vrot.lane.b32.xlu0 %v3110, 64
      %v3219 = vpop.permute.xlu0 %3218
      %3220 = vrot.lane.b32.xlu0 %v3111, 64
      %v3221 = vpop.permute.xlu0 %3220
      %3222 = vrot.lane.b32.xlu0 %v3112, 64
      %v3223 = vpop.permute.xlu0 %3222
      %3224 = vrot.lane.b32.xlu0 %v3113, 64
      %v3225 = vpop.permute.xlu0 %3224
      %3242 = vrot.lane.b32.xlu0 %v3122, 64
      %v3243 = vpop.permute.xlu0 %3242
      %3244 = vrot.lane.b32.xlu0 %v3123, 64
      %v3245 = vpop.permute.xlu0 %3244
      %3246 = vrot.lane.b32.xlu0 %v3124, 64
      %v3247 = vpop.permute.xlu0 %3246
      %3248 = vrot.lane.b32.xlu0 %v3125, 64
      %v3249 = vpop.permute.xlu0 %3248
      %3250 = vrot.lane.b32.xlu0 %v3126, 64
      %v3251 = vpop.permute.xlu0 %3250
      %3252 = vrot.lane.b32.xlu0 %v3127, 64
      %v3253 = vpop.permute.xlu0 %3252
      %3254 = vrot.lane.b32.xlu0 %v3128, 64
      %v3255 = vpop.permute.xlu0 %3254
      %3256 = vrot.lane.b32.xlu0 %v3129, 64
      %v3257 = vpop.permute.xlu0 %3256
      %v3266 = vsel %vm469, %v3066, %v3147
      %v3267 = vsel %vm469, %v3067, %v3149
      %v3268 = vsel %vm469, %v3068, %v3151
      %v3269 = vsel %vm469, %v3069, %v3153
      %v3270 = vsel %vm469, %v3070, %v3155
      %v3271 = vsel %vm469, %v3071, %v3157
      %v3272 = vsel %vm469, %v3072, %v3159
      %v3273 = vsel %vm469, %v3073, %v3161
      %v3274 = vsel %vm469, %v3082, %v3179
      %v3275 = vsel %vm469, %v3083, %v3181
      %v3276 = vsel %vm469, %v3084, %v3183
      %v3277 = vsel %vm469, %v3085, %v3185
      %v3278 = vsel %vm469, %v3086, %v3187
      %v3279 = vsel %vm469, %v3087, %v3189
      %v3280 = vsel %vm469, %v3088, %v3191
      %v3281 = vsel %vm469, %v3089, %v3193
      %v3282 = vsel %vm469, %v3098, %v3211
      %v3283 = vsel %vm469, %v3099, %v3213
      %v3284 = vsel %vm469, %v3100, %v3215
      %v3285 = vsel %vm469, %v3101, %v3217
      %v3286 = vsel %vm469, %v3102, %v3219
      %v3287 = vsel %vm469, %v3103, %v3221
      %v3288 = vsel %vm469, %v3104, %v3223
      %v3289 = vsel %vm469, %v3105, %v3225
      %v3290 = vsel %vm469, %v3114, %v3243
      %v3291 = vsel %vm469, %v3115, %v3245
      %v3292 = vsel %vm469, %v3116, %v3247
      %v3293 = vsel %vm469, %v3117, %v3249
      %v3294 = vsel %vm469, %v3118, %v3251
      %v3295 = vsel %vm469, %v3119, %v3253
      %v3296 = vsel %vm469, %v3120, %v3255
      %v3297 = vsel %vm469, %v3121, %v3257
      %v3298 = vpack.c.bf16 %v3267, %v3266
      %v3299 = vpack.c.bf16 %v3275, %v3274
      %v3300 = vpack.c.bf16 %v3283, %v3282
      %v3301 = vpack.c.bf16 %v3291, %v3290
      %v3302 = vpack.c.bf16 %v3131, %v3130
      %v3303 = vpack.c.bf16 %v3269, %v3268
      %v3304 = vpack.c.bf16 %v3277, %v3276
      %v3305 = vpack.c.bf16 %v3285, %v3284
      %v3306 = vpack.c.bf16 %v3293, %v3292
      %v3307 = vpack.c.bf16 %v3133, %v3132
      %v3308 = vpack.c.bf16 %v3271, %v3270
      %v3309 = vpack.c.bf16 %v3279, %v3278
      %v3310 = vpack.c.bf16 %v3287, %v3286
      %v3311 = vpack.c.bf16 %v3295, %v3294
      %v3312 = vpack.c.bf16 %v3135, %v3134
      %v3313 = vpack.c.bf16 %v3273, %v3272
      %v3314 = vpack.c.bf16 %v3281, %v3280
      %v3315 = vpack.c.bf16 %v3289, %v3288
      %v3316 = vpack.c.bf16 %v3297, %v3296
      %v3317 = vpack.c.bf16 %v3137, %v3136
      %v3318 = vld [vmem:[%s9] sm:$0xf]
      %v3319 = vld [vmem:[%s9 + $0x4] sm:$0xf]
      %v3320 = vld [vmem:[%s9 + $0x8] sm:$0xf]
      %v3321 = vld [vmem:[%s9 + $0xc] sm:$0xf]
      %v3322 = vld [vmem:[%s9 + $0x10] sm:$0xf]
      %v3323 = vld [vmem:[%s9 + $0x14] sm:$0xf]
      %v3324 = vld [vmem:[%s9 + $0x18] sm:$0xf]
      %v3325 = vld [vmem:[%s9 + $0x1c] sm:$0xf]
      %v3326 = vld [vmem:[%s9 + $0x20] sm:$0xf]
      %v3327 = vld [vmem:[%s9 + $0x24] sm:$0xf]
      %v3328 = vld [vmem:[%s9 + $0x28] sm:$0xf]
      %v3329 = vld [vmem:[%s9 + $0x2c] sm:$0xf]
      %v3330 = vld [vmem:[%s9 + $0x30] sm:$0xf]
      %v3331 = vld [vmem:[%s9 + $0x34] sm:$0xf]
      %v3332 = vld [vmem:[%s9 + $0x38] sm:$0xf]
      %v3333 = vld [vmem:[%s9 + $0x3c] sm:$0xf]
      %v3334 = vld [vmem:[%s9 + $0x40] sm:$0xf]
      %v3335 = vld [vmem:[%s9 + $0x44] sm:$0xf]
      %v3336 = vld [vmem:[%s9 + $0x48] sm:$0xf]
      %v3337 = vld [vmem:[%s9 + $0x4c] sm:$0xf]
      %v3338 = vld [vmem:[%s9 + $0x50] sm:$0xf]
      %v3339 = vld [vmem:[%s9 + $0x54] sm:$0xf]
      %v3340 = vld [vmem:[%s9 + $0x58] sm:$0xf]
      %v3341 = vld [vmem:[%s9 + $0x5c] sm:$0xf]
      %v3342 = vld [vmem:[%s9 + $0x60] sm:$0xf]
      %v3343 = vld [vmem:[%s9 + $0x64] sm:$0xf]
      %v3344 = vld [vmem:[%s9 + $0x68] sm:$0xf]
      %v3345 = vld [vmem:[%s9 + $0x6c] sm:$0xf]
      %v3346 = vld [vmem:[%s9 + $0x70] sm:$0xf]
      %v3347 = vld [vmem:[%s9 + $0x74] sm:$0xf]
      %v3348 = vld [vmem:[%s9 + $0x78] sm:$0xf]
      %v3349 = vld [vmem:[%s9 + $0x7c] sm:$0xf]
      %v3350 = vld [vmem:[%s9 + $0x80] sm:$0xf]
      %v3351 = vld [vmem:[%s9 + $0x84] sm:$0xf]
      %v3352 = vld [vmem:[%s9 + $0x88] sm:$0xf]
      %v3353 = vld [vmem:[%s9 + $0x8c] sm:$0xf]
      %v3354 = vld [vmem:[%s9 + $0x90] sm:$0xf]
      %v3355 = vld [vmem:[%s9 + $0x94] sm:$0xf]
      %v3356 = vld [vmem:[%s9 + $0x98] sm:$0xf]
      %v3357 = vld [vmem:[%s9 + $0x9c] sm:$0xf]
      %v3358 = vld [vmem:[%s9 + $0xa0] sm:$0xf]
      %v3359 = vld [vmem:[%s9 + $0xa4] sm:$0xf]
      %v3360 = vld [vmem:[%s9 + $0xa8] sm:$0xf]
      %v3361 = vld [vmem:[%s9 + $0xac] sm:$0xf]
      %v3362 = vld [vmem:[%s9 + $0xb0] sm:$0xf]
      %v3363 = vld [vmem:[%s9 + $0xb4] sm:$0xf]
      %v3364 = vld [vmem:[%s9 + $0xb8] sm:$0xf]
      %v3365 = vld [vmem:[%s9 + $0xbc] sm:$0xf]
      %v3366 = vld [vmem:[%s9 + $0xc0] sm:$0xf]
      %v3367 = vld [vmem:[%s9 + $0xc4] sm:$0xf]
      %v3368 = vld [vmem:[%s9 + $0xc8] sm:$0xf]
      %v3369 = vld [vmem:[%s9 + $0xcc] sm:$0xf]
      %v3370 = vld [vmem:[%s9 + $0xd0] sm:$0xf]
      %v3371 = vld [vmem:[%s9 + $0xd4] sm:$0xf]
      %v3372 = vld [vmem:[%s9 + $0xd8] sm:$0xf]
      %v3373 = vld [vmem:[%s9 + $0xdc] sm:$0xf]
      %v3374 = vld [vmem:[%s9 + $0xe0] sm:$0xf]
      %v3375 = vld [vmem:[%s9 + $0xe4] sm:$0xf]
      %v3376 = vld [vmem:[%s9 + $0xe8] sm:$0xf]
      %v3377 = vld [vmem:[%s9 + $0xec] sm:$0xf]
      %v3378 = vld [vmem:[%s9 + $0xf0] sm:$0xf]
      %v3379 = vld [vmem:[%s9 + $0xf4] sm:$0xf]
      %v3380 = vld [vmem:[%s9 + $0xf8] sm:$0xf]
      %v3381 = vld [vmem:[%s9 + $0xfc] sm:$0xf]
      %v3382 = vld [vmem:[%s9 + $0x100] sm:$0xf]
      %v3383 = vld [vmem:[%s9 + $0x104] sm:$0xf]
      %v3384 = vld [vmem:[%s9 + $0x108] sm:$0xf]
      %v3385 = vld [vmem:[%s9 + $0x10c] sm:$0xf]
      %v3386 = vld [vmem:[%s9 + $0x110] sm:$0xf]
      %v3387 = vld [vmem:[%s9 + $0x114] sm:$0xf]
      %v3388 = vld [vmem:[%s9 + $0x118] sm:$0xf]
      %v3389 = vld [vmem:[%s9 + $0x11c] sm:$0xf]
      %v3390 = vld [vmem:[%s10] sm:$0x1]
      %v3392 = vlaneseq
      %v3393 = vshrl.u32 %v3392, 7
      %v3394 = vsub.s32 0, %v3393
      %v3395 = vrot.slane %v3390, %v3394
      %v3469 = vunpack.c.l.b16 %v3318
      %v3470 = vunpack.c.l.b16 %v3319
      %v3471 = vunpack.c.l.b16 %v3320
      %v3472 = vunpack.c.l.b16 %v3321
      %v3473 = vunpack.c.l.b16 %v3322
      %v3474 = vunpack.c.l.b16 %v3323
      %v3475 = vunpack.c.l.b16 %v3324
      %v3476 = vunpack.c.l.b16 %v3325
      %v3477 = vunpack.c.l.b16 %v3326
      %v3478 = vunpack.c.l.b16 %v3327
      %v3479 = vunpack.c.l.b16 %v3328
      %v3480 = vunpack.c.l.b16 %v3329
      %v3481 = vunpack.c.l.b16 %v3330
      %v3482 = vunpack.c.l.b16 %v3331
      %v3483 = vunpack.c.l.b16 %v3332
      %v3484 = vunpack.c.l.b16 %v3333
      %v3485 = vunpack.c.l.b16 %v3334
      %v3486 = vunpack.c.l.b16 %v3335
      %v3487 = vunpack.c.l.b16 %v3336
      %v3488 = vunpack.c.l.b16 %v3337
      %v3489 = vunpack.c.l.b16 %v3338
      %v3490 = vunpack.c.l.b16 %v3339
      %v3491 = vunpack.c.l.b16 %v3340
      %v3492 = vunpack.c.l.b16 %v3341
      %v3493 = vunpack.c.l.b16 %v3342
      %v3494 = vunpack.c.l.b16 %v3343
      %v3495 = vunpack.c.l.b16 %v3344
      %v3496 = vunpack.c.l.b16 %v3345
      %v3497 = vunpack.c.l.b16 %v3346
      %v3498 = vunpack.c.l.b16 %v3347
      %v3499 = vunpack.c.l.b16 %v3348
      %v3500 = vunpack.c.l.b16 %v3349
      %v3501 = vunpack.c.l.b16 %v3350
      %v3502 = vunpack.c.l.b16 %v3351
      %v3503 = vunpack.c.l.b16 %v3352
      %v3504 = vunpack.c.l.b16 %v3353
      %v3505 = vunpack.c.l.b16 %v3354
      %v3506 = vunpack.c.l.b16 %v3355
      %v3507 = vunpack.c.l.b16 %v3356
      %v3508 = vunpack.c.l.b16 %v3357
      %v3509 = vunpack.c.l.b16 %v3358
      %v3510 = vunpack.c.l.b16 %v3359
      %v3511 = vunpack.c.l.b16 %v3360
      %v3512 = vunpack.c.l.b16 %v3361
      %v3513 = vunpack.c.l.b16 %v3362
      %v3514 = vunpack.c.l.b16 %v3363
      %v3515 = vunpack.c.l.b16 %v3364
      %v3516 = vunpack.c.l.b16 %v3365
      %v3517 = vunpack.c.l.b16 %v3366
      %v3518 = vunpack.c.l.b16 %v3367
      %v3519 = vunpack.c.l.b16 %v3368
      %v3520 = vunpack.c.l.b16 %v3369
      %v3521 = vunpack.c.l.b16 %v3370
      %v3522 = vunpack.c.l.b16 %v3371
      %v3523 = vunpack.c.l.b16 %v3372
      %v3524 = vunpack.c.l.b16 %v3373
      %v3525 = vunpack.c.l.b16 %v3374
      %v3526 = vunpack.c.l.b16 %v3375
      %v3527 = vunpack.c.l.b16 %v3376
      %v3528 = vunpack.c.l.b16 %v3377
      %v3529 = vunpack.c.l.b16 %v3378
      %v3530 = vunpack.c.l.b16 %v3379
      %v3531 = vunpack.c.l.b16 %v3380
      %v3532 = vunpack.c.l.b16 %v3381
      %v3533 = vunpack.c.l.b16 %v3382
      %v3534 = vunpack.c.l.b16 %v3383
      %v3535 = vunpack.c.l.b16 %v3384
      %v3536 = vunpack.c.l.b16 %v3385
      %v3537 = vunpack.c.l.b16 %v3386
      %v3538 = vunpack.c.l.b16 %v3387
      %v3539 = vunpack.c.l.b16 %v3388
      %v3540 = vunpack.c.l.b16 %v3389
      %v3541 = vpack.c.b16 %v3470, %v3469
      %v3542 = vpack.c.b16 %v3472, %v3471
      %v3543 = vpack.c.b16 %v3474, %v3473
      %v3544 = vpack.c.b16 %v3476, %v3475
      %v3545 = vpack.c.b16 %v3478, %v3477
      %v3546 = vpack.c.b16 %v3480, %v3479
      %v3547 = vpack.c.b16 %v3482, %v3481
      %v3548 = vpack.c.b16 %v3484, %v3483
      %v3549 = vpack.c.b16 %v3486, %v3485
      %v3550 = vpack.c.b16 %v3488, %v3487
      %v3551 = vpack.c.b16 %v3490, %v3489
      %v3552 = vpack.c.b16 %v3492, %v3491
      %v3553 = vpack.c.b16 %v3494, %v3493
      %v3554 = vpack.c.b16 %v3496, %v3495
      %v3555 = vpack.c.b16 %v3498, %v3497
      %v3556 = vpack.c.b16 %v3500, %v3499
      %v3557 = vpack.c.b16 %v3502, %v3501
      %v3558 = vpack.c.b16 %v3504, %v3503
      %v3559 = vpack.c.b16 %v3506, %v3505
      %v3560 = vpack.c.b16 %v3508, %v3507
      %v3561 = vpack.c.b16 %v3510, %v3509
      %v3562 = vpack.c.b16 %v3512, %v3511
      %v3563 = vpack.c.b16 %v3514, %v3513
      %v3564 = vpack.c.b16 %v3516, %v3515
      %v3565 = vpack.c.b16 %v3518, %v3517
      %v3566 = vpack.c.b16 %v3520, %v3519
      %v3567 = vpack.c.b16 %v3522, %v3521
      %v3568 = vpack.c.b16 %v3524, %v3523
      %v3569 = vpack.c.b16 %v3526, %v3525
      %v3570 = vpack.c.b16 %v3528, %v3527
      %v3571 = vpack.c.b16 %v3530, %v3529
      %v3572 = vpack.c.b16 %v3532, %v3531
      %v3573 = vpack.c.b16 %v3534, %v3533
      %v3574 = vpack.c.b16 %v3536, %v3535
      %v3575 = vpack.c.b16 %v3538, %v3537
      %v3576 = vpack.c.b16 %v3540, %v3539
      %v3614 = vsel %vm469, %v3302, 0
      %v3617 = vsel %vm469, %v3307, 0
      %v3620 = vsel %vm469, %v3312, 0
      %v3623 = vsel %vm469, %v3317, 0
      %3625 = vmatprep.subr.bf16.mxu0 0
      %3626 = vmatpush1.bf16.msra.mxu0 %v3548
      %3627 = vmatprep.subr.bf16.mxu0 0
      %3628 = vmatpush1.bf16.msra.mxu0 %v3547
      %3629 = vmatprep.subr.bf16.mxu0 0
      %3630 = vmatpush1.bf16.msra.mxu0 %v3546
      %3631 = vmatprep.subr.bf16.mxu0 0
      %3632 = vmatpush1.bf16.msra.mxu0 %v3545
      %3633 = vmatprep.subr.bf16.mxu0 0
      %3634 = vmatpush1.bf16.msra.mxu0 %v3544
      %3635 = vmatprep.subr.bf16.mxu0 0
      %3636 = vmatpush1.bf16.msra.mxu0 %v3543
      %3637 = vmatprep.subr.bf16.mxu0 0
      %3638 = vmatpush1.bf16.msra.mxu0 %v3542
      %3639 = vmatprep.subr.bf16.mxu0 0
      %3640 = vmatpush1.bf16.msra.mxu0 %v3541
      %3641 = vmatprep.subr.bf16.mxu0 0
      %3642 = vmatpush2.bf16.msra.mxu0 %v3556
      %3643 = vmatprep.subr.bf16.mxu0 0
      %3644 = vmatpush2.bf16.msra.mxu0 %v3555
      %3645 = vmatprep.subr.bf16.mxu0 0
      %3646 = vmatpush2.bf16.msra.mxu0 %v3554
      %3647 = vmatprep.subr.bf16.mxu0 0
      %3648 = vmatpush2.bf16.msra.mxu0 %v3553
      %3649 = vmatprep.subr.bf16.mxu0 0
      %3650 = vmatpush2.bf16.msra.mxu0 %v3552
      %3651 = vmatprep.subr.bf16.mxu0 0
      %3652 = vmatpush2.bf16.msra.mxu0 %v3551
      %3653 = vmatprep.subr.bf16.mxu0 0
      %3654 = vmatpush2.bf16.msra.mxu0 %v3550
      %3655 = vmatprep.subr.bf16.mxu0 0
      %3656 = vmatpush2.bf16.msra.mxu0 %v3549
      %3657 = vmatprep.mubr.bf16.mxu0 %v3299
      %3658 = vmatmul.mubr.bf16.gmra.mxu0 %v3298
      %v3659 = vpop.f32.mrf.mxu0
      %v3660 = vadd.f32 %v3395, %v3659
      %v3661 = vpop.f32.mrf.mxu0
      %v3662 = vpop.f32.mrf.mxu0
      %v3663 = vadd.f32 %v3395, %v3662
      %v3664 = vpop.f32.mrf.mxu0
      %3665 = vmatprep.mubr.bf16.mxu0 %v3304
      %3666 = vmatmul.mubr.bf16.gmra.mxu0 %v3303
      %v3667 = vpop.f32.mrf.mxu0
      %v3668 = vadd.f32 %v3395, %v3667
      %v3669 = vpop.f32.mrf.mxu0
      %v3670 = vpop.f32.mrf.mxu0
      %v3671 = vadd.f32 %v3395, %v3670
      %v3672 = vpop.f32.mrf.mxu0
      %3673 = vmatprep.mubr.bf16.mxu0 %v3309
      %3674 = vmatmul.mubr.bf16.gmra.mxu0 %v3308
      %v3675 = vpop.f32.mrf.mxu0
      %v3676 = vadd.f32 %v3395, %v3675
      %v3677 = vpop.f32.mrf.mxu0
      %v3678 = vpop.f32.mrf.mxu0
      %v3679 = vadd.f32 %v3395, %v3678
      %v3680 = vpop.f32.mrf.mxu0
      %3681 = vmatprep.mubr.bf16.mxu0 %v3314
      %3682 = vmatmul.mubr.bf16.gmra.mxu0 %v3313
      %v3683 = vpop.f32.mrf.mxu0
      %v3684 = vadd.f32 %v3395, %v3683
      %v3685 = vpop.f32.mrf.mxu0
      %v3686 = vpop.f32.mrf.mxu0
      %v3687 = vadd.f32 %v3395, %v3686
      %v3688 = vpop.f32.mrf.mxu0
      %3689 = vdwg.mxu0
      %3690 = vmatprep.subr.bf16.mxu0 0
      %3691 = vmatpush1.bf16.msra.mxu0 %v3564
      %3692 = vmatprep.subr.bf16.mxu0 0
      %3693 = vmatpush1.bf16.msra.mxu0 %v3563
      %3694 = vmatprep.subr.bf16.mxu0 0
      %3695 = vmatpush1.bf16.msra.mxu0 %v3562
      %3696 = vmatprep.subr.bf16.mxu0 0
      %3697 = vmatpush1.bf16.msra.mxu0 %v3561
      %3698 = vmatprep.subr.bf16.mxu0 0
      %3699 = vmatpush1.bf16.msra.mxu0 %v3560
      %3700 = vmatprep.subr.bf16.mxu0 0
      %3701 = vmatpush1.bf16.msra.mxu0 %v3559
      %3702 = vmatprep.subr.bf16.mxu0 0
      %3703 = vmatpush1.bf16.msra.mxu0 %v3558
      %3704 = vmatprep.subr.bf16.mxu0 0
      %3705 = vmatpush1.bf16.msra.mxu0 %v3557
      %3706 = vmatprep.subr.bf16.mxu0 0
      %3707 = vmatpush2.bf16.msra.mxu0 %v3572
      %3708 = vmatprep.subr.bf16.mxu0 0
      %3709 = vmatpush2.bf16.msra.mxu0 %v3571
      %3710 = vmatprep.subr.bf16.mxu0 0
      %3711 = vmatpush2.bf16.msra.mxu0 %v3570
      %3712 = vmatprep.subr.bf16.mxu0 0
      %3713 = vmatpush2.bf16.msra.mxu0 %v3569
      %3714 = vmatprep.subr.bf16.mxu0 0
      %3715 = vmatpush2.bf16.msra.mxu0 %v3568
      %3716 = vmatprep.subr.bf16.mxu0 0
      %3717 = vmatpush2.bf16.msra.mxu0 %v3567
      %3718 = vmatprep.subr.bf16.mxu0 0
      %3719 = vmatpush2.bf16.msra.mxu0 %v3566
      %3720 = vmatprep.subr.bf16.mxu0 0
      %3721 = vmatpush2.bf16.msra.mxu0 %v3565
      %3722 = vmatprep.mubr.bf16.mxu0 %v3301
      %3723 = vmatmul.mubr.bf16.gmra.mxu0 %v3300
      %v3724 = vpop.f32.mrf.mxu0
      %v3725 = vadd.f32 %v3660, %v3724
      %v3726 = vpop.f32.mrf.mxu0
      %v3727 = vpop.f32.mrf.mxu0
      %v3728 = vadd.f32 %v3663, %v3727
      %v3729 = vpop.f32.mrf.mxu0
      %3730 = vmatprep.mubr.bf16.mxu0 %v3306
      %3731 = vmatmul.mubr.bf16.gmra.mxu0 %v3305
      %v3732 = vpop.f32.mrf.mxu0
      %v3733 = vadd.f32 %v3668, %v3732
      %v3734 = vpop.f32.mrf.mxu0
      %v3735 = vpop.f32.mrf.mxu0
      %v3736 = vadd.f32 %v3671, %v3735
      %v3737 = vpop.f32.mrf.mxu0
      %3738 = vmatprep.mubr.bf16.mxu0 %v3311
      %3739 = vmatmul.mubr.bf16.gmra.mxu0 %v3310
      %v3740 = vpop.f32.mrf.mxu0
      %v3741 = vadd.f32 %v3676, %v3740
      %v3742 = vpop.f32.mrf.mxu0
      %v3743 = vpop.f32.mrf.mxu0
      %v3744 = vadd.f32 %v3679, %v3743
      %v3745 = vpop.f32.mrf.mxu0
      %3746 = vmatprep.mubr.bf16.mxu0 %v3316
      %3747 = vmatmul.mubr.bf16.gmra.mxu0 %v3315
      %v3748 = vpop.f32.mrf.mxu0
      %v3749 = vadd.f32 %v3684, %v3748
      %v3750 = vpop.f32.mrf.mxu0
      %v3751 = vpop.f32.mrf.mxu0
      %v3752 = vadd.f32 %v3687, %v3751
      %v3753 = vpop.f32.mrf.mxu0
      %3754 = vdwg.mxu0
      %3755 = vmatprep.subr.bf16.mxu0 0
      %3756 = vmatpush1.bf16.msra.mxu0 0
      %3757 = vmatprep.subr.bf16.mxu0 0
      %3758 = vmatpush1.bf16.msra.mxu0 0
      %3759 = vmatprep.subr.bf16.mxu0 0
      %3760 = vmatpush1.bf16.msra.mxu0 0
      %3761 = vmatprep.subr.bf16.mxu0 0
      %3762 = vmatpush1.bf16.msra.mxu0 0
      %3763 = vmatprep.subr.bf16.mxu0 0
      %3764 = vmatpush1.bf16.msra.mxu0 %v3576
      %3765 = vmatprep.subr.bf16.mxu0 0
      %3766 = vmatpush1.bf16.msra.mxu0 %v3575
      %3767 = vmatprep.subr.bf16.mxu0 0
      %3768 = vmatpush1.bf16.msra.mxu0 %v3574
      %3769 = vmatprep.subr.bf16.mxu0 0
      %3770 = vmatpush1.bf16.msra.mxu0 %v3573
      %3771 = vmatprep.subr.bf16.mxu0 0
      %3772 = vmatpush2.bf16.msra.mxu0 0
      %3773 = vmatprep.subr.bf16.mxu0 0
      %3774 = vmatpush2.bf16.msra.mxu0 0
      %3775 = vmatprep.subr.bf16.mxu0 0
      %3776 = vmatpush2.bf16.msra.mxu0 0
      %3777 = vmatprep.subr.bf16.mxu0 0
      %3778 = vmatpush2.bf16.msra.mxu0 0
      %3779 = vmatprep.subr.bf16.mxu0 0
      %3780 = vmatpush2.bf16.msra.mxu0 0
      %3781 = vmatprep.subr.bf16.mxu0 0
      %3782 = vmatpush2.bf16.msra.mxu0 0
      %3783 = vmatprep.subr.bf16.mxu0 0
      %3784 = vmatpush2.bf16.msra.mxu0 0
      %3785 = vmatprep.subr.bf16.mxu0 0
      %3786 = vmatpush2.bf16.msra.mxu0 0
      %3787 = vmatprep.mubr.bf16.mxu0 0
      %3788 = vmatmul.mubr.bf16.gmra.mxu0 %v3614
      %v3789 = vpop.f32.mrf.mxu0
      %v3790 = vadd.f32 %v3725, %v3789
      %v3791 = vpop.f32.mrf.mxu0
      %v3792 = vpop.f32.mrf.mxu0
      %v3793 = vadd.f32 %v3728, %v3792
      %v3794 = vpop.f32.mrf.mxu0
      %3795 = vmatprep.mubr.bf16.mxu0 0
      %3796 = vmatmul.mubr.bf16.gmra.mxu0 %v3617
      %v3797 = vpop.f32.mrf.mxu0
      %v3798 = vadd.f32 %v3733, %v3797
      %v3799 = vpop.f32.mrf.mxu0
      %v3800 = vpop.f32.mrf.mxu0
      %v3801 = vadd.f32 %v3736, %v3800
      %v3802 = vpop.f32.mrf.mxu0
      %3803 = vmatprep.mubr.bf16.mxu0 0
      %3804 = vmatmul.mubr.bf16.gmra.mxu0 %v3620
      %v3805 = vpop.f32.mrf.mxu0
      %v3806 = vadd.f32 %v3741, %v3805
      %v3807 = vpop.f32.mrf.mxu0
      %v3808 = vpop.f32.mrf.mxu0
      %v3809 = vadd.f32 %v3744, %v3808
      %v3810 = vpop.f32.mrf.mxu0
      %3811 = vmatprep.mubr.bf16.mxu0 0
      %3812 = vmatmul.mubr.bf16.gmra.mxu0 %v3623
      %v3813 = vpop.f32.mrf.mxu0
      %v3814 = vadd.f32 %v3749, %v3813
      %v3815 = vpop.f32.mrf.mxu0
      %v3816 = vpop.f32.mrf.mxu0
      %v3817 = vadd.f32 %v3752, %v3816
      %v3818 = vpop.f32.mrf.mxu0
      %3819 = vdwg.mxu0
      %vm3820 = vcmp.ge.f32.partialorder %v3790, 0.0
      %vm3821 = vcmp.ge.f32.partialorder %v3793, 0.0
      %vm3822 = vcmp.ge.f32.partialorder %v3798, 0.0
      %vm3823 = vcmp.ge.f32.partialorder %v3801, 0.0
      %vm3824 = vcmp.ge.f32.partialorder %v3806, 0.0
      %vm3825 = vcmp.ge.f32.partialorder %v3809, 0.0
      %vm3826 = vcmp.ge.f32.partialorder %v3814, 0.0
      %vm3827 = vcmp.ge.f32.partialorder %v3817, 0.0
      %v3828 = vmul.f32 %v3790, 0.1
      %v3829 = vmul.f32 %v3793, 0.1
      %v3830 = vmul.f32 %v3798, 0.1
      %v3831 = vmul.f32 %v3801, 0.1
      %v3832 = vmul.f32 %v3806, 0.1
      %v3833 = vmul.f32 %v3809, 0.1
      %v3834 = vmul.f32 %v3814, 0.1
      %v3835 = vmul.f32 %v3817, 0.1
      %v3836 = vsel %vm3820, %v3790, %v3828
      %v3837 = vsel %vm3821, %v3793, %v3829
      %v3838 = vsel %vm3822, %v3798, %v3830
      %v3839 = vsel %vm3823, %v3801, %v3831
      %v3840 = vsel %vm3824, %v3806, %v3832
      %v3841 = vsel %vm3825, %v3809, %v3833
      %v3842 = vsel %vm3826, %v3814, %v3834
      %v3843 = vsel %vm3827, %v3817, %v3835
      %v3844 = vld [vmem:[%s11] sm:$0xf]
      %v3845 = vld [vmem:[%s11 + $0x4] sm:$0xf]
      %v3846 = vld [vmem:[%s11 + $0x8] sm:$0xf]
      %v3847 = vld [vmem:[%s11 + $0xc] sm:$0xf]
      %v3848 = vld [vmem:[%s11 + $0x10] sm:$0xf]
      %v3849 = vld [vmem:[%s11 + $0x14] sm:$0xf]
      %v3850 = vld [vmem:[%s11 + $0x18] sm:$0xf]
      %v3851 = vld [vmem:[%s11 + $0x1c] sm:$0xf]
      %v3852 = vld [vmem:[%s11 + $0x20] sm:$0xf]
      %v3853 = vld [vmem:[%s11 + $0x24] sm:$0xf]
      %v3854 = vld [vmem:[%s11 + $0x28] sm:$0xf]
      %v3855 = vld [vmem:[%s11 + $0x2c] sm:$0xf]
      %v3856 = vld [vmem:[%s11 + $0x30] sm:$0xf]
      %v3857 = vld [vmem:[%s11 + $0x34] sm:$0xf]
      %v3858 = vld [vmem:[%s11 + $0x38] sm:$0xf]
      %v3859 = vld [vmem:[%s11 + $0x3c] sm:$0xf]
      %v3860 = vld [vmem:[%s11 + $0x40] sm:$0xf]
      %v3861 = vld [vmem:[%s11 + $0x44] sm:$0xf]
      %v3862 = vld [vmem:[%s11 + $0x48] sm:$0xf]
      %v3863 = vld [vmem:[%s11 + $0x4c] sm:$0xf]
      %v3864 = vld [vmem:[%s11 + $0x50] sm:$0xf]
      %v3865 = vld [vmem:[%s11 + $0x54] sm:$0xf]
      %v3866 = vld [vmem:[%s11 + $0x58] sm:$0xf]
      %v3867 = vld [vmem:[%s11 + $0x5c] sm:$0xf]
      %v3868 = vld [vmem:[%s11 + $0x60] sm:$0xf]
      %v3869 = vld [vmem:[%s11 + $0x64] sm:$0xf]
      %v3870 = vld [vmem:[%s11 + $0x68] sm:$0xf]
      %v3871 = vld [vmem:[%s11 + $0x6c] sm:$0xf]
      %v3872 = vld [vmem:[%s11 + $0x70] sm:$0xf]
      %v3873 = vld [vmem:[%s11 + $0x74] sm:$0xf]
      %v3874 = vld [vmem:[%s11 + $0x78] sm:$0xf]
      %v3875 = vld [vmem:[%s11 + $0x7c] sm:$0xf]
      %v3876 = vpack.c.bf16 %v3837, %v3836
      %v3877 = vpack.c.bf16 %v3839, %v3838
      %v3878 = vpack.c.bf16 %v3841, %v3840
      %v3879 = vpack.c.bf16 %v3843, %v3842
      %v3912 = vunpack.c.l.b16 %v3844
      %v3913 = vunpack.c.l.b16 %v3845
      %v3914 = vunpack.c.l.b16 %v3846
      %v3915 = vunpack.c.l.b16 %v3847
      %v3916 = vunpack.c.l.b16 %v3848
      %v3917 = vunpack.c.l.b16 %v3849
      %v3918 = vunpack.c.l.b16 %v3850
      %v3919 = vunpack.c.l.b16 %v3851
      %v3920 = vunpack.c.l.b16 %v3852
      %v3921 = vunpack.c.l.b16 %v3853
      %v3922 = vunpack.c.l.b16 %v3854
      %v3923 = vunpack.c.l.b16 %v3855
      %v3924 = vunpack.c.l.b16 %v3856
      %v3925 = vunpack.c.l.b16 %v3857
      %v3926 = vunpack.c.l.b16 %v3858
      %v3927 = vunpack.c.l.b16 %v3859
      %v3928 = vunpack.c.l.b16 %v3860
      %v3929 = vunpack.c.l.b16 %v3861
      %v3930 = vunpack.c.l.b16 %v3862
      %v3931 = vunpack.c.l.b16 %v3863
      %v3932 = vunpack.c.l.b16 %v3864
      %v3933 = vunpack.c.l.b16 %v3865
      %v3934 = vunpack.c.l.b16 %v3866
      %v3935 = vunpack.c.l.b16 %v3867
      %v3936 = vunpack.c.l.b16 %v3868
      %v3937 = vunpack.c.l.b16 %v3869
      %v3938 = vunpack.c.l.b16 %v3870
      %v3939 = vunpack.c.l.b16 %v3871
      %v3940 = vunpack.c.l.b16 %v3872
      %v3941 = vunpack.c.l.b16 %v3873
      %v3942 = vunpack.c.l.b16 %v3874
      %v3943 = vunpack.c.l.b16 %v3875
      %v3944 = vpack.c.b16 %v3913, %v3912
      %v3945 = vpack.c.b16 %v3915, %v3914
      %v3946 = vpack.c.b16 %v3917, %v3916
      %v3947 = vpack.c.b16 %v3919, %v3918
      %v3948 = vpack.c.b16 %v3921, %v3920
      %v3949 = vpack.c.b16 %v3923, %v3922
      %v3950 = vpack.c.b16 %v3925, %v3924
      %v3951 = vpack.c.b16 %v3927, %v3926
      %v3952 = vpack.c.b16 %v3929, %v3928
      %v3953 = vpack.c.b16 %v3931, %v3930
      %v3954 = vpack.c.b16 %v3933, %v3932
      %v3955 = vpack.c.b16 %v3935, %v3934
      %v3956 = vpack.c.b16 %v3937, %v3936
      %v3957 = vpack.c.b16 %v3939, %v3938
      %v3958 = vpack.c.b16 %v3941, %v3940
      %v3959 = vpack.c.b16 %v3943, %v3942
      %v3961 = vsel %vm469, %v3944, 0
      %v3964 = vsel %vm469, %v3945, 0
      %v3967 = vsel %vm469, %v3946, 0
      %v3970 = vsel %vm469, %v3947, 0
      %v3973 = vsel %vm469, %v3948, 0
      %v3976 = vsel %vm469, %v3949, 0
      %v3979 = vsel %vm469, %v3950, 0
      %v3982 = vsel %vm469, %v3951, 0
      %v3985 = vsel %vm469, %v3952, 0
      %v3988 = vsel %vm469, %v3953, 0
      %v3991 = vsel %vm469, %v3954, 0
      %v3994 = vsel %vm469, %v3955, 0
      %v3997 = vsel %vm469, %v3956, 0
      %v4000 = vsel %vm469, %v3957, 0
      %v4003 = vsel %vm469, %v3958, 0
      %v4006 = vsel %vm469, %v3959, 0
      %4008 = vmatprep.subr.bf16.mxu0 0
      %4009 = vmatpush1.bf16.msra.mxu0 0
      %4010 = vmatprep.subr.bf16.mxu0 0
      %4011 = vmatpush1.bf16.msra.mxu0 0
      %4012 = vmatprep.subr.bf16.mxu0 0
      %4013 = vmatpush1.bf16.msra.mxu0 0
      %4014 = vmatprep.subr.bf16.mxu0 0
      %4015 = vmatpush1.bf16.msra.mxu0 0
      %4016 = vmatprep.subr.bf16.mxu0 0
      %4017 = vmatpush1.bf16.msra.mxu0 %v3879
      %4018 = vmatprep.subr.bf16.mxu0 0
      %4019 = vmatpush1.bf16.msra.mxu0 %v3878
      %4020 = vmatprep.subr.bf16.mxu0 0
      %4021 = vmatpush1.bf16.msra.mxu0 %v3877
      %4022 = vmatprep.subr.bf16.mxu0 0
      %4023 = vmatpush1.bf16.msra.mxu0 %v3876
      %4024 = vmatprep.subr.bf16.mxu0 0
      %4025 = vmatpush2.bf16.msra.mxu0 0
      %4026 = vmatprep.subr.bf16.mxu0 0
      %4027 = vmatpush2.bf16.msra.mxu0 0
      %4028 = vmatprep.subr.bf16.mxu0 0
      %4029 = vmatpush2.bf16.msra.mxu0 0
      %4030 = vmatprep.subr.bf16.mxu0 0
      %4031 = vmatpush2.bf16.msra.mxu0 0
      %4032 = vmatprep.subr.bf16.mxu0 0
      %4033 = vmatpush2.bf16.msra.mxu0 0
      %4034 = vmatprep.subr.bf16.mxu0 0
      %4035 = vmatpush2.bf16.msra.mxu0 0
      %4036 = vmatprep.subr.bf16.mxu0 0
      %4037 = vmatpush2.bf16.msra.mxu0 0
      %4038 = vmatprep.subr.bf16.mxu0 0
      %4039 = vmatpush2.bf16.msra.mxu0 0
      %4040 = vmatprep.mubr.bf16.mxu0 0
      %4041 = vmatmul.mubr.bf16.gmra.mxu0 %v3961
      %v4042 = vpop.f32.mrf.mxu0
      %v4043 = vadd.f32 0.0, %v4042
      %v4044 = vpop.f32.mrf.mxu0
      %v4045 = vpop.f32.mrf.mxu0
      %v4046 = vadd.f32 0.0, %v4045
      %v4047 = vpop.f32.mrf.mxu0
      %4048 = vmatprep.mubr.bf16.mxu0 0
      %4049 = vmatmul.mubr.bf16.gmra.mxu0 %v3964
      %v4050 = vpop.f32.mrf.mxu0
      %v4051 = vadd.f32 0.0, %v4050
      %v4052 = vpop.f32.mrf.mxu0
      %v4053 = vpop.f32.mrf.mxu0
      %v4054 = vadd.f32 0.0, %v4053
      %v4055 = vpop.f32.mrf.mxu0
      %4056 = vmatprep.mubr.bf16.mxu0 0
      %4057 = vmatmul.mubr.bf16.gmra.mxu0 %v3967
      %v4058 = vpop.f32.mrf.mxu0
      %v4059 = vadd.f32 0.0, %v4058
      %v4060 = vpop.f32.mrf.mxu0
      %v4061 = vpop.f32.mrf.mxu0
      %v4062 = vadd.f32 0.0, %v4061
      %v4063 = vpop.f32.mrf.mxu0
      %4064 = vmatprep.mubr.bf16.mxu0 0
      %4065 = vmatmul.mubr.bf16.gmra.mxu0 %v3970
      %v4066 = vpop.f32.mrf.mxu0
      %v4067 = vadd.f32 0.0, %v4066
      %v4068 = vpop.f32.mrf.mxu0
      %v4069 = vpop.f32.mrf.mxu0
      %v4070 = vadd.f32 0.0, %v4069
      %v4071 = vpop.f32.mrf.mxu0
      %4072 = vmatprep.mubr.bf16.mxu0 0
      %4073 = vmatmul.mubr.bf16.gmra.mxu0 %v3973
      %v4074 = vpop.f32.mrf.mxu0
      %v4075 = vadd.f32 0.0, %v4074
      %v4076 = vpop.f32.mrf.mxu0
      %v4077 = vpop.f32.mrf.mxu0
      %v4078 = vadd.f32 0.0, %v4077
      %v4079 = vpop.f32.mrf.mxu0
      %4080 = vmatprep.mubr.bf16.mxu0 0
      %4081 = vmatmul.mubr.bf16.gmra.mxu0 %v3976
      %v4082 = vpop.f32.mrf.mxu0
      %v4083 = vadd.f32 0.0, %v4082
      %v4084 = vpop.f32.mrf.mxu0
      %v4085 = vpop.f32.mrf.mxu0
      %v4086 = vadd.f32 0.0, %v4085
      %v4087 = vpop.f32.mrf.mxu0
      %4088 = vmatprep.mubr.bf16.mxu0 0
      %4089 = vmatmul.mubr.bf16.gmra.mxu0 %v3979
      %v4090 = vpop.f32.mrf.mxu0
      %v4091 = vadd.f32 0.0, %v4090
      %v4092 = vpop.f32.mrf.mxu0
      %v4093 = vpop.f32.mrf.mxu0
      %v4094 = vadd.f32 0.0, %v4093
      %v4095 = vpop.f32.mrf.mxu0
      %4096 = vmatprep.mubr.bf16.mxu0 0
      %4097 = vmatmul.mubr.bf16.gmra.mxu0 %v3982
      %v4098 = vpop.f32.mrf.mxu0
      %v4099 = vadd.f32 0.0, %v4098
      %v4100 = vpop.f32.mrf.mxu0
      %v4101 = vpop.f32.mrf.mxu0
      %v4102 = vadd.f32 0.0, %v4101
      %v4103 = vpop.f32.mrf.mxu0
      %4104 = vmatprep.mubr.bf16.mxu0 0
      %4105 = vmatmul.mubr.bf16.gmra.mxu0 %v3985
      %v4106 = vpop.f32.mrf.mxu0
      %v4107 = vadd.f32 0.0, %v4106
      %v4108 = vpop.f32.mrf.mxu0
      %v4109 = vpop.f32.mrf.mxu0
      %v4110 = vadd.f32 0.0, %v4109
      %v4111 = vpop.f32.mrf.mxu0
      %4112 = vmatprep.mubr.bf16.mxu0 0
      %4113 = vmatmul.mubr.bf16.gmra.mxu0 %v3988
      %v4114 = vpop.f32.mrf.mxu0
      %v4115 = vadd.f32 0.0, %v4114
      %v4116 = vpop.f32.mrf.mxu0
      %v4117 = vpop.f32.mrf.mxu0
      %v4118 = vadd.f32 0.0, %v4117
      %v4119 = vpop.f32.mrf.mxu0
      %4120 = vmatprep.mubr.bf16.mxu0 0
      %4121 = vmatmul.mubr.bf16.gmra.mxu0 %v3991
      %v4122 = vpop.f32.mrf.mxu0
      %v4123 = vadd.f32 0.0, %v4122
      %v4124 = vpop.f32.mrf.mxu0
      %v4125 = vpop.f32.mrf.mxu0
      %v4126 = vadd.f32 0.0, %v4125
      %v4127 = vpop.f32.mrf.mxu0
      %4128 = vmatprep.mubr.bf16.mxu0 0
      %4129 = vmatmul.mubr.bf16.gmra.mxu0 %v3994
      %v4130 = vpop.f32.mrf.mxu0
      %v4131 = vadd.f32 0.0, %v4130
      %v4132 = vpop.f32.mrf.mxu0
      %v4133 = vpop.f32.mrf.mxu0
      %v4134 = vadd.f32 0.0, %v4133
      %v4135 = vpop.f32.mrf.mxu0
      %4136 = vmatprep.mubr.bf16.mxu0 0
      %4137 = vmatmul.mubr.bf16.gmra.mxu0 %v3997
      %v4138 = vpop.f32.mrf.mxu0
      %v4139 = vadd.f32 0.0, %v4138
      %v4140 = vpop.f32.mrf.mxu0
      %v4141 = vpop.f32.mrf.mxu0
      %v4142 = vadd.f32 0.0, %v4141
      %v4143 = vpop.f32.mrf.mxu0
      %4144 = vmatprep.mubr.bf16.mxu0 0
      %4145 = vmatmul.mubr.bf16.gmra.mxu0 %v4000
      %v4146 = vpop.f32.mrf.mxu0
      %v4147 = vadd.f32 0.0, %v4146
      %v4148 = vpop.f32.mrf.mxu0
      %v4149 = vpop.f32.mrf.mxu0
      %v4150 = vadd.f32 0.0, %v4149
      %v4151 = vpop.f32.mrf.mxu0
      %4152 = vmatprep.mubr.bf16.mxu0 0
      %4153 = vmatmul.mubr.bf16.gmra.mxu0 %v4003
      %v4154 = vpop.f32.mrf.mxu0
      %v4155 = vadd.f32 0.0, %v4154
      %v4156 = vpop.f32.mrf.mxu0
      %v4157 = vpop.f32.mrf.mxu0
      %v4158 = vadd.f32 0.0, %v4157
      %v4159 = vpop.f32.mrf.mxu0
      %4160 = vmatprep.mubr.bf16.mxu0 0
      %4161 = vmatmul.mubr.bf16.gmra.mxu0 %v4006
      %v4162 = vpop.f32.mrf.mxu0
      %v4163 = vadd.f32 0.0, %v4162
      %v4164 = vpop.f32.mrf.mxu0
      %v4165 = vpop.f32.mrf.mxu0
      %v4166 = vadd.f32 0.0, %v4165
      %v4167 = vpop.f32.mrf.mxu0
      %4168 = vdwg.mxu0
      %s4169 = scalar_lea.vmem [#allocation3], 24
      %4170 = vst.msk [vmem:[%s4169 + $0x1] sm:$0xff] %vm469, %v4043
      %4171 = vst.msk [vmem:[%s4169 + $0x9] sm:$0xff] %vm469, %v4046
      %4172 = vst.msk [vmem:[%s4169 + $0x19] sm:$0xff] %vm469, %v4051
      %4173 = vst.msk [vmem:[%s4169 + $0x21] sm:$0xff] %vm469, %v4054
      %4174 = vst.msk [vmem:[%s4169 + $0x31] sm:$0xff] %vm469, %v4059
      %4175 = vst.msk [vmem:[%s4169 + $0x39] sm:$0xff] %vm469, %v4062
      %4176 = vst.msk [vmem:[%s4169 + $0x49] sm:$0xff] %vm469, %v4067
      %4177 = vst.msk [vmem:[%s4169 + $0x51] sm:$0xff] %vm469, %v4070
      %4178 = vst.msk [vmem:[%s4169 + $0x61] sm:$0xff] %vm469, %v4075
      %4179 = vst.msk [vmem:[%s4169 + $0x69] sm:$0xff] %vm469, %v4078
      %4180 = vst.msk [vmem:[%s4169 + $0x79] sm:$0xff] %vm469, %v4083
      %4181 = vst.msk [vmem:[%s4169 + $0x81] sm:$0xff] %vm469, %v4086
      %4182 = vst.msk [vmem:[%s4169 + $0x91] sm:$0xff] %vm469, %v4091
      %4183 = vst.msk [vmem:[%s4169 + $0x99] sm:$0xff] %vm469, %v4094
      %4184 = vst.msk [vmem:[%s4169 + $0xa9] sm:$0xff] %vm469, %v4099
      %4185 = vst.msk [vmem:[%s4169 + $0xb1] sm:$0xff] %vm469, %v4102
      %4186 = vst.msk [vmem:[%s4169 + $0xc1] sm:$0xff] %vm469, %v4107
      %4187 = vst.msk [vmem:[%s4169 + $0xc9] sm:$0xff] %vm469, %v4110
      %4188 = vst.msk [vmem:[%s4169 + $0xd9] sm:$0xff] %vm469, %v4115
      %4189 = vst.msk [vmem:[%s4169 + $0xe1] sm:$0xff] %vm469, %v4118
      %4190 = vst.msk [vmem:[%s4169 + $0xf1] sm:$0xff] %vm469, %v4123
      %4191 = vst.msk [vmem:[%s4169 + $0xf9] sm:$0xff] %vm469, %v4126
      %4192 = vst.msk [vmem:[%s4169 + $0x109] sm:$0xff] %vm469, %v4131
      %4193 = vst.msk [vmem:[%s4169 + $0x111] sm:$0xff] %vm469, %v4134
      %4194 = vst.msk [vmem:[%s4169 + $0x121] sm:$0xff] %vm469, %v4139
      %4195 = vst.msk [vmem:[%s4169 + $0x129] sm:$0xff] %vm469, %v4142
      %4196 = vst.msk [vmem:[%s4169 + $0x139] sm:$0xff] %vm469, %v4147
      %4197 = vst.msk [vmem:[%s4169 + $0x141] sm:$0xff] %vm469, %v4150
      %4198 = vst.msk [vmem:[%s4169 + $0x151] sm:$0xff] %vm469, %v4155
      %4199 = vst.msk [vmem:[%s4169 + $0x159] sm:$0xff] %vm469, %v4158
      %4200 = vst.msk [vmem:[%s4169 + $0x169] sm:$0xff] %vm469, %v4163
      %4201 = vst.msk [vmem:[%s4169 + $0x171] sm:$0xff] %vm469, %v4166
      %v4202 = vld [vmem:[#allocation3] sm:$0xff]
      %v4203 = vld [vmem:[#allocation3 + $0x8] sm:$0xff]
      %v4204 = vld [vmem:[#allocation3 + $0x18] sm:$0xff]
      %v4205 = vld [vmem:[#allocation3 + $0x20] sm:$0xff]
      %v4206 = vld [vmem:[#allocation3 + $0x30] sm:$0xff]
      %v4207 = vld [vmem:[#allocation3 + $0x38] sm:$0xff]
      %v4208 = vld [vmem:[#allocation3 + $0x48] sm:$0xff]
      %v4209 = vld [vmem:[#allocation3 + $0x50] sm:$0xff]
      %v4210 = vld [vmem:[#allocation3 + $0x60] sm:$0xff]
      %v4211 = vld [vmem:[#allocation3 + $0x68] sm:$0xff]
      %v4212 = vld [vmem:[#allocation3 + $0x78] sm:$0xff]
      %v4213 = vld [vmem:[#allocation3 + $0x80] sm:$0xff]
      %v4214 = vld [vmem:[#allocation3 + $0x90] sm:$0xff]
      %v4215 = vld [vmem:[#allocation3 + $0x98] sm:$0xff]
      %v4216 = vld [vmem:[#allocation3 + $0xa8] sm:$0xff]
      %v4217 = vld [vmem:[#allocation3 + $0xb0] sm:$0xff]
      %v4218 = vld [vmem:[#allocation3 + $0xc0] sm:$0xff]
      %v4219 = vld [vmem:[#allocation3 + $0xc8] sm:$0xff]
      %v4220 = vld [vmem:[#allocation3 + $0xd8] sm:$0xff]
      %v4221 = vld [vmem:[#allocation3 + $0xe0] sm:$0xff]
      %v4222 = vld [vmem:[#allocation3 + $0xf0] sm:$0xff]
      %v4223 = vld [vmem:[#allocation3 + $0xf8] sm:$0xff]
      %v4224 = vld [vmem:[#allocation3 + $0x108] sm:$0xff]
      %v4225 = vld [vmem:[#allocation3 + $0x110] sm:$0xff]
      %v4226 = vld [vmem:[#allocation3 + $0x120] sm:$0xff]
      %v4227 = vld [vmem:[#allocation3 + $0x128] sm:$0xff]
      %v4228 = vld [vmem:[#allocation3 + $0x138] sm:$0xff]
      %v4229 = vld [vmem:[#allocation3 + $0x140] sm:$0xff]
      %v4230 = vld [vmem:[#allocation3 + $0x150] sm:$0xff]
      %v4231 = vld [vmem:[#allocation3 + $0x158] sm:$0xff]
      %v4232 = vld [vmem:[#allocation3 + $0x168] sm:$0xff]
      %v4233 = vld [vmem:[#allocation3 + $0x170] sm:$0xff]
      %v4234 = vld [vmem:[#allocation3 + $0x1] sm:$0xff]
      %v4235 = vld [vmem:[#allocation3 + $0x9] sm:$0xff]
      %v4236 = vld [vmem:[#allocation3 + $0x19] sm:$0xff]
      %v4237 = vld [vmem:[#allocation3 + $0x21] sm:$0xff]
      %v4238 = vld [vmem:[#allocation3 + $0x31] sm:$0xff]
      %v4239 = vld [vmem:[#allocation3 + $0x39] sm:$0xff]
      %v4240 = vld [vmem:[#allocation3 + $0x49] sm:$0xff]
      %v4241 = vld [vmem:[#allocation3 + $0x51] sm:$0xff]
      %v4242 = vld [vmem:[#allocation3 + $0x61] sm:$0xff]
      %v4243 = vld [vmem:[#allocation3 + $0x69] sm:$0xff]
      %v4244 = vld [vmem:[#allocation3 + $0x79] sm:$0xff]
      %v4245 = vld [vmem:[#allocation3 + $0x81] sm:$0xff]
      %v4246 = vld [vmem:[#allocation3 + $0x91] sm:$0xff]
      %v4247 = vld [vmem:[#allocation3 + $0x99] sm:$0xff]
      %v4248 = vld [vmem:[#allocation3 + $0xa9] sm:$0xff]
      %v4249 = vld [vmem:[#allocation3 + $0xb1] sm:$0xff]
      %v4250 = vld [vmem:[#allocation3 + $0xc1] sm:$0xff]
      %v4251 = vld [vmem:[#allocation3 + $0xc9] sm:$0xff]
      %v4252 = vld [vmem:[#allocation3 + $0xd9] sm:$0xff]
      %v4253 = vld [vmem:[#allocation3 + $0xe1] sm:$0xff]
      %v4254 = vld [vmem:[#allocation3 + $0xf1] sm:$0xff]
      %v4255 = vld [vmem:[#allocation3 + $0xf9] sm:$0xff]
      %v4256 = vld [vmem:[#allocation3 + $0x109] sm:$0xff]
      %v4257 = vld [vmem:[#allocation3 + $0x111] sm:$0xff]
      %v4258 = vld [vmem:[#allocation3 + $0x121] sm:$0xff]
      %v4259 = vld [vmem:[#allocation3 + $0x129] sm:$0xff]
      %v4260 = vld [vmem:[#allocation3 + $0x139] sm:$0xff]
      %v4261 = vld [vmem:[#allocation3 + $0x141] sm:$0xff]
      %v4262 = vld [vmem:[#allocation3 + $0x151] sm:$0xff]
      %v4263 = vld [vmem:[#allocation3 + $0x159] sm:$0xff]
      %v4264 = vld [vmem:[#allocation3 + $0x169] sm:$0xff]
      %v4265 = vld [vmem:[#allocation3 + $0x171] sm:$0xff]
      %v4266 = vld [vmem:[#allocation3 + $0x2] sm:$0xff]
      %v4267 = vld [vmem:[#allocation3 + $0xa] sm:$0xff]
      %v4268 = vld [vmem:[#allocation3 + $0x1a] sm:$0xff]
      %v4269 = vld [vmem:[#allocation3 + $0x22] sm:$0xff]
      %v4270 = vld [vmem:[#allocation3 + $0x32] sm:$0xff]
      %v4271 = vld [vmem:[#allocation3 + $0x3a] sm:$0xff]
      %v4272 = vld [vmem:[#allocation3 + $0x4a] sm:$0xff]
      %v4273 = vld [vmem:[#allocation3 + $0x52] sm:$0xff]
      %v4274 = vld [vmem:[#allocation3 + $0x62] sm:$0xff]
      %v4275 = vld [vmem:[#allocation3 + $0x6a] sm:$0xff]
      %v4276 = vld [vmem:[#allocation3 + $0x7a] sm:$0xff]
      %v4277 = vld [vmem:[#allocation3 + $0x82] sm:$0xff]
      %v4278 = vld [vmem:[#allocation3 + $0x92] sm:$0xff]
      %v4279 = vld [vmem:[#allocation3 + $0x9a] sm:$0xff]
      %v4280 = vld [vmem:[#allocation3 + $0xaa] sm:$0xff]
      %v4281 = vld [vmem:[#allocation3 + $0xb2] sm:$0xff]
      %v4282 = vld [vmem:[#allocation3 + $0xc2] sm:$0xff]
      %v4283 = vld [vmem:[#allocation3 + $0xca] sm:$0xff]
      %v4284 = vld [vmem:[#allocation3 + $0xda] sm:$0xff]
      %v4285 = vld [vmem:[#allocation3 + $0xe2] sm:$0xff]
      %v4286 = vld [vmem:[#allocation3 + $0xf2] sm:$0xff]
      %v4287 = vld [vmem:[#allocation3 + $0xfa] sm:$0xff]
      %v4288 = vld [vmem:[#allocation3 + $0x10a] sm:$0xff]
      %v4289 = vld [vmem:[#allocation3 + $0x112] sm:$0xff]
      %v4290 = vld [vmem:[#allocation3 + $0x122] sm:$0xff]
      %v4291 = vld [vmem:[#allocation3 + $0x12a] sm:$0xff]
      %v4292 = vld [vmem:[#allocation3 + $0x13a] sm:$0xff]
      %v4293 = vld [vmem:[#allocation3 + $0x142] sm:$0xff]
      %v4294 = vld [vmem:[#allocation3 + $0x152] sm:$0xff]
      %v4295 = vld [vmem:[#allocation3 + $0x15a] sm:$0xff]
      %v4296 = vld [vmem:[#allocation3 + $0x16a] sm:$0xff]
      %v4297 = vld [vmem:[#allocation3 + $0x172] sm:$0xff]
      %v4298 = vld [vmem:[%s4169] sm:$0xff]
      %v4299 = vld [vmem:[%s4169 + $0x8] sm:$0xff]
      %v4300 = vld [vmem:[%s4169 + $0x18] sm:$0xff]
      %v4301 = vld [vmem:[%s4169 + $0x20] sm:$0xff]
      %v4302 = vld [vmem:[%s4169 + $0x30] sm:$0xff]
      %v4303 = vld [vmem:[%s4169 + $0x38] sm:$0xff]
      %v4304 = vld [vmem:[%s4169 + $0x48] sm:$0xff]
      %v4305 = vld [vmem:[%s4169 + $0x50] sm:$0xff]
      %v4306 = vld [vmem:[%s4169 + $0x60] sm:$0xff]
      %v4307 = vld [vmem:[%s4169 + $0x68] sm:$0xff]
      %v4308 = vld [vmem:[%s4169 + $0x78] sm:$0xff]
      %v4309 = vld [vmem:[%s4169 + $0x80] sm:$0xff]
      %v4310 = vld [vmem:[%s4169 + $0x90] sm:$0xff]
      %v4311 = vld [vmem:[%s4169 + $0x98] sm:$0xff]
      %v4312 = vld [vmem:[%s4169 + $0xa8] sm:$0xff]
      %v4313 = vld [vmem:[%s4169 + $0xb0] sm:$0xff]
      %v4314 = vld [vmem:[%s4169 + $0xc0] sm:$0xff]
      %v4315 = vld [vmem:[%s4169 + $0xc8] sm:$0xff]
      %v4316 = vld [vmem:[%s4169 + $0xd8] sm:$0xff]
      %v4317 = vld [vmem:[%s4169 + $0xe0] sm:$0xff]
      %v4318 = vld [vmem:[%s4169 + $0xf0] sm:$0xff]
      %v4319 = vld [vmem:[%s4169 + $0xf8] sm:$0xff]
      %v4320 = vld [vmem:[%s4169 + $0x108] sm:$0xff]
      %v4321 = vld [vmem:[%s4169 + $0x110] sm:$0xff]
      %v4322 = vld [vmem:[%s4169 + $0x120] sm:$0xff]
      %v4323 = vld [vmem:[%s4169 + $0x128] sm:$0xff]
      %v4324 = vld [vmem:[%s4169 + $0x138] sm:$0xff]
      %v4325 = vld [vmem:[%s4169 + $0x140] sm:$0xff]
      %v4326 = vld [vmem:[%s4169 + $0x150] sm:$0xff]
      %v4327 = vld [vmem:[%s4169 + $0x158] sm:$0xff]
      %v4328 = vld [vmem:[%s4169 + $0x168] sm:$0xff]
      %v4329 = vld [vmem:[%s4169 + $0x170] sm:$0xff]
      %v4330 = vld [vmem:[%s4169 + $0x1] sm:$0xff]
      %v4331 = vld [vmem:[%s4169 + $0x9] sm:$0xff]
      %v4332 = vld [vmem:[%s4169 + $0x19] sm:$0xff]
      %v4333 = vld [vmem:[%s4169 + $0x21] sm:$0xff]
      %v4334 = vld [vmem:[%s4169 + $0x31] sm:$0xff]
      %v4335 = vld [vmem:[%s4169 + $0x39] sm:$0xff]
      %v4336 = vld [vmem:[%s4169 + $0x49] sm:$0xff]
      %v4337 = vld [vmem:[%s4169 + $0x51] sm:$0xff]
      %v4338 = vld [vmem:[%s4169 + $0x61] sm:$0xff]
      %v4339 = vld [vmem:[%s4169 + $0x69] sm:$0xff]
      %v4340 = vld [vmem:[%s4169 + $0x79] sm:$0xff]
      %v4341 = vld [vmem:[%s4169 + $0x81] sm:$0xff]
      %v4342 = vld [vmem:[%s4169 + $0x91] sm:$0xff]
      %v4343 = vld [vmem:[%s4169 + $0x99] sm:$0xff]
      %v4344 = vld [vmem:[%s4169 + $0xa9] sm:$0xff]
      %v4345 = vld [vmem:[%s4169 + $0xb1] sm:$0xff]
      %v4346 = vld [vmem:[%s4169 + $0xc1] sm:$0xff]
      %v4347 = vld [vmem:[%s4169 + $0xc9] sm:$0xff]
      %v4348 = vld [vmem:[%s4169 + $0xd9] sm:$0xff]
      %v4349 = vld [vmem:[%s4169 + $0xe1] sm:$0xff]
      %v4350 = vld [vmem:[%s4169 + $0xf1] sm:$0xff]
      %v4351 = vld [vmem:[%s4169 + $0xf9] sm:$0xff]
      %v4352 = vld [vmem:[%s4169 + $0x109] sm:$0xff]
      %v4353 = vld [vmem:[%s4169 + $0x111] sm:$0xff]
      %v4354 = vld [vmem:[%s4169 + $0x121] sm:$0xff]
      %v4355 = vld [vmem:[%s4169 + $0x129] sm:$0xff]
      %v4356 = vld [vmem:[%s4169 + $0x139] sm:$0xff]
      %v4357 = vld [vmem:[%s4169 + $0x141] sm:$0xff]
      %v4358 = vld [vmem:[%s4169 + $0x151] sm:$0xff]
      %v4359 = vld [vmem:[%s4169 + $0x159] sm:$0xff]
      %v4360 = vld [vmem:[%s4169 + $0x169] sm:$0xff]
      %v4361 = vld [vmem:[%s4169 + $0x171] sm:$0xff]
      %v4362 = vld [vmem:[%s4169 + $0x2] sm:$0xff]
      %v4363 = vld [vmem:[%s4169 + $0xa] sm:$0xff]
      %v4364 = vld [vmem:[%s4169 + $0x1a] sm:$0xff]
      %v4365 = vld [vmem:[%s4169 + $0x22] sm:$0xff]
      %v4366 = vld [vmem:[%s4169 + $0x32] sm:$0xff]
      %v4367 = vld [vmem:[%s4169 + $0x3a] sm:$0xff]
      %v4368 = vld [vmem:[%s4169 + $0x4a] sm:$0xff]
      %v4369 = vld [vmem:[%s4169 + $0x52] sm:$0xff]
      %v4370 = vld [vmem:[%s4169 + $0x62] sm:$0xff]
      %v4371 = vld [vmem:[%s4169 + $0x6a] sm:$0xff]
      %v4372 = vld [vmem:[%s4169 + $0x7a] sm:$0xff]
      %v4373 = vld [vmem:[%s4169 + $0x82] sm:$0xff]
      %v4374 = vld [vmem:[%s4169 + $0x92] sm:$0xff]
      %v4375 = vld [vmem:[%s4169 + $0x9a] sm:$0xff]
      %v4376 = vld [vmem:[%s4169 + $0xaa] sm:$0xff]
      %v4377 = vld [vmem:[%s4169 + $0xb2] sm:$0xff]
      %v4378 = vld [vmem:[%s4169 + $0xc2] sm:$0xff]
      %v4379 = vld [vmem:[%s4169 + $0xca] sm:$0xff]
      %v4380 = vld [vmem:[%s4169 + $0xda] sm:$0xff]
      %v4381 = vld [vmem:[%s4169 + $0xe2] sm:$0xff]
      %v4382 = vld [vmem:[%s4169 + $0xf2] sm:$0xff]
      %v4383 = vld [vmem:[%s4169 + $0xfa] sm:$0xff]
      %v4384 = vld [vmem:[%s4169 + $0x10a] sm:$0xff]
      %v4385 = vld [vmem:[%s4169 + $0x112] sm:$0xff]
      %v4386 = vld [vmem:[%s4169 + $0x122] sm:$0xff]
      %v4387 = vld [vmem:[%s4169 + $0x12a] sm:$0xff]
      %v4388 = vld [vmem:[%s4169 + $0x13a] sm:$0xff]
      %v4389 = vld [vmem:[%s4169 + $0x142] sm:$0xff]
      %v4390 = vld [vmem:[%s4169 + $0x152] sm:$0xff]
      %v4391 = vld [vmem:[%s4169 + $0x15a] sm:$0xff]
      %v4392 = vld [vmem:[%s4169 + $0x16a] sm:$0xff]
      %v4393 = vld [vmem:[%s4169 + $0x172] sm:$0xff]
      %s4394 = scalar_lea.vmem [#allocation3], 48
      %v4395 = vld [vmem:[%s4394] sm:$0xff]
      %v4396 = vld [vmem:[%s4394 + $0x8] sm:$0xff]
      %v4397 = vld [vmem:[%s4394 + $0x18] sm:$0xff]
      %v4398 = vld [vmem:[%s4394 + $0x20] sm:$0xff]
      %v4399 = vld [vmem:[%s4394 + $0x30] sm:$0xff]
      %v4400 = vld [vmem:[%s4394 + $0x38] sm:$0xff]
      %v4401 = vld [vmem:[%s4394 + $0x48] sm:$0xff]
      %v4402 = vld [vmem:[%s4394 + $0x50] sm:$0xff]
      %v4403 = vld [vmem:[%s4394 + $0x60] sm:$0xff]
      %v4404 = vld [vmem:[%s4394 + $0x68] sm:$0xff]
      %v4405 = vld [vmem:[%s4394 + $0x78] sm:$0xff]
      %v4406 = vld [vmem:[%s4394 + $0x80] sm:$0xff]
      %v4407 = vld [vmem:[%s4394 + $0x90] sm:$0xff]
      %v4408 = vld [vmem:[%s4394 + $0x98] sm:$0xff]
      %v4409 = vld [vmem:[%s4394 + $0xa8] sm:$0xff]
      %v4410 = vld [vmem:[%s4394 + $0xb0] sm:$0xff]
      %v4411 = vld [vmem:[%s4394 + $0xc0] sm:$0xff]
      %v4412 = vld [vmem:[%s4394 + $0xc8] sm:$0xff]
      %v4413 = vld [vmem:[%s4394 + $0xd8] sm:$0xff]
      %v4414 = vld [vmem:[%s4394 + $0xe0] sm:$0xff]
      %v4415 = vld [vmem:[%s4394 + $0xf0] sm:$0xff]
      %v4416 = vld [vmem:[%s4394 + $0xf8] sm:$0xff]
      %v4417 = vld [vmem:[%s4394 + $0x108] sm:$0xff]
      %v4418 = vld [vmem:[%s4394 + $0x110] sm:$0xff]
      %v4419 = vld [vmem:[%s4394 + $0x120] sm:$0xff]
      %v4420 = vld [vmem:[%s4394 + $0x128] sm:$0xff]
      %v4421 = vld [vmem:[%s4394 + $0x138] sm:$0xff]
      %v4422 = vld [vmem:[%s4394 + $0x140] sm:$0xff]
      %v4423 = vld [vmem:[%s4394 + $0x150] sm:$0xff]
      %v4424 = vld [vmem:[%s4394 + $0x158] sm:$0xff]
      %v4425 = vld [vmem:[%s4394 + $0x168] sm:$0xff]
      %v4426 = vld [vmem:[%s4394 + $0x170] sm:$0xff]
      %v4427 = vld [vmem:[%s4394 + $0x1] sm:$0xff]
      %v4428 = vld [vmem:[%s4394 + $0x9] sm:$0xff]
      %v4429 = vld [vmem:[%s4394 + $0x19] sm:$0xff]
      %v4430 = vld [vmem:[%s4394 + $0x21] sm:$0xff]
      %v4431 = vld [vmem:[%s4394 + $0x31] sm:$0xff]
      %v4432 = vld [vmem:[%s4394 + $0x39] sm:$0xff]
      %v4433 = vld [vmem:[%s4394 + $0x49] sm:$0xff]
      %v4434 = vld [vmem:[%s4394 + $0x51] sm:$0xff]
      %v4435 = vld [vmem:[%s4394 + $0x61] sm:$0xff]
      %v4436 = vld [vmem:[%s4394 + $0x69] sm:$0xff]
      %v4437 = vld [vmem:[%s4394 + $0x79] sm:$0xff]
      %v4438 = vld [vmem:[%s4394 + $0x81] sm:$0xff]
      %v4439 = vld [vmem:[%s4394 + $0x91] sm:$0xff]
      %v4440 = vld [vmem:[%s4394 + $0x99] sm:$0xff]
      %v4441 = vld [vmem:[%s4394 + $0xa9] sm:$0xff]
      %v4442 = vld [vmem:[%s4394 + $0xb1] sm:$0xff]
      %v4443 = vld [vmem:[%s4394 + $0xc1] sm:$0xff]
      %v4444 = vld [vmem:[%s4394 + $0xc9] sm:$0xff]
      %v4445 = vld [vmem:[%s4394 + $0xd9] sm:$0xff]
      %v4446 = vld [vmem:[%s4394 + $0xe1] sm:$0xff]
      %v4447 = vld [vmem:[%s4394 + $0xf1] sm:$0xff]
      %v4448 = vld [vmem:[%s4394 + $0xf9] sm:$0xff]
      %v4449 = vld [vmem:[%s4394 + $0x109] sm:$0xff]
      %v4450 = vld [vmem:[%s4394 + $0x111] sm:$0xff]
      %v4451 = vld [vmem:[%s4394 + $0x121] sm:$0xff]
      %v4452 = vld [vmem:[%s4394 + $0x129] sm:$0xff]
      %v4453 = vld [vmem:[%s4394 + $0x139] sm:$0xff]
      %v4454 = vld [vmem:[%s4394 + $0x141] sm:$0xff]
      %v4455 = vld [vmem:[%s4394 + $0x151] sm:$0xff]
      %v4456 = vld [vmem:[%s4394 + $0x159] sm:$0xff]
      %v4457 = vld [vmem:[%s4394 + $0x169] sm:$0xff]
      %v4458 = vld [vmem:[%s4394 + $0x171] sm:$0xff]
      %v4459 = vld [vmem:[%s4394 + $0x2] sm:$0xff]
      %v4460 = vld [vmem:[%s4394 + $0xa] sm:$0xff]
      %v4461 = vld [vmem:[%s4394 + $0x1a] sm:$0xff]
      %v4462 = vld [vmem:[%s4394 + $0x22] sm:$0xff]
      %v4463 = vld [vmem:[%s4394 + $0x32] sm:$0xff]
      %v4464 = vld [vmem:[%s4394 + $0x3a] sm:$0xff]
      %v4465 = vld [vmem:[%s4394 + $0x4a] sm:$0xff]
      %v4466 = vld [vmem:[%s4394 + $0x52] sm:$0xff]
      %v4467 = vld [vmem:[%s4394 + $0x62] sm:$0xff]
      %v4468 = vld [vmem:[%s4394 + $0x6a] sm:$0xff]
      %v4469 = vld [vmem:[%s4394 + $0x7a] sm:$0xff]
      %v4470 = vld [vmem:[%s4394 + $0x82] sm:$0xff]
      %v4471 = vld [vmem:[%s4394 + $0x92] sm:$0xff]
      %v4472 = vld [vmem:[%s4394 + $0x9a] sm:$0xff]
      %v4473 = vld [vmem:[%s4394 + $0xaa] sm:$0xff]
      %v4474 = vld [vmem:[%s4394 + $0xb2] sm:$0xff]
      %v4475 = vld [vmem:[%s4394 + $0xc2] sm:$0xff]
      %v4476 = vld [vmem:[%s4394 + $0xca] sm:$0xff]
      %v4477 = vld [vmem:[%s4394 + $0xda] sm:$0xff]
      %v4478 = vld [vmem:[%s4394 + $0xe2] sm:$0xff]
      %v4479 = vld [vmem:[%s4394 + $0xf2] sm:$0xff]
      %v4480 = vld [vmem:[%s4394 + $0xfa] sm:$0xff]
      %v4481 = vld [vmem:[%s4394 + $0x10a] sm:$0xff]
      %v4482 = vld [vmem:[%s4394 + $0x112] sm:$0xff]
      %v4483 = vld [vmem:[%s4394 + $0x122] sm:$0xff]
      %v4484 = vld [vmem:[%s4394 + $0x12a] sm:$0xff]
      %v4485 = vld [vmem:[%s4394 + $0x13a] sm:$0xff]
      %v4486 = vld [vmem:[%s4394 + $0x142] sm:$0xff]
      %v4487 = vld [vmem:[%s4394 + $0x152] sm:$0xff]
      %v4488 = vld [vmem:[%s4394 + $0x15a] sm:$0xff]
      %v4489 = vld [vmem:[%s4394 + $0x16a] sm:$0xff]
      %v4490 = vld [vmem:[%s4394 + $0x172] sm:$0xff]
      %4523 = vrot.lane.b32.xlu0 %v4234, 64
      %v4524 = vpop.permute.xlu0 %4523
      %4525 = vrot.lane.b32.xlu0 %v4235, 64
      %v4526 = vpop.permute.xlu0 %4525
      %4527 = vrot.lane.b32.xlu0 %v4236, 64
      %v4528 = vpop.permute.xlu0 %4527
      %4529 = vrot.lane.b32.xlu0 %v4237, 64
      %v4530 = vpop.permute.xlu0 %4529
      %4531 = vrot.lane.b32.xlu0 %v4238, 64
      %v4532 = vpop.permute.xlu0 %4531
      %4533 = vrot.lane.b32.xlu0 %v4239, 64
      %v4534 = vpop.permute.xlu0 %4533
      %4535 = vrot.lane.b32.xlu0 %v4240, 64
      %v4536 = vpop.permute.xlu0 %4535
      %4537 = vrot.lane.b32.xlu0 %v4241, 64
      %v4538 = vpop.permute.xlu0 %4537
      %4539 = vrot.lane.b32.xlu0 %v4242, 64
      %v4540 = vpop.permute.xlu0 %4539
      %4541 = vrot.lane.b32.xlu0 %v4243, 64
      %v4542 = vpop.permute.xlu0 %4541
      %4543 = vrot.lane.b32.xlu0 %v4244, 64
      %v4544 = vpop.permute.xlu0 %4543
      %4545 = vrot.lane.b32.xlu0 %v4245, 64
      %v4546 = vpop.permute.xlu0 %4545
      %4547 = vrot.lane.b32.xlu0 %v4246, 64
      %v4548 = vpop.permute.xlu0 %4547
      %4549 = vrot.lane.b32.xlu0 %v4247, 64
      %v4550 = vpop.permute.xlu0 %4549
      %4551 = vrot.lane.b32.xlu0 %v4248, 64
      %v4552 = vpop.permute.xlu0 %4551
      %4553 = vrot.lane.b32.xlu0 %v4249, 64
      %v4554 = vpop.permute.xlu0 %4553
      %4555 = vrot.lane.b32.xlu0 %v4250, 64
      %v4556 = vpop.permute.xlu0 %4555
      %4557 = vrot.lane.b32.xlu0 %v4251, 64
      %v4558 = vpop.permute.xlu0 %4557
      %4559 = vrot.lane.b32.xlu0 %v4252, 64
      %v4560 = vpop.permute.xlu0 %4559
      %4561 = vrot.lane.b32.xlu0 %v4253, 64
      %v4562 = vpop.permute.xlu0 %4561
      %4563 = vrot.lane.b32.xlu0 %v4254, 64
      %v4564 = vpop.permute.xlu0 %4563
      %4565 = vrot.lane.b32.xlu0 %v4255, 64
      %v4566 = vpop.permute.xlu0 %4565
      %4567 = vrot.lane.b32.xlu0 %v4256, 64
      %v4568 = vpop.permute.xlu0 %4567
      %4569 = vrot.lane.b32.xlu0 %v4257, 64
      %v4570 = vpop.permute.xlu0 %4569
      %4571 = vrot.lane.b32.xlu0 %v4258, 64
      %v4572 = vpop.permute.xlu0 %4571
      %4573 = vrot.lane.b32.xlu0 %v4259, 64
      %v4574 = vpop.permute.xlu0 %4573
      %4575 = vrot.lane.b32.xlu0 %v4260, 64
      %v4576 = vpop.permute.xlu0 %4575
      %4577 = vrot.lane.b32.xlu0 %v4261, 64
      %v4578 = vpop.permute.xlu0 %4577
      %4579 = vrot.lane.b32.xlu0 %v4262, 64
      %v4580 = vpop.permute.xlu0 %4579
      %4581 = vrot.lane.b32.xlu0 %v4263, 64
      %v4582 = vpop.permute.xlu0 %4581
      %4583 = vrot.lane.b32.xlu0 %v4264, 64
      %v4584 = vpop.permute.xlu0 %4583
      %4585 = vrot.lane.b32.xlu0 %v4265, 64
      %v4586 = vpop.permute.xlu0 %4585
      %4651 = vrot.lane.b32.xlu0 %v4298, 64
      %v4652 = vpop.permute.xlu0 %4651
      %4653 = vrot.lane.b32.xlu0 %v4299, 64
      %v4654 = vpop.permute.xlu0 %4653
      %4655 = vrot.lane.b32.xlu0 %v4300, 64
      %v4656 = vpop.permute.xlu0 %4655
      %4657 = vrot.lane.b32.xlu0 %v4301, 64
      %v4658 = vpop.permute.xlu0 %4657
      %4659 = vrot.lane.b32.xlu0 %v4302, 64
      %v4660 = vpop.permute.xlu0 %4659
      %4661 = vrot.lane.b32.xlu0 %v4303, 64
      %v4662 = vpop.permute.xlu0 %4661
      %4663 = vrot.lane.b32.xlu0 %v4304, 64
      %v4664 = vpop.permute.xlu0 %4663
      %4665 = vrot.lane.b32.xlu0 %v4305, 64
      %v4666 = vpop.permute.xlu0 %4665
      %4667 = vrot.lane.b32.xlu0 %v4306, 64
      %v4668 = vpop.permute.xlu0 %4667
      %4669 = vrot.lane.b32.xlu0 %v4307, 64
      %v4670 = vpop.permute.xlu0 %4669
      %4671 = vrot.lane.b32.xlu0 %v4308, 64
      %v4672 = vpop.permute.xlu0 %4671
      %4673 = vrot.lane.b32.xlu0 %v4309, 64
      %v4674 = vpop.permute.xlu0 %4673
      %4675 = vrot.lane.b32.xlu0 %v4310, 64
      %v4676 = vpop.permute.xlu0 %4675
      %4677 = vrot.lane.b32.xlu0 %v4311, 64
      %v4678 = vpop.permute.xlu0 %4677
      %4679 = vrot.lane.b32.xlu0 %v4312, 64
      %v4680 = vpop.permute.xlu0 %4679
      %4681 = vrot.lane.b32.xlu0 %v4313, 64
      %v4682 = vpop.permute.xlu0 %4681
      %4683 = vrot.lane.b32.xlu0 %v4314, 64
      %v4684 = vpop.permute.xlu0 %4683
      %4685 = vrot.lane.b32.xlu0 %v4315, 64
      %v4686 = vpop.permute.xlu0 %4685
      %4687 = vrot.lane.b32.xlu0 %v4316, 64
      %v4688 = vpop.permute.xlu0 %4687
      %4689 = vrot.lane.b32.xlu0 %v4317, 64
      %v4690 = vpop.permute.xlu0 %4689
      %4691 = vrot.lane.b32.xlu0 %v4318, 64
      %v4692 = vpop.permute.xlu0 %4691
      %4693 = vrot.lane.b32.xlu0 %v4319, 64
      %v4694 = vpop.permute.xlu0 %4693
      %4695 = vrot.lane.b32.xlu0 %v4320, 64
      %v4696 = vpop.permute.xlu0 %4695
      %4697 = vrot.lane.b32.xlu0 %v4321, 64
      %v4698 = vpop.permute.xlu0 %4697
      %4699 = vrot.lane.b32.xlu0 %v4322, 64
      %v4700 = vpop.permute.xlu0 %4699
      %4701 = vrot.lane.b32.xlu0 %v4323, 64
      %v4702 = vpop.permute.xlu0 %4701
      %4703 = vrot.lane.b32.xlu0 %v4324, 64
      %v4704 = vpop.permute.xlu0 %4703
      %4705 = vrot.lane.b32.xlu0 %v4325, 64
      %v4706 = vpop.permute.xlu0 %4705
      %4707 = vrot.lane.b32.xlu0 %v4326, 64
      %v4708 = vpop.permute.xlu0 %4707
      %4709 = vrot.lane.b32.xlu0 %v4327, 64
      %v4710 = vpop.permute.xlu0 %4709
      %4711 = vrot.lane.b32.xlu0 %v4328, 64
      %v4712 = vpop.permute.xlu0 %4711
      %4713 = vrot.lane.b32.xlu0 %v4329, 64
      %v4714 = vpop.permute.xlu0 %4713
      %4779 = vrot.lane.b32.xlu0 %v4362, 64
      %v4780 = vpop.permute.xlu0 %4779
      %4781 = vrot.lane.b32.xlu0 %v4363, 64
      %v4782 = vpop.permute.xlu0 %4781
      %4783 = vrot.lane.b32.xlu0 %v4364, 64
      %v4784 = vpop.permute.xlu0 %4783
      %4785 = vrot.lane.b32.xlu0 %v4365, 64
      %v4786 = vpop.permute.xlu0 %4785
      %4787 = vrot.lane.b32.xlu0 %v4366, 64
      %v4788 = vpop.permute.xlu0 %4787
      %4789 = vrot.lane.b32.xlu0 %v4367, 64
      %v4790 = vpop.permute.xlu0 %4789
      %4791 = vrot.lane.b32.xlu0 %v4368, 64
      %v4792 = vpop.permute.xlu0 %4791
      %4793 = vrot.lane.b32.xlu0 %v4369, 64
      %v4794 = vpop.permute.xlu0 %4793
      %4795 = vrot.lane.b32.xlu0 %v4370, 64
      %v4796 = vpop.permute.xlu0 %4795
      %4797 = vrot.lane.b32.xlu0 %v4371, 64
      %v4798 = vpop.permute.xlu0 %4797
      %4799 = vrot.lane.b32.xlu0 %v4372, 64
      %v4800 = vpop.permute.xlu0 %4799
      %4801 = vrot.lane.b32.xlu0 %v4373, 64
      %v4802 = vpop.permute.xlu0 %4801
      %4803 = vrot.lane.b32.xlu0 %v4374, 64
      %v4804 = vpop.permute.xlu0 %4803
      %4805 = vrot.lane.b32.xlu0 %v4375, 64
      %v4806 = vpop.permute.xlu0 %4805
      %4807 = vrot.lane.b32.xlu0 %v4376, 64
      %v4808 = vpop.permute.xlu0 %4807
      %4809 = vrot.lane.b32.xlu0 %v4377, 64
      %v4810 = vpop.permute.xlu0 %4809
      %4811 = vrot.lane.b32.xlu0 %v4378, 64
      %v4812 = vpop.permute.xlu0 %4811
      %4813 = vrot.lane.b32.xlu0 %v4379, 64
      %v4814 = vpop.permute.xlu0 %4813
      %4815 = vrot.lane.b32.xlu0 %v4380, 64
      %v4816 = vpop.permute.xlu0 %4815
      %4817 = vrot.lane.b32.xlu0 %v4381, 64
      %v4818 = vpop.permute.xlu0 %4817
      %4819 = vrot.lane.b32.xlu0 %v4382, 64
      %v4820 = vpop.permute.xlu0 %4819
      %4821 = vrot.lane.b32.xlu0 %v4383, 64
      %v4822 = vpop.permute.xlu0 %4821
      %4823 = vrot.lane.b32.xlu0 %v4384, 64
      %v4824 = vpop.permute.xlu0 %4823
      %4825 = vrot.lane.b32.xlu0 %v4385, 64
      %v4826 = vpop.permute.xlu0 %4825
      %4827 = vrot.lane.b32.xlu0 %v4386, 64
      %v4828 = vpop.permute.xlu0 %4827
      %4829 = vrot.lane.b32.xlu0 %v4387, 64
      %v4830 = vpop.permute.xlu0 %4829
      %4831 = vrot.lane.b32.xlu0 %v4388, 64
      %v4832 = vpop.permute.xlu0 %4831
      %4833 = vrot.lane.b32.xlu0 %v4389, 64
      %v4834 = vpop.permute.xlu0 %4833
      %4835 = vrot.lane.b32.xlu0 %v4390, 64
      %v4836 = vpop.permute.xlu0 %4835
      %4837 = vrot.lane.b32.xlu0 %v4391, 64
      %v4838 = vpop.permute.xlu0 %4837
      %4839 = vrot.lane.b32.xlu0 %v4392, 64
      %v4840 = vpop.permute.xlu0 %4839
      %4841 = vrot.lane.b32.xlu0 %v4393, 64
      %v4842 = vpop.permute.xlu0 %4841
      %4907 = vrot.lane.b32.xlu0 %v4427, 64
      %v4908 = vpop.permute.xlu0 %4907
      %4909 = vrot.lane.b32.xlu0 %v4428, 64
      %v4910 = vpop.permute.xlu0 %4909
      %4911 = vrot.lane.b32.xlu0 %v4429, 64
      %v4912 = vpop.permute.xlu0 %4911
      %4913 = vrot.lane.b32.xlu0 %v4430, 64
      %v4914 = vpop.permute.xlu0 %4913
      %4915 = vrot.lane.b32.xlu0 %v4431, 64
      %v4916 = vpop.permute.xlu0 %4915
      %4917 = vrot.lane.b32.xlu0 %v4432, 64
      %v4918 = vpop.permute.xlu0 %4917
      %4919 = vrot.lane.b32.xlu0 %v4433, 64
      %v4920 = vpop.permute.xlu0 %4919
      %4921 = vrot.lane.b32.xlu0 %v4434, 64
      %v4922 = vpop.permute.xlu0 %4921
      %4923 = vrot.lane.b32.xlu0 %v4435, 64
      %v4924 = vpop.permute.xlu0 %4923
      %4925 = vrot.lane.b32.xlu0 %v4436, 64
      %v4926 = vpop.permute.xlu0 %4925
      %4927 = vrot.lane.b32.xlu0 %v4437, 64
      %v4928 = vpop.permute.xlu0 %4927
      %4929 = vrot.lane.b32.xlu0 %v4438, 64
      %v4930 = vpop.permute.xlu0 %4929
      %4931 = vrot.lane.b32.xlu0 %v4439, 64
      %v4932 = vpop.permute.xlu0 %4931
      %4933 = vrot.lane.b32.xlu0 %v4440, 64
      %v4934 = vpop.permute.xlu0 %4933
      %4935 = vrot.lane.b32.xlu0 %v4441, 64
      %v4936 = vpop.permute.xlu0 %4935
      %4937 = vrot.lane.b32.xlu0 %v4442, 64
      %v4938 = vpop.permute.xlu0 %4937
      %4939 = vrot.lane.b32.xlu0 %v4443, 64
      %v4940 = vpop.permute.xlu0 %4939
      %4941 = vrot.lane.b32.xlu0 %v4444, 64
      %v4942 = vpop.permute.xlu0 %4941
      %4943 = vrot.lane.b32.xlu0 %v4445, 64
      %v4944 = vpop.permute.xlu0 %4943
      %4945 = vrot.lane.b32.xlu0 %v4446, 64
      %v4946 = vpop.permute.xlu0 %4945
      %4947 = vrot.lane.b32.xlu0 %v4447, 64
      %v4948 = vpop.permute.xlu0 %4947
      %4949 = vrot.lane.b32.xlu0 %v4448, 64
      %v4950 = vpop.permute.xlu0 %4949
      %4951 = vrot.lane.b32.xlu0 %v4449, 64
      %v4952 = vpop.permute.xlu0 %4951
      %4953 = vrot.lane.b32.xlu0 %v4450, 64
      %v4954 = vpop.permute.xlu0 %4953
      %4955 = vrot.lane.b32.xlu0 %v4451, 64
      %v4956 = vpop.permute.xlu0 %4955
      %4957 = vrot.lane.b32.xlu0 %v4452, 64
      %v4958 = vpop.permute.xlu0 %4957
      %4959 = vrot.lane.b32.xlu0 %v4453, 64
      %v4960 = vpop.permute.xlu0 %4959
      %4961 = vrot.lane.b32.xlu0 %v4454, 64
      %v4962 = vpop.permute.xlu0 %4961
      %4963 = vrot.lane.b32.xlu0 %v4455, 64
      %v4964 = vpop.permute.xlu0 %4963
      %4965 = vrot.lane.b32.xlu0 %v4456, 64
      %v4966 = vpop.permute.xlu0 %4965
      %4967 = vrot.lane.b32.xlu0 %v4457, 64
      %v4968 = vpop.permute.xlu0 %4967
      %4969 = vrot.lane.b32.xlu0 %v4458, 64
      %v4970 = vpop.permute.xlu0 %4969
      %v5003 = vsel %vm469, %v4202, %v4524
      %v5004 = vsel %vm469, %v4203, %v4526
      %v5005 = vsel %vm469, %v4204, %v4528
      %v5006 = vsel %vm469, %v4205, %v4530
      %v5007 = vsel %vm469, %v4206, %v4532
      %v5008 = vsel %vm469, %v4207, %v4534
      %v5009 = vsel %vm469, %v4208, %v4536
      %v5010 = vsel %vm469, %v4209, %v4538
      %v5011 = vsel %vm469, %v4210, %v4540
      %v5012 = vsel %vm469, %v4211, %v4542
      %v5013 = vsel %vm469, %v4212, %v4544
      %v5014 = vsel %vm469, %v4213, %v4546
      %v5015 = vsel %vm469, %v4214, %v4548
      %v5016 = vsel %vm469, %v4215, %v4550
      %v5017 = vsel %vm469, %v4216, %v4552
      %v5018 = vsel %vm469, %v4217, %v4554
      %v5019 = vsel %vm469, %v4218, %v4556
      %v5020 = vsel %vm469, %v4219, %v4558
      %v5021 = vsel %vm469, %v4220, %v4560
      %v5022 = vsel %vm469, %v4221, %v4562
      %v5023 = vsel %vm469, %v4222, %v4564
      %v5024 = vsel %vm469, %v4223, %v4566
      %v5025 = vsel %vm469, %v4224, %v4568
      %v5026 = vsel %vm469, %v4225, %v4570
      %v5027 = vsel %vm469, %v4226, %v4572
      %v5028 = vsel %vm469, %v4227, %v4574
      %v5029 = vsel %vm469, %v4228, %v4576
      %v5030 = vsel %vm469, %v4229, %v4578
      %v5031 = vsel %vm469, %v4230, %v4580
      %v5032 = vsel %vm469, %v4231, %v4582
      %v5033 = vsel %vm469, %v4232, %v4584
      %v5034 = vsel %vm469, %v4233, %v4586
      %v5035 = vsel %vm469, %v4266, %v4652
      %v5036 = vsel %vm469, %v4267, %v4654
      %v5037 = vsel %vm469, %v4268, %v4656
      %v5038 = vsel %vm469, %v4269, %v4658
      %v5039 = vsel %vm469, %v4270, %v4660
      %v5040 = vsel %vm469, %v4271, %v4662
      %v5041 = vsel %vm469, %v4272, %v4664
      %v5042 = vsel %vm469, %v4273, %v4666
      %v5043 = vsel %vm469, %v4274, %v4668
      %v5044 = vsel %vm469, %v4275, %v4670
      %v5045 = vsel %vm469, %v4276, %v4672
      %v5046 = vsel %vm469, %v4277, %v4674
      %v5047 = vsel %vm469, %v4278, %v4676
      %v5048 = vsel %vm469, %v4279, %v4678
      %v5049 = vsel %vm469, %v4280, %v4680
      %v5050 = vsel %vm469, %v4281, %v4682
      %v5051 = vsel %vm469, %v4282, %v4684
      %v5052 = vsel %vm469, %v4283, %v4686
      %v5053 = vsel %vm469, %v4284, %v4688
      %v5054 = vsel %vm469, %v4285, %v4690
      %v5055 = vsel %vm469, %v4286, %v4692
      %v5056 = vsel %vm469, %v4287, %v4694
      %v5057 = vsel %vm469, %v4288, %v4696
      %v5058 = vsel %vm469, %v4289, %v4698
      %v5059 = vsel %vm469, %v4290, %v4700
      %v5060 = vsel %vm469, %v4291, %v4702
      %v5061 = vsel %vm469, %v4292, %v4704
      %v5062 = vsel %vm469, %v4293, %v4706
      %v5063 = vsel %vm469, %v4294, %v4708
      %v5064 = vsel %vm469, %v4295, %v4710
      %v5065 = vsel %vm469, %v4296, %v4712
      %v5066 = vsel %vm469, %v4297, %v4714
      %v5067 = vsel %vm469, %v4330, %v4780
      %v5068 = vsel %vm469, %v4331, %v4782
      %v5069 = vsel %vm469, %v4332, %v4784
      %v5070 = vsel %vm469, %v4333, %v4786
      %v5071 = vsel %vm469, %v4334, %v4788
      %v5072 = vsel %vm469, %v4335, %v4790
      %v5073 = vsel %vm469, %v4336, %v4792
      %v5074 = vsel %vm469, %v4337, %v4794
      %v5075 = vsel %vm469, %v4338, %v4796
      %v5076 = vsel %vm469, %v4339, %v4798
      %v5077 = vsel %vm469, %v4340, %v4800
      %v5078 = vsel %vm469, %v4341, %v4802
      %v5079 = vsel %vm469, %v4342, %v4804
      %v5080 = vsel %vm469, %v4343, %v4806
      %v5081 = vsel %vm469, %v4344, %v4808
      %v5082 = vsel %vm469, %v4345, %v4810
      %v5083 = vsel %vm469, %v4346, %v4812
      %v5084 = vsel %vm469, %v4347, %v4814
      %v5085 = vsel %vm469, %v4348, %v4816
      %v5086 = vsel %vm469, %v4349, %v4818
      %v5087 = vsel %vm469, %v4350, %v4820
      %v5088 = vsel %vm469, %v4351, %v4822
      %v5089 = vsel %vm469, %v4352, %v4824
      %v5090 = vsel %vm469, %v4353, %v4826
      %v5091 = vsel %vm469, %v4354, %v4828
      %v5092 = vsel %vm469, %v4355, %v4830
      %v5093 = vsel %vm469, %v4356, %v4832
      %v5094 = vsel %vm469, %v4357, %v4834
      %v5095 = vsel %vm469, %v4358, %v4836
      %v5096 = vsel %vm469, %v4359, %v4838
      %v5097 = vsel %vm469, %v4360, %v4840
      %v5098 = vsel %vm469, %v4361, %v4842
      %v5099 = vsel %vm469, %v4395, %v4908
      %v5100 = vsel %vm469, %v4396, %v4910
      %v5101 = vsel %vm469, %v4397, %v4912
      %v5102 = vsel %vm469, %v4398, %v4914
      %v5103 = vsel %vm469, %v4399, %v4916
      %v5104 = vsel %vm469, %v4400, %v4918
      %v5105 = vsel %vm469, %v4401, %v4920
      %v5106 = vsel %vm469, %v4402, %v4922
      %v5107 = vsel %vm469, %v4403, %v4924
      %v5108 = vsel %vm469, %v4404, %v4926
      %v5109 = vsel %vm469, %v4405, %v4928
      %v5110 = vsel %vm469, %v4406, %v4930
      %v5111 = vsel %vm469, %v4407, %v4932
      %v5112 = vsel %vm469, %v4408, %v4934
      %v5113 = vsel %vm469, %v4409, %v4936
      %v5114 = vsel %vm469, %v4410, %v4938
      %v5115 = vsel %vm469, %v4411, %v4940
      %v5116 = vsel %vm469, %v4412, %v4942
      %v5117 = vsel %vm469, %v4413, %v4944
      %v5118 = vsel %vm469, %v4414, %v4946
      %v5119 = vsel %vm469, %v4415, %v4948
      %v5120 = vsel %vm469, %v4416, %v4950
      %v5121 = vsel %vm469, %v4417, %v4952
      %v5122 = vsel %vm469, %v4418, %v4954
      %v5123 = vsel %vm469, %v4419, %v4956
      %v5124 = vsel %vm469, %v4420, %v4958
      %v5125 = vsel %vm469, %v4421, %v4960
      %v5126 = vsel %vm469, %v4422, %v4962
      %v5127 = vsel %vm469, %v4423, %v4964
      %v5128 = vsel %vm469, %v4424, %v4966
      %v5129 = vsel %vm469, %v4425, %v4968
      %v5130 = vsel %vm469, %v4426, %v4970
      %v5131 = vpack.c.bf16 %v5004, %v5003
      %v5132 = vpack.c.bf16 %v5036, %v5035
      %v5133 = vpack.c.bf16 %v5068, %v5067
      %v5134 = vpack.c.bf16 %v5100, %v5099
      %v5135 = vpack.c.bf16 %v4460, %v4459
      %v5136 = vpack.c.bf16 %v5006, %v5005
      %v5137 = vpack.c.bf16 %v5038, %v5037
      %v5138 = vpack.c.bf16 %v5070, %v5069
      %v5139 = vpack.c.bf16 %v5102, %v5101
      %v5140 = vpack.c.bf16 %v4462, %v4461
      %v5141 = vpack.c.bf16 %v5008, %v5007
      %v5142 = vpack.c.bf16 %v5040, %v5039
      %v5143 = vpack.c.bf16 %v5072, %v5071
      %v5144 = vpack.c.bf16 %v5104, %v5103
      %v5145 = vpack.c.bf16 %v4464, %v4463
      %v5146 = vpack.c.bf16 %v5010, %v5009
      %v5147 = vpack.c.bf16 %v5042, %v5041
      %v5148 = vpack.c.bf16 %v5074, %v5073
      %v5149 = vpack.c.bf16 %v5106, %v5105
      %v5150 = vpack.c.bf16 %v4466, %v4465
      %v5151 = vpack.c.bf16 %v5012, %v5011
      %v5152 = vpack.c.bf16 %v5044, %v5043
      %v5153 = vpack.c.bf16 %v5076, %v5075
      %v5154 = vpack.c.bf16 %v5108, %v5107
      %v5155 = vpack.c.bf16 %v4468, %v4467
      %v5156 = vpack.c.bf16 %v5014, %v5013
      %v5157 = vpack.c.bf16 %v5046, %v5045
      %v5158 = vpack.c.bf16 %v5078, %v5077
      %v5159 = vpack.c.bf16 %v5110, %v5109
      %v5160 = vpack.c.bf16 %v4470, %v4469
      %v5161 = vpack.c.bf16 %v5016, %v5015
      %v5162 = vpack.c.bf16 %v5048, %v5047
      %v5163 = vpack.c.bf16 %v5080, %v5079
      %v5164 = vpack.c.bf16 %v5112, %v5111
      %v5165 = vpack.c.bf16 %v4472, %v4471
      %v5166 = vpack.c.bf16 %v5018, %v5017
      %v5167 = vpack.c.bf16 %v5050, %v5049
      %v5168 = vpack.c.bf16 %v5082, %v5081
      %v5169 = vpack.c.bf16 %v5114, %v5113
      %v5170 = vpack.c.bf16 %v4474, %v4473
      %v5171 = vpack.c.bf16 %v5020, %v5019
      %v5172 = vpack.c.bf16 %v5052, %v5051
      %v5173 = vpack.c.bf16 %v5084, %v5083
      %v5174 = vpack.c.bf16 %v5116, %v5115
      %v5175 = vpack.c.bf16 %v4476, %v4475
      %v5176 = vpack.c.bf16 %v5022, %v5021
      %v5177 = vpack.c.bf16 %v5054, %v5053
      %v5178 = vpack.c.bf16 %v5086, %v5085
      %v5179 = vpack.c.bf16 %v5118, %v5117
      %v5180 = vpack.c.bf16 %v4478, %v4477
      %v5181 = vpack.c.bf16 %v5024, %v5023
      %v5182 = vpack.c.bf16 %v5056, %v5055
      %v5183 = vpack.c.bf16 %v5088, %v5087
      %v5184 = vpack.c.bf16 %v5120, %v5119
      %v5185 = vpack.c.bf16 %v4480, %v4479
      %v5186 = vpack.c.bf16 %v5026, %v5025
      %v5187 = vpack.c.bf16 %v5058, %v5057
      %v5188 = vpack.c.bf16 %v5090, %v5089
      %v5189 = vpack.c.bf16 %v5122, %v5121
      %v5190 = vpack.c.bf16 %v4482, %v4481
      %v5191 = vpack.c.bf16 %v5028, %v5027
      %v5192 = vpack.c.bf16 %v5060, %v5059
      %v5193 = vpack.c.bf16 %v5092, %v5091
      %v5194 = vpack.c.bf16 %v5124, %v5123
      %v5195 = vpack.c.bf16 %v4484, %v4483
      %v5196 = vpack.c.bf16 %v5030, %v5029
      %v5197 = vpack.c.bf16 %v5062, %v5061
      %v5198 = vpack.c.bf16 %v5094, %v5093
      %v5199 = vpack.c.bf16 %v5126, %v5125
      %v5200 = vpack.c.bf16 %v4486, %v4485
      %v5201 = vpack.c.bf16 %v5032, %v5031
      %v5202 = vpack.c.bf16 %v5064, %v5063
      %v5203 = vpack.c.bf16 %v5096, %v5095
      %v5204 = vpack.c.bf16 %v5128, %v5127
      %v5205 = vpack.c.bf16 %v4488, %v4487
      %v5206 = vpack.c.bf16 %v5034, %v5033
      %v5207 = vpack.c.bf16 %v5066, %v5065
      %v5208 = vpack.c.bf16 %v5098, %v5097
      %v5209 = vpack.c.bf16 %v5130, %v5129
      %v5210 = vpack.c.bf16 %v4490, %v4489
      %v5211 = vld [vmem:[%s12] sm:$0xf]
      %v5212 = vld [vmem:[%s12 + $0x4] sm:$0xf]
      %v5213 = vld [vmem:[%s12 + $0x8] sm:$0xf]
      %v5214 = vld [vmem:[%s12 + $0xc] sm:$0xf]
      %v5215 = vld [vmem:[%s12 + $0x10] sm:$0xf]
      %v5216 = vld [vmem:[%s12 + $0x14] sm:$0xf]
      %v5217 = vld [vmem:[%s12 + $0x18] sm:$0xf]
      %v5218 = vld [vmem:[%s12 + $0x1c] sm:$0xf]
      %v5219 = vld [vmem:[%s12 + $0x20] sm:$0xf]
      %v5220 = vld [vmem:[%s12 + $0x24] sm:$0xf]
      %v5221 = vld [vmem:[%s12 + $0x28] sm:$0xf]
      %v5222 = vld [vmem:[%s12 + $0x2c] sm:$0xf]
      %v5223 = vld [vmem:[%s12 + $0x30] sm:$0xf]
      %v5224 = vld [vmem:[%s12 + $0x34] sm:$0xf]
      %v5225 = vld [vmem:[%s12 + $0x38] sm:$0xf]
      %v5226 = vld [vmem:[%s12 + $0x3c] sm:$0xf]
      %v5227 = vld [vmem:[%s12 + $0x40] sm:$0xf]
      %v5228 = vld [vmem:[%s12 + $0x44] sm:$0xf]
      %v5229 = vld [vmem:[%s12 + $0x48] sm:$0xf]
      %v5230 = vld [vmem:[%s12 + $0x4c] sm:$0xf]
      %v5231 = vld [vmem:[%s12 + $0x50] sm:$0xf]
      %v5232 = vld [vmem:[%s12 + $0x54] sm:$0xf]
      %v5233 = vld [vmem:[%s12 + $0x58] sm:$0xf]
      %v5234 = vld [vmem:[%s12 + $0x5c] sm:$0xf]
      %v5235 = vld [vmem:[%s12 + $0x60] sm:$0xf]
      %v5236 = vld [vmem:[%s12 + $0x64] sm:$0xf]
      %v5237 = vld [vmem:[%s12 + $0x68] sm:$0xf]
      %v5238 = vld [vmem:[%s12 + $0x6c] sm:$0xf]
      %v5239 = vld [vmem:[%s12 + $0x70] sm:$0xf]
      %v5240 = vld [vmem:[%s12 + $0x74] sm:$0xf]
      %v5241 = vld [vmem:[%s12 + $0x78] sm:$0xf]
      %v5242 = vld [vmem:[%s12 + $0x7c] sm:$0xf]
      %v5243 = vld [vmem:[%s12 + $0x80] sm:$0xf]
      %v5244 = vld [vmem:[%s12 + $0x84] sm:$0xf]
      %v5245 = vld [vmem:[%s12 + $0x88] sm:$0xf]
      %v5246 = vld [vmem:[%s12 + $0x8c] sm:$0xf]
      %v5247 = vld [vmem:[%s12 + $0x90] sm:$0xf]
      %v5248 = vld [vmem:[%s12 + $0x94] sm:$0xf]
      %v5249 = vld [vmem:[%s12 + $0x98] sm:$0xf]
      %v5250 = vld [vmem:[%s12 + $0x9c] sm:$0xf]
      %v5251 = vld [vmem:[%s12 + $0xa0] sm:$0xf]
      %v5252 = vld [vmem:[%s12 + $0xa4] sm:$0xf]
      %v5253 = vld [vmem:[%s12 + $0xa8] sm:$0xf]
      %v5254 = vld [vmem:[%s12 + $0xac] sm:$0xf]
      %v5255 = vld [vmem:[%s12 + $0xb0] sm:$0xf]
      %v5256 = vld [vmem:[%s12 + $0xb4] sm:$0xf]
      %v5257 = vld [vmem:[%s12 + $0xb8] sm:$0xf]
      %v5258 = vld [vmem:[%s12 + $0xbc] sm:$0xf]
      %v5259 = vld [vmem:[%s12 + $0xc0] sm:$0xf]
      %v5260 = vld [vmem:[%s12 + $0xc4] sm:$0xf]
      %v5261 = vld [vmem:[%s12 + $0xc8] sm:$0xf]
      %v5262 = vld [vmem:[%s12 + $0xcc] sm:$0xf]
      %v5263 = vld [vmem:[%s12 + $0xd0] sm:$0xf]
      %v5264 = vld [vmem:[%s12 + $0xd4] sm:$0xf]
      %v5265 = vld [vmem:[%s12 + $0xd8] sm:$0xf]
      %v5266 = vld [vmem:[%s12 + $0xdc] sm:$0xf]
      %v5267 = vld [vmem:[%s12 + $0xe0] sm:$0xf]
      %v5268 = vld [vmem:[%s12 + $0xe4] sm:$0xf]
      %v5269 = vld [vmem:[%s12 + $0xe8] sm:$0xf]
      %v5270 = vld [vmem:[%s12 + $0xec] sm:$0xf]
      %v5271 = vld [vmem:[%s12 + $0xf0] sm:$0xf]
      %v5272 = vld [vmem:[%s12 + $0xf4] sm:$0xf]
      %v5273 = vld [vmem:[%s12 + $0xf8] sm:$0xf]
      %v5274 = vld [vmem:[%s12 + $0xfc] sm:$0xf]
      %v5275 = vld [vmem:[%s12 + $0x100] sm:$0xf]
      %v5276 = vld [vmem:[%s12 + $0x104] sm:$0xf]
      %v5277 = vld [vmem:[%s12 + $0x108] sm:$0xf]
      %v5278 = vld [vmem:[%s12 + $0x10c] sm:$0xf]
      %v5279 = vld [vmem:[%s12 + $0x110] sm:$0xf]
      %v5280 = vld [vmem:[%s12 + $0x114] sm:$0xf]
      %v5281 = vld [vmem:[%s12 + $0x118] sm:$0xf]
      %v5282 = vld [vmem:[%s12 + $0x11c] sm:$0xf]
      %v5283 = vld [vmem:[%s13] sm:$0x1]
      %v5285 = vlaneseq
      %v5286 = vshrl.u32 %v5285, 7
      %v5287 = vsub.s32 0, %v5286
      %v5288 = vrot.slane %v5283, %v5287
      %v5362 = vunpack.c.l.b16 %v5211
      %v5363 = vunpack.c.l.b16 %v5212
      %v5364 = vunpack.c.l.b16 %v5213
      %v5365 = vunpack.c.l.b16 %v5214
      %v5366 = vunpack.c.l.b16 %v5215
      %v5367 = vunpack.c.l.b16 %v5216
      %v5368 = vunpack.c.l.b16 %v5217
      %v5369 = vunpack.c.l.b16 %v5218
      %v5370 = vunpack.c.l.b16 %v5219
      %v5371 = vunpack.c.l.b16 %v5220
      %v5372 = vunpack.c.l.b16 %v5221
      %v5373 = vunpack.c.l.b16 %v5222
      %v5374 = vunpack.c.l.b16 %v5223
      %v5375 = vunpack.c.l.b16 %v5224
      %v5376 = vunpack.c.l.b16 %v5225
      %v5377 = vunpack.c.l.b16 %v5226
      %v5378 = vunpack.c.l.b16 %v5227
      %v5379 = vunpack.c.l.b16 %v5228
      %v5380 = vunpack.c.l.b16 %v5229
      %v5381 = vunpack.c.l.b16 %v5230
      %v5382 = vunpack.c.l.b16 %v5231
      %v5383 = vunpack.c.l.b16 %v5232
      %v5384 = vunpack.c.l.b16 %v5233
      %v5385 = vunpack.c.l.b16 %v5234
      %v5386 = vunpack.c.l.b16 %v5235
      %v5387 = vunpack.c.l.b16 %v5236
      %v5388 = vunpack.c.l.b16 %v5237
      %v5389 = vunpack.c.l.b16 %v5238
      %v5390 = vunpack.c.l.b16 %v5239
      %v5391 = vunpack.c.l.b16 %v5240
      %v5392 = vunpack.c.l.b16 %v5241
      %v5393 = vunpack.c.l.b16 %v5242
      %v5394 = vunpack.c.l.b16 %v5243
      %v5395 = vunpack.c.l.b16 %v5244
      %v5396 = vunpack.c.l.b16 %v5245
      %v5397 = vunpack.c.l.b16 %v5246
      %v5398 = vunpack.c.l.b16 %v5247
      %v5399 = vunpack.c.l.b16 %v5248
      %v5400 = vunpack.c.l.b16 %v5249
      %v5401 = vunpack.c.l.b16 %v5250
      %v5402 = vunpack.c.l.b16 %v5251
      %v5403 = vunpack.c.l.b16 %v5252
      %v5404 = vunpack.c.l.b16 %v5253
      %v5405 = vunpack.c.l.b16 %v5254
      %v5406 = vunpack.c.l.b16 %v5255
      %v5407 = vunpack.c.l.b16 %v5256
      %v5408 = vunpack.c.l.b16 %v5257
      %v5409 = vunpack.c.l.b16 %v5258
      %v5410 = vunpack.c.l.b16 %v5259
      %v5411 = vunpack.c.l.b16 %v5260
      %v5412 = vunpack.c.l.b16 %v5261
      %v5413 = vunpack.c.l.b16 %v5262
      %v5414 = vunpack.c.l.b16 %v5263
      %v5415 = vunpack.c.l.b16 %v5264
      %v5416 = vunpack.c.l.b16 %v5265
      %v5417 = vunpack.c.l.b16 %v5266
      %v5418 = vunpack.c.l.b16 %v5267
      %v5419 = vunpack.c.l.b16 %v5268
      %v5420 = vunpack.c.l.b16 %v5269
      %v5421 = vunpack.c.l.b16 %v5270
      %v5422 = vunpack.c.l.b16 %v5271
      %v5423 = vunpack.c.l.b16 %v5272
      %v5424 = vunpack.c.l.b16 %v5273
      %v5425 = vunpack.c.l.b16 %v5274
      %v5426 = vunpack.c.l.b16 %v5275
      %v5427 = vunpack.c.l.b16 %v5276
      %v5428 = vunpack.c.l.b16 %v5277
      %v5429 = vunpack.c.l.b16 %v5278
      %v5430 = vunpack.c.l.b16 %v5279
      %v5431 = vunpack.c.l.b16 %v5280
      %v5432 = vunpack.c.l.b16 %v5281
      %v5433 = vunpack.c.l.b16 %v5282
      %v5434 = vpack.c.b16 %v5363, %v5362
      %v5435 = vpack.c.b16 %v5365, %v5364
      %v5436 = vpack.c.b16 %v5367, %v5366
      %v5437 = vpack.c.b16 %v5369, %v5368
      %v5438 = vpack.c.b16 %v5371, %v5370
      %v5439 = vpack.c.b16 %v5373, %v5372
      %v5440 = vpack.c.b16 %v5375, %v5374
      %v5441 = vpack.c.b16 %v5377, %v5376
      %v5442 = vpack.c.b16 %v5379, %v5378
      %v5443 = vpack.c.b16 %v5381, %v5380
      %v5444 = vpack.c.b16 %v5383, %v5382
      %v5445 = vpack.c.b16 %v5385, %v5384
      %v5446 = vpack.c.b16 %v5387, %v5386
      %v5447 = vpack.c.b16 %v5389, %v5388
      %v5448 = vpack.c.b16 %v5391, %v5390
      %v5449 = vpack.c.b16 %v5393, %v5392
      %v5450 = vpack.c.b16 %v5395, %v5394
      %v5451 = vpack.c.b16 %v5397, %v5396
      %v5452 = vpack.c.b16 %v5399, %v5398
      %v5453 = vpack.c.b16 %v5401, %v5400
      %v5454 = vpack.c.b16 %v5403, %v5402
      %v5455 = vpack.c.b16 %v5405, %v5404
      %v5456 = vpack.c.b16 %v5407, %v5406
      %v5457 = vpack.c.b16 %v5409, %v5408
      %v5458 = vpack.c.b16 %v5411, %v5410
      %v5459 = vpack.c.b16 %v5413, %v5412
      %v5460 = vpack.c.b16 %v5415, %v5414
      %v5461 = vpack.c.b16 %v5417, %v5416
      %v5462 = vpack.c.b16 %v5419, %v5418
      %v5463 = vpack.c.b16 %v5421, %v5420
      %v5464 = vpack.c.b16 %v5423, %v5422
      %v5465 = vpack.c.b16 %v5425, %v5424
      %v5466 = vpack.c.b16 %v5427, %v5426
      %v5467 = vpack.c.b16 %v5429, %v5428
      %v5468 = vpack.c.b16 %v5431, %v5430
      %v5469 = vpack.c.b16 %v5433, %v5432
      %v5507 = vsel %vm469, %v5135, 0
      %v5510 = vsel %vm469, %v5140, 0
      %v5513 = vsel %vm469, %v5145, 0
      %v5516 = vsel %vm469, %v5150, 0
      %v5519 = vsel %vm469, %v5155, 0
      %v5522 = vsel %vm469, %v5160, 0
      %v5525 = vsel %vm469, %v5165, 0
      %v5528 = vsel %vm469, %v5170, 0
      %v5531 = vsel %vm469, %v5175, 0
      %v5534 = vsel %vm469, %v5180, 0
      %v5537 = vsel %vm469, %v5185, 0
      %v5540 = vsel %vm469, %v5190, 0
      %v5543 = vsel %vm469, %v5195, 0
      %v5546 = vsel %vm469, %v5200, 0
      %v5549 = vsel %vm469, %v5205, 0
      %v5552 = vsel %vm469, %v5210, 0
      %5554 = vmatprep.subr.bf16.mxu0 0
      %5555 = vmatpush1.bf16.msra.mxu0 %v5441
      %5556 = vmatprep.subr.bf16.mxu0 0
      %5557 = vmatpush1.bf16.msra.mxu0 %v5440
      %5558 = vmatprep.subr.bf16.mxu0 0
      %5559 = vmatpush1.bf16.msra.mxu0 %v5439
      %5560 = vmatprep.subr.bf16.mxu0 0
      %5561 = vmatpush1.bf16.msra.mxu0 %v5438
      %5562 = vmatprep.subr.bf16.mxu0 0
      %5563 = vmatpush1.bf16.msra.mxu0 %v5437
      %5564 = vmatprep.subr.bf16.mxu0 0
      %5565 = vmatpush1.bf16.msra.mxu0 %v5436
      %5566 = vmatprep.subr.bf16.mxu0 0
      %5567 = vmatpush1.bf16.msra.mxu0 %v5435
      %5568 = vmatprep.subr.bf16.mxu0 0
      %5569 = vmatpush1.bf16.msra.mxu0 %v5434
      %5570 = vmatprep.subr.bf16.mxu0 0
      %5571 = vmatpush2.bf16.msra.mxu0 %v5449
      %5572 = vmatprep.subr.bf16.mxu0 0
      %5573 = vmatpush2.bf16.msra.mxu0 %v5448
      %5574 = vmatprep.subr.bf16.mxu0 0
      %5575 = vmatpush2.bf16.msra.mxu0 %v5447
      %5576 = vmatprep.subr.bf16.mxu0 0
      %5577 = vmatpush2.bf16.msra.mxu0 %v5446
      %5578 = vmatprep.subr.bf16.mxu0 0
      %5579 = vmatpush2.bf16.msra.mxu0 %v5445
      %5580 = vmatprep.subr.bf16.mxu0 0
      %5581 = vmatpush2.bf16.msra.mxu0 %v5444
      %5582 = vmatprep.subr.bf16.mxu0 0
      %5583 = vmatpush2.bf16.msra.mxu0 %v5443
      %5584 = vmatprep.subr.bf16.mxu0 0
      %5585 = vmatpush2.bf16.msra.mxu0 %v5442
      %5586 = vmatprep.mubr.bf16.mxu0 %v5132
      %5587 = vmatmul.mubr.bf16.gmra.mxu0 %v5131
      %v5588 = vpop.f32.mrf.mxu0
      %v5589 = vadd.f32 %v5288, %v5588
      %v5590 = vpop.f32.mrf.mxu0
      %v5591 = vpop.f32.mrf.mxu0
      %v5592 = vadd.f32 %v5288, %v5591
      %v5593 = vpop.f32.mrf.mxu0
      %5594 = vmatprep.mubr.bf16.mxu0 %v5137
      %5595 = vmatmul.mubr.bf16.gmra.mxu0 %v5136
      %v5596 = vpop.f32.mrf.mxu0
      %v5597 = vadd.f32 %v5288, %v5596
      %v5598 = vpop.f32.mrf.mxu0
      %v5599 = vpop.f32.mrf.mxu0
      %v5600 = vadd.f32 %v5288, %v5599
      %v5601 = vpop.f32.mrf.mxu0
      %5602 = vmatprep.mubr.bf16.mxu0 %v5142
      %5603 = vmatmul.mubr.bf16.gmra.mxu0 %v5141
      %v5604 = vpop.f32.mrf.mxu0
      %v5605 = vadd.f32 %v5288, %v5604
      %v5606 = vpop.f32.mrf.mxu0
      %v5607 = vpop.f32.mrf.mxu0
      %v5608 = vadd.f32 %v5288, %v5607
      %v5609 = vpop.f32.mrf.mxu0
      %5610 = vmatprep.mubr.bf16.mxu0 %v5147
      %5611 = vmatmul.mubr.bf16.gmra.mxu0 %v5146
      %v5612 = vpop.f32.mrf.mxu0
      %v5613 = vadd.f32 %v5288, %v5612
      %v5614 = vpop.f32.mrf.mxu0
      %v5615 = vpop.f32.mrf.mxu0
      %v5616 = vadd.f32 %v5288, %v5615
      %v5617 = vpop.f32.mrf.mxu0
      %5618 = vmatprep.mubr.bf16.mxu0 %v5152
      %5619 = vmatmul.mubr.bf16.gmra.mxu0 %v5151
      %v5620 = vpop.f32.mrf.mxu0
      %v5621 = vadd.f32 %v5288, %v5620
      %v5622 = vpop.f32.mrf.mxu0
      %v5623 = vpop.f32.mrf.mxu0
      %v5624 = vadd.f32 %v5288, %v5623
      %v5625 = vpop.f32.mrf.mxu0
      %5626 = vmatprep.mubr.bf16.mxu0 %v5157
      %5627 = vmatmul.mubr.bf16.gmra.mxu0 %v5156
      %v5628 = vpop.f32.mrf.mxu0
      %v5629 = vadd.f32 %v5288, %v5628
      %v5630 = vpop.f32.mrf.mxu0
      %v5631 = vpop.f32.mrf.mxu0
      %v5632 = vadd.f32 %v5288, %v5631
      %v5633 = vpop.f32.mrf.mxu0
      %5634 = vmatprep.mubr.bf16.mxu0 %v5162
      %5635 = vmatmul.mubr.bf16.gmra.mxu0 %v5161
      %v5636 = vpop.f32.mrf.mxu0
      %v5637 = vadd.f32 %v5288, %v5636
      %v5638 = vpop.f32.mrf.mxu0
      %v5639 = vpop.f32.mrf.mxu0
      %v5640 = vadd.f32 %v5288, %v5639
      %v5641 = vpop.f32.mrf.mxu0
      %5642 = vmatprep.mubr.bf16.mxu0 %v5167
      %5643 = vmatmul.mubr.bf16.gmra.mxu0 %v5166
      %v5644 = vpop.f32.mrf.mxu0
      %v5645 = vadd.f32 %v5288, %v5644
      %v5646 = vpop.f32.mrf.mxu0
      %v5647 = vpop.f32.mrf.mxu0
      %v5648 = vadd.f32 %v5288, %v5647
      %v5649 = vpop.f32.mrf.mxu0
      %5650 = vmatprep.mubr.bf16.mxu0 %v5172
      %5651 = vmatmul.mubr.bf16.gmra.mxu0 %v5171
      %v5652 = vpop.f32.mrf.mxu0
      %v5653 = vadd.f32 %v5288, %v5652
      %v5654 = vpop.f32.mrf.mxu0
      %v5655 = vpop.f32.mrf.mxu0
      %v5656 = vadd.f32 %v5288, %v5655
      %v5657 = vpop.f32.mrf.mxu0
      %5658 = vmatprep.mubr.bf16.mxu0 %v5177
      %5659 = vmatmul.mubr.bf16.gmra.mxu0 %v5176
      %v5660 = vpop.f32.mrf.mxu0
      %v5661 = vadd.f32 %v5288, %v5660
      %v5662 = vpop.f32.mrf.mxu0
      %v5663 = vpop.f32.mrf.mxu0
      %v5664 = vadd.f32 %v5288, %v5663
      %v5665 = vpop.f32.mrf.mxu0
      %5666 = vmatprep.mubr.bf16.mxu0 %v5182
      %5667 = vmatmul.mubr.bf16.gmra.mxu0 %v5181
      %v5668 = vpop.f32.mrf.mxu0
      %v5669 = vadd.f32 %v5288, %v5668
      %v5670 = vpop.f32.mrf.mxu0
      %v5671 = vpop.f32.mrf.mxu0
      %v5672 = vadd.f32 %v5288, %v5671
      %v5673 = vpop.f32.mrf.mxu0
      %5674 = vmatprep.mubr.bf16.mxu0 %v5187
      %5675 = vmatmul.mubr.bf16.gmra.mxu0 %v5186
      %v5676 = vpop.f32.mrf.mxu0
      %v5677 = vadd.f32 %v5288, %v5676
      %v5678 = vpop.f32.mrf.mxu0
      %v5679 = vpop.f32.mrf.mxu0
      %v5680 = vadd.f32 %v5288, %v5679
      %v5681 = vpop.f32.mrf.mxu0
      %5682 = vmatprep.mubr.bf16.mxu0 %v5192
      %5683 = vmatmul.mubr.bf16.gmra.mxu0 %v5191
      %v5684 = vpop.f32.mrf.mxu0
      %v5685 = vadd.f32 %v5288, %v5684
      %v5686 = vpop.f32.mrf.mxu0
      %v5687 = vpop.f32.mrf.mxu0
      %v5688 = vadd.f32 %v5288, %v5687
      %v5689 = vpop.f32.mrf.mxu0
      %5690 = vmatprep.mubr.bf16.mxu0 %v5197
      %5691 = vmatmul.mubr.bf16.gmra.mxu0 %v5196
      %v5692 = vpop.f32.mrf.mxu0
      %v5693 = vadd.f32 %v5288, %v5692
      %v5694 = vpop.f32.mrf.mxu0
      %v5695 = vpop.f32.mrf.mxu0
      %v5696 = vadd.f32 %v5288, %v5695
      %v5697 = vpop.f32.mrf.mxu0
      %5698 = vmatprep.mubr.bf16.mxu0 %v5202
      %5699 = vmatmul.mubr.bf16.gmra.mxu0 %v5201
      %v5700 = vpop.f32.mrf.mxu0
      %v5701 = vadd.f32 %v5288, %v5700
      %v5702 = vpop.f32.mrf.mxu0
      %v5703 = vpop.f32.mrf.mxu0
      %v5704 = vadd.f32 %v5288, %v5703
      %v5705 = vpop.f32.mrf.mxu0
      %5706 = vmatprep.mubr.bf16.mxu0 %v5207
      %5707 = vmatmul.mubr.bf16.gmra.mxu0 %v5206
      %v5708 = vpop.f32.mrf.mxu0
      %v5709 = vadd.f32 %v5288, %v5708
      %v5710 = vpop.f32.mrf.mxu0
      %v5711 = vpop.f32.mrf.mxu0
      %v5712 = vadd.f32 %v5288, %v5711
      %v5713 = vpop.f32.mrf.mxu0
      %5714 = vdwg.mxu0
      %5715 = vmatprep.subr.bf16.mxu0 0
      %5716 = vmatpush1.bf16.msra.mxu0 %v5457
      %5717 = vmatprep.subr.bf16.mxu0 0
      %5718 = vmatpush1.bf16.msra.mxu0 %v5456
      %5719 = vmatprep.subr.bf16.mxu0 0
      %5720 = vmatpush1.bf16.msra.mxu0 %v5455
      %5721 = vmatprep.subr.bf16.mxu0 0
      %5722 = vmatpush1.bf16.msra.mxu0 %v5454
      %5723 = vmatprep.subr.bf16.mxu0 0
      %5724 = vmatpush1.bf16.msra.mxu0 %v5453
      %5725 = vmatprep.subr.bf16.mxu0 0
      %5726 = vmatpush1.bf16.msra.mxu0 %v5452
      %5727 = vmatprep.subr.bf16.mxu0 0
      %5728 = vmatpush1.bf16.msra.mxu0 %v5451
      %5729 = vmatprep.subr.bf16.mxu0 0
      %5730 = vmatpush1.bf16.msra.mxu0 %v5450
      %5731 = vmatprep.subr.bf16.mxu0 0
      %5732 = vmatpush2.bf16.msra.mxu0 %v5465
      %5733 = vmatprep.subr.bf16.mxu0 0
      %5734 = vmatpush2.bf16.msra.mxu0 %v5464
      %5735 = vmatprep.subr.bf16.mxu0 0
      %5736 = vmatpush2.bf16.msra.mxu0 %v5463
      %5737 = vmatprep.subr.bf16.mxu0 0
      %5738 = vmatpush2.bf16.msra.mxu0 %v5462
      %5739 = vmatprep.subr.bf16.mxu0 0
      %5740 = vmatpush2.bf16.msra.mxu0 %v5461
      %5741 = vmatprep.subr.bf16.mxu0 0
      %5742 = vmatpush2.bf16.msra.mxu0 %v5460
      %5743 = vmatprep.subr.bf16.mxu0 0
      %5744 = vmatpush2.bf16.msra.mxu0 %v5459
      %5745 = vmatprep.subr.bf16.mxu0 0
      %5746 = vmatpush2.bf16.msra.mxu0 %v5458
      %5747 = vmatprep.mubr.bf16.mxu0 %v5134
      %5748 = vmatmul.mubr.bf16.gmra.mxu0 %v5133
      %v5749 = vpop.f32.mrf.mxu0
      %v5750 = vadd.f32 %v5589, %v5749
      %v5751 = vpop.f32.mrf.mxu0
      %v5752 = vpop.f32.mrf.mxu0
      %v5753 = vadd.f32 %v5592, %v5752
      %v5754 = vpop.f32.mrf.mxu0
      %5755 = vmatprep.mubr.bf16.mxu0 %v5139
      %5756 = vmatmul.mubr.bf16.gmra.mxu0 %v5138
      %v5757 = vpop.f32.mrf.mxu0
      %v5758 = vadd.f32 %v5597, %v5757
      %v5759 = vpop.f32.mrf.mxu0
      %v5760 = vpop.f32.mrf.mxu0
      %v5761 = vadd.f32 %v5600, %v5760
      %v5762 = vpop.f32.mrf.mxu0
      %5763 = vmatprep.mubr.bf16.mxu0 %v5144
      %5764 = vmatmul.mubr.bf16.gmra.mxu0 %v5143
      %v5765 = vpop.f32.mrf.mxu0
      %v5766 = vadd.f32 %v5605, %v5765
      %v5767 = vpop.f32.mrf.mxu0
      %v5768 = vpop.f32.mrf.mxu0
      %v5769 = vadd.f32 %v5608, %v5768
      %v5770 = vpop.f32.mrf.mxu0
      %5771 = vmatprep.mubr.bf16.mxu0 %v5149
      %5772 = vmatmul.mubr.bf16.gmra.mxu0 %v5148
      %v5773 = vpop.f32.mrf.mxu0
      %v5774 = vadd.f32 %v5613, %v5773
      %v5775 = vpop.f32.mrf.mxu0
      %v5776 = vpop.f32.mrf.mxu0
      %v5777 = vadd.f32 %v5616, %v5776
      %v5778 = vpop.f32.mrf.mxu0
      %5779 = vmatprep.mubr.bf16.mxu0 %v5154
      %5780 = vmatmul.mubr.bf16.gmra.mxu0 %v5153
      %v5781 = vpop.f32.mrf.mxu0
      %v5782 = vadd.f32 %v5621, %v5781
      %v5783 = vpop.f32.mrf.mxu0
      %v5784 = vpop.f32.mrf.mxu0
      %v5785 = vadd.f32 %v5624, %v5784
      %v5786 = vpop.f32.mrf.mxu0
      %5787 = vmatprep.mubr.bf16.mxu0 %v5159
      %5788 = vmatmul.mubr.bf16.gmra.mxu0 %v5158
      %v5789 = vpop.f32.mrf.mxu0
      %v5790 = vadd.f32 %v5629, %v5789
      %v5791 = vpop.f32.mrf.mxu0
      %v5792 = vpop.f32.mrf.mxu0
      %v5793 = vadd.f32 %v5632, %v5792
      %v5794 = vpop.f32.mrf.mxu0
      %5795 = vmatprep.mubr.bf16.mxu0 %v5164
      %5796 = vmatmul.mubr.bf16.gmra.mxu0 %v5163
      %v5797 = vpop.f32.mrf.mxu0
      %v5798 = vadd.f32 %v5637, %v5797
      %v5799 = vpop.f32.mrf.mxu0
      %v5800 = vpop.f32.mrf.mxu0
      %v5801 = vadd.f32 %v5640, %v5800
      %v5802 = vpop.f32.mrf.mxu0
      %5803 = vmatprep.mubr.bf16.mxu0 %v5169
      %5804 = vmatmul.mubr.bf16.gmra.mxu0 %v5168
      %v5805 = vpop.f32.mrf.mxu0
      %v5806 = vadd.f32 %v5645, %v5805
      %v5807 = vpop.f32.mrf.mxu0
      %v5808 = vpop.f32.mrf.mxu0
      %v5809 = vadd.f32 %v5648, %v5808
      %v5810 = vpop.f32.mrf.mxu0
      %5811 = vmatprep.mubr.bf16.mxu0 %v5174
      %5812 = vmatmul.mubr.bf16.gmra.mxu0 %v5173
      %v5813 = vpop.f32.mrf.mxu0
      %v5814 = vadd.f32 %v5653, %v5813
      %v5815 = vpop.f32.mrf.mxu0
      %v5816 = vpop.f32.mrf.mxu0
      %v5817 = vadd.f32 %v5656, %v5816
      %v5818 = vpop.f32.mrf.mxu0
      %5819 = vmatprep.mubr.bf16.mxu0 %v5179
      %5820 = vmatmul.mubr.bf16.gmra.mxu0 %v5178
      %v5821 = vpop.f32.mrf.mxu0
      %v5822 = vadd.f32 %v5661, %v5821
      %v5823 = vpop.f32.mrf.mxu0
      %v5824 = vpop.f32.mrf.mxu0
      %v5825 = vadd.f32 %v5664, %v5824
      %v5826 = vpop.f32.mrf.mxu0
      %5827 = vmatprep.mubr.bf16.mxu0 %v5184
      %5828 = vmatmul.mubr.bf16.gmra.mxu0 %v5183
      %v5829 = vpop.f32.mrf.mxu0
      %v5830 = vadd.f32 %v5669, %v5829
      %v5831 = vpop.f32.mrf.mxu0
      %v5832 = vpop.f32.mrf.mxu0
      %v5833 = vadd.f32 %v5672, %v5832
      %v5834 = vpop.f32.mrf.mxu0
      %5835 = vmatprep.mubr.bf16.mxu0 %v5189
      %5836 = vmatmul.mubr.bf16.gmra.mxu0 %v5188
      %v5837 = vpop.f32.mrf.mxu0
      %v5838 = vadd.f32 %v5677, %v5837
      %v5839 = vpop.f32.mrf.mxu0
      %v5840 = vpop.f32.mrf.mxu0
      %v5841 = vadd.f32 %v5680, %v5840
      %v5842 = vpop.f32.mrf.mxu0
      %5843 = vmatprep.mubr.bf16.mxu0 %v5194
      %5844 = vmatmul.mubr.bf16.gmra.mxu0 %v5193
      %v5845 = vpop.f32.mrf.mxu0
      %v5846 = vadd.f32 %v5685, %v5845
      %v5847 = vpop.f32.mrf.mxu0
      %v5848 = vpop.f32.mrf.mxu0
      %v5849 = vadd.f32 %v5688, %v5848
      %v5850 = vpop.f32.mrf.mxu0
      %5851 = vmatprep.mubr.bf16.mxu0 %v5199
      %5852 = vmatmul.mubr.bf16.gmra.mxu0 %v5198
      %v5853 = vpop.f32.mrf.mxu0
      %v5854 = vadd.f32 %v5693, %v5853
      %v5855 = vpop.f32.mrf.mxu0
      %v5856 = vpop.f32.mrf.mxu0
      %v5857 = vadd.f32 %v5696, %v5856
      %v5858 = vpop.f32.mrf.mxu0
      %5859 = vmatprep.mubr.bf16.mxu0 %v5204
      %5860 = vmatmul.mubr.bf16.gmra.mxu0 %v5203
      %v5861 = vpop.f32.mrf.mxu0
      %v5862 = vadd.f32 %v5701, %v5861
      %v5863 = vpop.f32.mrf.mxu0
      %v5864 = vpop.f32.mrf.mxu0
      %v5865 = vadd.f32 %v5704, %v5864
      %v5866 = vpop.f32.mrf.mxu0
      %5867 = vmatprep.mubr.bf16.mxu0 %v5209
      %5868 = vmatmul.mubr.bf16.gmra.mxu0 %v5208
      %v5869 = vpop.f32.mrf.mxu0
      %v5870 = vadd.f32 %v5709, %v5869
      %v5871 = vpop.f32.mrf.mxu0
      %v5872 = vpop.f32.mrf.mxu0
      %v5873 = vadd.f32 %v5712, %v5872
      %v5874 = vpop.f32.mrf.mxu0
      %5875 = vdwg.mxu0
      %5876 = vmatprep.subr.bf16.mxu0 0
      %5877 = vmatpush1.bf16.msra.mxu0 0
      %5878 = vmatprep.subr.bf16.mxu0 0
      %5879 = vmatpush1.bf16.msra.mxu0 0
      %5880 = vmatprep.subr.bf16.mxu0 0
      %5881 = vmatpush1.bf16.msra.mxu0 0
      %5882 = vmatprep.subr.bf16.mxu0 0
      %5883 = vmatpush1.bf16.msra.mxu0 0
      %5884 = vmatprep.subr.bf16.mxu0 0
      %5885 = vmatpush1.bf16.msra.mxu0 %v5469
      %5886 = vmatprep.subr.bf16.mxu0 0
      %5887 = vmatpush1.bf16.msra.mxu0 %v5468
      %5888 = vmatprep.subr.bf16.mxu0 0
      %5889 = vmatpush1.bf16.msra.mxu0 %v5467
      %5890 = vmatprep.subr.bf16.mxu0 0
      %5891 = vmatpush1.bf16.msra.mxu0 %v5466
      %5892 = vmatprep.subr.bf16.mxu0 0
      %5893 = vmatpush2.bf16.msra.mxu0 0
      %5894 = vmatprep.subr.bf16.mxu0 0
      %5895 = vmatpush2.bf16.msra.mxu0 0
      %5896 = vmatprep.subr.bf16.mxu0 0
      %5897 = vmatpush2.bf16.msra.mxu0 0
      %5898 = vmatprep.subr.bf16.mxu0 0
      %5899 = vmatpush2.bf16.msra.mxu0 0
      %5900 = vmatprep.subr.bf16.mxu0 0
      %5901 = vmatpush2.bf16.msra.mxu0 0
      %5902 = vmatprep.subr.bf16.mxu0 0
      %5903 = vmatpush2.bf16.msra.mxu0 0
      %5904 = vmatprep.subr.bf16.mxu0 0
      %5905 = vmatpush2.bf16.msra.mxu0 0
      %5906 = vmatprep.subr.bf16.mxu0 0
      %5907 = vmatpush2.bf16.msra.mxu0 0
      %5908 = vmatprep.mubr.bf16.mxu0 0
      %5909 = vmatmul.mubr.bf16.gmra.mxu0 %v5507
      %v5910 = vpop.f32.mrf.mxu0
      %v5911 = vadd.f32 %v5750, %v5910
      %v5912 = vpop.f32.mrf.mxu0
      %v5913 = vpop.f32.mrf.mxu0
      %v5914 = vadd.f32 %v5753, %v5913
      %v5915 = vpop.f32.mrf.mxu0
      %5916 = vmatprep.mubr.bf16.mxu0 0
      %5917 = vmatmul.mubr.bf16.gmra.mxu0 %v5510
      %v5918 = vpop.f32.mrf.mxu0
      %v5919 = vadd.f32 %v5758, %v5918
      %v5920 = vpop.f32.mrf.mxu0
      %v5921 = vpop.f32.mrf.mxu0
      %v5922 = vadd.f32 %v5761, %v5921
      %v5923 = vpop.f32.mrf.mxu0
      %5924 = vmatprep.mubr.bf16.mxu0 0
      %5925 = vmatmul.mubr.bf16.gmra.mxu0 %v5513
      %v5926 = vpop.f32.mrf.mxu0
      %v5927 = vadd.f32 %v5766, %v5926
      %v5928 = vpop.f32.mrf.mxu0
      %v5929 = vpop.f32.mrf.mxu0
      %v5930 = vadd.f32 %v5769, %v5929
      %v5931 = vpop.f32.mrf.mxu0
      %5932 = vmatprep.mubr.bf16.mxu0 0
      %5933 = vmatmul.mubr.bf16.gmra.mxu0 %v5516
      %v5934 = vpop.f32.mrf.mxu0
      %v5935 = vadd.f32 %v5774, %v5934
      %v5936 = vpop.f32.mrf.mxu0
      %v5937 = vpop.f32.mrf.mxu0
      %v5938 = vadd.f32 %v5777, %v5937
      %v5939 = vpop.f32.mrf.mxu0
      %5940 = vmatprep.mubr.bf16.mxu0 0
      %5941 = vmatmul.mubr.bf16.gmra.mxu0 %v5519
      %v5942 = vpop.f32.mrf.mxu0
      %v5943 = vadd.f32 %v5782, %v5942
      %v5944 = vpop.f32.mrf.mxu0
      %v5945 = vpop.f32.mrf.mxu0
      %v5946 = vadd.f32 %v5785, %v5945
      %v5947 = vpop.f32.mrf.mxu0
      %5948 = vmatprep.mubr.bf16.mxu0 0
      %5949 = vmatmul.mubr.bf16.gmra.mxu0 %v5522
      %v5950 = vpop.f32.mrf.mxu0
      %v5951 = vadd.f32 %v5790, %v5950
      %v5952 = vpop.f32.mrf.mxu0
      %v5953 = vpop.f32.mrf.mxu0
      %v5954 = vadd.f32 %v5793, %v5953
      %v5955 = vpop.f32.mrf.mxu0
      %5956 = vmatprep.mubr.bf16.mxu0 0
      %5957 = vmatmul.mubr.bf16.gmra.mxu0 %v5525
      %v5958 = vpop.f32.mrf.mxu0
      %v5959 = vadd.f32 %v5798, %v5958
      %v5960 = vpop.f32.mrf.mxu0
      %v5961 = vpop.f32.mrf.mxu0
      %v5962 = vadd.f32 %v5801, %v5961
      %v5963 = vpop.f32.mrf.mxu0
      %5964 = vmatprep.mubr.bf16.mxu0 0
      %5965 = vmatmul.mubr.bf16.gmra.mxu0 %v5528
      %v5966 = vpop.f32.mrf.mxu0
      %v5967 = vadd.f32 %v5806, %v5966
      %v5968 = vpop.f32.mrf.mxu0
      %v5969 = vpop.f32.mrf.mxu0
      %v5970 = vadd.f32 %v5809, %v5969
      %v5971 = vpop.f32.mrf.mxu0
      %5972 = vmatprep.mubr.bf16.mxu0 0
      %5973 = vmatmul.mubr.bf16.gmra.mxu0 %v5531
      %v5974 = vpop.f32.mrf.mxu0
      %v5975 = vadd.f32 %v5814, %v5974
      %v5976 = vpop.f32.mrf.mxu0
      %v5977 = vpop.f32.mrf.mxu0
      %v5978 = vadd.f32 %v5817, %v5977
      %v5979 = vpop.f32.mrf.mxu0
      %5980 = vmatprep.mubr.bf16.mxu0 0
      %5981 = vmatmul.mubr.bf16.gmra.mxu0 %v5534
      %v5982 = vpop.f32.mrf.mxu0
      %v5983 = vadd.f32 %v5822, %v5982
      %v5984 = vpop.f32.mrf.mxu0
      %v5985 = vpop.f32.mrf.mxu0
      %v5986 = vadd.f32 %v5825, %v5985
      %v5987 = vpop.f32.mrf.mxu0
      %5988 = vmatprep.mubr.bf16.mxu0 0
      %5989 = vmatmul.mubr.bf16.gmra.mxu0 %v5537
      %v5990 = vpop.f32.mrf.mxu0
      %v5991 = vadd.f32 %v5830, %v5990
      %v5992 = vpop.f32.mrf.mxu0
      %v5993 = vpop.f32.mrf.mxu0
      %v5994 = vadd.f32 %v5833, %v5993
      %v5995 = vpop.f32.mrf.mxu0
      %5996 = vmatprep.mubr.bf16.mxu0 0
      %5997 = vmatmul.mubr.bf16.gmra.mxu0 %v5540
      %v5998 = vpop.f32.mrf.mxu0
      %v5999 = vadd.f32 %v5838, %v5998
      %v6000 = vpop.f32.mrf.mxu0
      %v6001 = vpop.f32.mrf.mxu0
      %v6002 = vadd.f32 %v5841, %v6001
      %v6003 = vpop.f32.mrf.mxu0
      %6004 = vmatprep.mubr.bf16.mxu0 0
      %6005 = vmatmul.mubr.bf16.gmra.mxu0 %v5543
      %v6006 = vpop.f32.mrf.mxu0
      %v6007 = vadd.f32 %v5846, %v6006
      %v6008 = vpop.f32.mrf.mxu0
      %v6009 = vpop.f32.mrf.mxu0
      %v6010 = vadd.f32 %v5849, %v6009
      %v6011 = vpop.f32.mrf.mxu0
      %6012 = vmatprep.mubr.bf16.mxu0 0
      %6013 = vmatmul.mubr.bf16.gmra.mxu0 %v5546
      %v6014 = vpop.f32.mrf.mxu0
      %v6015 = vadd.f32 %v5854, %v6014
      %v6016 = vpop.f32.mrf.mxu0
      %v6017 = vpop.f32.mrf.mxu0
      %v6018 = vadd.f32 %v5857, %v6017
      %v6019 = vpop.f32.mrf.mxu0
      %6020 = vmatprep.mubr.bf16.mxu0 0
      %6021 = vmatmul.mubr.bf16.gmra.mxu0 %v5549
      %v6022 = vpop.f32.mrf.mxu0
      %v6023 = vadd.f32 %v5862, %v6022
      %v6024 = vpop.f32.mrf.mxu0
      %v6025 = vpop.f32.mrf.mxu0
      %v6026 = vadd.f32 %v5865, %v6025
      %v6027 = vpop.f32.mrf.mxu0
      %6028 = vmatprep.mubr.bf16.mxu0 0
      %6029 = vmatmul.mubr.bf16.gmra.mxu0 %v5552
      %v6030 = vpop.f32.mrf.mxu0
      %v6031 = vadd.f32 %v5870, %v6030
      %v6032 = vpop.f32.mrf.mxu0
      %v6033 = vpop.f32.mrf.mxu0
      %v6034 = vadd.f32 %v5873, %v6033
      %v6035 = vpop.f32.mrf.mxu0
      %6036 = vdwg.mxu0
      %v6037 = vmax.f32 %v5911, 0.0
      %v6038 = vmax.f32 %v5914, 0.0
      %v6039 = vmax.f32 %v5919, 0.0
      %v6040 = vmax.f32 %v5922, 0.0
      %v6041 = vmax.f32 %v5927, 0.0
      %v6042 = vmax.f32 %v5930, 0.0
      %v6043 = vmax.f32 %v5935, 0.0
      %v6044 = vmax.f32 %v5938, 0.0
      %v6045 = vmax.f32 %v5943, 0.0
      %v6046 = vmax.f32 %v5946, 0.0
      %v6047 = vmax.f32 %v5951, 0.0
      %v6048 = vmax.f32 %v5954, 0.0
      %v6049 = vmax.f32 %v5959, 0.0
      %v6050 = vmax.f32 %v5962, 0.0
      %v6051 = vmax.f32 %v5967, 0.0
      %v6052 = vmax.f32 %v5970, 0.0
      %v6053 = vmax.f32 %v5975, 0.0
      %v6054 = vmax.f32 %v5978, 0.0
      %v6055 = vmax.f32 %v5983, 0.0
      %v6056 = vmax.f32 %v5986, 0.0
      %v6057 = vmax.f32 %v5991, 0.0
      %v6058 = vmax.f32 %v5994, 0.0
      %v6059 = vmax.f32 %v5999, 0.0
      %v6060 = vmax.f32 %v6002, 0.0
      %v6061 = vmax.f32 %v6007, 0.0
      %v6062 = vmax.f32 %v6010, 0.0
      %v6063 = vmax.f32 %v6015, 0.0
      %v6064 = vmax.f32 %v6018, 0.0
      %v6065 = vmax.f32 %v6023, 0.0
      %v6066 = vmax.f32 %v6026, 0.0
      %v6067 = vmax.f32 %v6031, 0.0
      %v6068 = vmax.f32 %v6034, 0.0
      %6069 = vst [vmem:[%s467] sm:$0xff] %v6037
      %6070 = vst [vmem:[%s467 + $0x8] sm:$0xff] %v6038
      %6071 = vst [vmem:[%s467 + $0x10] sm:$0xff] %v6039
      %6072 = vst [vmem:[%s467 + $0x18] sm:$0xff] %v6040
      %6073 = vst [vmem:[%s467 + $0x20] sm:$0xff] %v6041
      %6074 = vst [vmem:[%s467 + $0x28] sm:$0xff] %v6042
      %6075 = vst [vmem:[%s467 + $0x30] sm:$0xff] %v6043
      %6076 = vst [vmem:[%s467 + $0x38] sm:$0xff] %v6044
      %6077 = vst [vmem:[%s467 + $0x40] sm:$0xff] %v6045
      %6078 = vst [vmem:[%s467 + $0x48] sm:$0xff] %v6046
      %6079 = vst [vmem:[%s467 + $0x50] sm:$0xff] %v6047
      %6080 = vst [vmem:[%s467 + $0x58] sm:$0xff] %v6048
      %6081 = vst [vmem:[%s467 + $0x60] sm:$0xff] %v6049
      %6082 = vst [vmem:[%s467 + $0x68] sm:$0xff] %v6050
      %6083 = vst [vmem:[%s467 + $0x70] sm:$0xff] %v6051
      %6084 = vst [vmem:[%s467 + $0x78] sm:$0xff] %v6052
      %6085 = vst [vmem:[%s467 + $0x80] sm:$0xff] %v6053
      %6086 = vst [vmem:[%s467 + $0x88] sm:$0xff] %v6054
      %6087 = vst [vmem:[%s467 + $0x90] sm:$0xff] %v6055
      %6088 = vst [vmem:[%s467 + $0x98] sm:$0xff] %v6056
      %6089 = vst [vmem:[%s467 + $0xa0] sm:$0xff] %v6057
      %6090 = vst [vmem:[%s467 + $0xa8] sm:$0xff] %v6058
      %6091 = vst [vmem:[%s467 + $0xb0] sm:$0xff] %v6059
      %6092 = vst [vmem:[%s467 + $0xb8] sm:$0xff] %v6060
      %6093 = vst [vmem:[%s467 + $0xc0] sm:$0xff] %v6061
      %6094 = vst [vmem:[%s467 + $0xc8] sm:$0xff] %v6062
      %6095 = vst [vmem:[%s467 + $0xd0] sm:$0xff] %v6063
      %6096 = vst [vmem:[%s467 + $0xd8] sm:$0xff] %v6064
      %6097 = vst [vmem:[%s467 + $0xe0] sm:$0xff] %v6065
      %6098 = vst [vmem:[%s467 + $0xe8] sm:$0xff] %v6066
      %6099 = vst [vmem:[%s467 + $0xf0] sm:$0xff] %v6067
      %6100 = vst [vmem:[%s467 + $0xf8] sm:$0xff] %v6068
      %p6101 = scmp.lt.s32.totalorder %s25, 1
      %s6102 = scalar_select %p6101, %s25, 1
      %s6103 = smul.addr %s6102, 32
      %s6104 = smul.addr %s6103, 8
      %s6105 = scalar_lea.vmem %s14, %s6104
      // Predicated region
      $region77: #{autoencoder_forward.1} parent=75 // pred_check
        %p6106 = pneg %p342
      $region78: #{autoencoder_forward.1} parent=75 // pred_check_branch
        %6108 = sbr.rel (%p6106) target = $region80
      $region79: #{autoencoder_forward.1} parent=75 // pred_region
        _
      $region80: #{autoencoder_forward.1} parent=75 // pred_fallthru
        _
    $region76: #{autoencoder_forward.1} parent=5 // pred_fallthru
      _
    %p6109 = scmp.le.s32.totalorder 2, %s20
    // Predicated region
    $region81: #{autoencoder_forward.1} parent=5 // pred_check
      %p6110 = pneg %p6109
    $region82: #{autoencoder_forward.1} parent=5 // pred_check_branch
      %6112 = sbr.rel (%p6110) target = $region84
    $region83: #{autoencoder_forward.1} parent=5 // pred_region
      %s6113 = ssub.s32 %s20, 2
      // Predicated region
      $region85: #{autoencoder_forward.1} parent=83 // pred_check
        %p6114 = pneg %p348
      $region86: #{autoencoder_forward.1} parent=83 // pred_check_branch
        %6116 = sbr.rel (%p6114) target = $region88
      $region87: #{autoencoder_forward.1} parent=83 // pred_region
        %p6117 = scmp.lt.s32.totalorder %s26, 1
        %s6118 = scalar_select %p6117, %s26, 1
        %s6119 = smul.addr %s6118, 32
        %s6120 = smul.addr %s6119, 8
        %s6121 = scalar_lea.vmem %s14, %s6120
      $region88: #{autoencoder_forward.1} parent=83 // pred_fallthru
        _
    $region84: #{autoencoder_forward.1} parent=5 // pred_fallthru
      _
  $region6: #{autoencoder_forward.1} parent=0 // loop_footer
    %s24 = sadd.s32 1, %s20
  $region7: #{autoencoder_forward.1} parent=0 // loop_footer_branch
    %19 = sbr.rel target = $region3
  $region8: #{autoencoder_forward.1} parent=0 // loop_exit
    _

</llo_original>
